<compile_context>
chip_gen: v7x
topology: tpu7x:2x2x1
jax: 0.10.0
libtpu: 0.0.40
codegen_flags: <defaults>
</compile_context>

<pallas_src>
import jax
import jax.numpy as jnp
from jax.experimental import pallas as pl
from jax.experimental.pallas import tpu as pltpu

K = 15      # conv kernel length
PAD = 7     # padding along the conv axis


def _vmem_capacity_bytes():
    try:
        return int(pltpu.get_tpu_info().vmem_capacity_bytes)
    except Exception:
        return 64 * 1024 * 1024          # conservative (v7x-sized) fallback


def _choose_h_tile(Hp, W, n_batch):
    """H-tile (multiple of 8).  Bigger tiles amortize per-grid-step overhead;
    cap spatial positions per step so blocks + the (W+14)*h_tile*256 scratch +
    f32 temporaries stay comfortably inside VMEM."""
    cap = 2048 if _vmem_capacity_bytes() <= 64 * 1024 * 1024 else 4096
    ht = Hp
    while ht % 16 == 0 and W * ht > cap:
        ht //= 2
    # keep >=2 grid steps so both v7x TensorCores get work under "parallel"
    if n_batch == 1 and Hp // ht < 2 and ht % 32 == 0:
        ht //= 2
    return ht


def make_light_head_kernel(W, h_tile, C2, CO, KC):
    WH = W * h_tile                   # spatial positions per grid step, (w,h)-major
    PH = PAD * h_tile                 # zero-pad rows at the front of the scratch
    R = (W + 2 * PAD) * h_tile        # scratch rows
    NP = K // 2                       # 7 fused tap pairs; tap 14 handled alone

    def kernel(x_ref, wv_ref, bv_ref, whp_ref, whl_ref, b2_ref, b4_ref,
               o_ref, upad_ref):
        # ---- vertical (15,1) conv: one branch-fused bf16 MXU matmul ---------
        xl = x_ref[...].reshape(WH, KC)                       # (WH, K*C_in) bf16
        u = jnp.dot(xl, wv_ref[...], preferred_element_type=jnp.float32)
        u = jnp.maximum(u + bv_ref[...], 0.0).astype(jnp.bfloat16)   # (WH, C2)

        # ---- stage u into the W-padded, (w,h)-major scratch.  Columns
        # [0,C2) hold u at its natural offset, columns [C2,2*C2) hold u shifted
        # up by one w position, so every tap PAIR is one contiguous row slice
        # with a 2*C2-deep contraction (fills the 256-deep v6e/v7x MXU).
        # Pad rows are re-zeroed every step: the scratch persists across the
        # "parallel" grid, so zero-once would be unsafe.
        upad_ref[0:PH, :] = jnp.zeros((PH, 2 * C2), jnp.bfloat16)
        upad_ref[PH + WH - h_tile:R, :] = jnp.zeros((8 * h_tile, 2 * C2),
                                                    jnp.bfloat16)
        upad_ref[PH:PH + WH, 0:C2] = u
        upad_ref[PH - h_tile:PH - h_tile + WH, C2:2 * C2] = u

        # ---- horizontal (1,15) conv: 7 tap-pair matmuls + 1 single tap.
        # Output is branch-packed and channel-trimmed: cols [0,CO) = branch A,
        # [CO,2*CO) = branch B (c_out zero-padded to CO) -> no zero-block MACs.
        acc = jnp.dot(upad_ref[0:WH, :], whp_ref[0],
                      preferred_element_type=jnp.float32)
        for p in range(1, NP):                                # unrolled static taps
            acc = acc + jnp.dot(upad_ref[2 * p * h_tile:2 * p * h_tile + WH, :],
                                whp_ref[p], preferred_element_type=jnp.float32)
        acc = acc + jnp.dot(
            upad_ref[(K - 1) * h_tile:(K - 1) * h_tile + WH, 0:C2],
            whl_ref[...], preferred_element_type=jnp.float32)

        # per-branch bias + ReLU (relu(a)+relu(b) != relu(a+b)), branch sum,
        # and a channel-trimmed store (only CO=16 channels ever reach HBM).
        out_a = jnp.maximum(acc[:, 0:CO] + b2_ref[...], 0.0)
        out_b = jnp.maximum(acc[:, CO:2 * CO] + b4_ref[...], 0.0)
        o_ref[...] = out_a + out_b

    return kernel


def light_head_forward(x, params):
    """x: (N, C_in, H, W) float32 NCHW (backbone output). params: PyTorch OIHW."""
    w1, b1, w2, b2, w3, b3, w4, b4 = params
    N, C_in, H, W = x.shape
    out_mode = w1.shape[0]
    c_out = w2.shape[0]
    C2 = 2 * out_mode                       # branch-fused intermediate channels
    CO = max(8, ((c_out + 7) // 8) * 8)     # per-branch padded output channels
    KC = K * C_in                           # im2col'd vertical contraction

    Hp = ((H + 7) // 8) * 8                 # pad H to a multiple of 8 (item 7)
    h_tile = _choose_h_tile(Hp, W, N)
    n_ht = Hp // h_tile
    WH = W * h_tile
    NP = K // 2

    # ---- input glue: NCHW -> (N, W, Hp+14, C) bf16, then im2col the 15 H-taps
    # into the channel dim with ONE stack-of-slices gather.  The array is laid
    # out (N, W, n_ht, h_tile, KC) so no transpose of the K-blown tensor is
    # needed and each grid block is a simple strided rectangle.
    xt = jnp.transpose(x, (0, 3, 2, 1)).astype(jnp.bfloat16)           # (N,W,H,C)
    xt = jnp.pad(xt, ((0, 0), (0, 0), (PAD, PAD + Hp - H), (0, 0)))
    x_f = jnp.concatenate([xt[:, :, k:k + Hp, :] for k in range(K)], axis=-1)
    x_f = x_f.reshape(N, W, n_ht, h_tile, KC)

    # ---- fused vertical weight (K*C_in, 2*out_mode): branches side by side ----
    wv1 = jnp.transpose(w1[:, :, :, 0], (2, 1, 0)).reshape(KC, out_mode)
    wv3 = jnp.transpose(w3[:, :, :, 0], (2, 1, 0)).reshape(KC, out_mode)
    wv = jnp.concatenate([wv1, wv3], axis=1).astype(jnp.bfloat16)      # (KC, C2)
    bv = jnp.concatenate([b1, b3]).reshape(1, C2).astype(jnp.float32)

    # ---- branch-packed horizontal weights: 7 tap-pair blocks (2*C2, 2*CO) and
    # the final single tap (C2, 2*CO); c_out zero-padded to CO per branch.
    wh2 = jnp.transpose(w2[:, :, 0, :], (2, 1, 0))          # (K, out_mode, c_out)
    wh4 = jnp.transpose(w4[:, :, 0, :], (2, 1, 0))
    whp = jnp.zeros((NP, 2 * C2, 2 * CO), jnp.float32)
    whp = whp.at[:, 0:out_mode, 0:c_out].set(wh2[0:2 * NP:2])          # tap 2p, A
    whp = whp.at[:, out_mode:C2, CO:CO + c_out].set(wh4[0:2 * NP:2])   # tap 2p, B
    whp = whp.at[:, C2:C2 + out_mode, 0:c_out].set(wh2[1:2 * NP:2])    # tap 2p+1, A
    whp = whp.at[:, C2 + out_mode:2 * C2, CO:CO + c_out].set(wh4[1:2 * NP:2])
    whp = whp.astype(jnp.bfloat16)
    whl = jnp.zeros((C2, 2 * CO), jnp.float32)
    whl = whl.at[0:out_mode, 0:c_out].set(wh2[K - 1])
    whl = whl.at[out_mode:C2, CO:CO + c_out].set(wh4[K - 1])
    whl = whl.astype(jnp.bfloat16)
    bh2 = jnp.zeros((1, CO), jnp.float32).at[0, :c_out].set(b2.astype(jnp.float32))
    bh4 = jnp.zeros((1, CO), jnp.float32).at[0, :c_out].set(b4.astype(jnp.float32))

    # ---- one fused pallas_call over an (N, H-tile) parallel grid -------------
    y = pl.pallas_call(
        make_light_head_kernel(W, h_tile, C2, CO, KC),
        out_shape=jax.ShapeDtypeStruct((N, n_ht, WH, CO), jnp.float32),
        grid_spec=pltpu.PrefetchScalarGridSpec(
            num_scalar_prefetch=0,
            grid=(N, n_ht),
            in_specs=[
                pl.BlockSpec((None, W, None, h_tile, KC),
                             lambda n, t: (n, 0, t, 0, 0)),
                pl.BlockSpec((KC, C2), lambda n, t: (0, 0)),
                pl.BlockSpec((1, C2), lambda n, t: (0, 0)),
                pl.BlockSpec((NP, 2 * C2, 2 * CO), lambda n, t: (0, 0, 0)),
                pl.BlockSpec((C2, 2 * CO), lambda n, t: (0, 0)),
                pl.BlockSpec((1, CO), lambda n, t: (0, 0)),
                pl.BlockSpec((1, CO), lambda n, t: (0, 0)),
            ],
            out_specs=pl.BlockSpec((None, None, WH, CO),
                                   lambda n, t: (n, t, 0, 0)),
            scratch_shapes=[
                pltpu.VMEM(((W + 2 * PAD) * h_tile, 2 * C2), jnp.bfloat16),
            ],
        ),
        compiler_params=pltpu.CompilerParams(
            dimension_semantics=("parallel", "parallel"),
            vmem_limit_bytes=64 * 1024 * 1024,
        ),
    )(x_f, wv, bv, whp, whl, bh2, bh4)

    # ---- glue: trim channel padding FIRST, then the small transpose to NCHW --
    y = y[..., :c_out]                                  # (N, n_ht, WH, c_out)
    y = y.reshape(N, n_ht, W, h_tile, c_out)
    y = jnp.transpose(y, (0, 4, 1, 3, 2)).reshape(N, c_out, Hp, W)
    return y[:, :, :H, :]


# ---------------- pure-JAX reference (same semantics as the PyTorch module) ----
def _conv2d_nchw(x, w, b, pad_h, pad_w):
    y = jax.lax.conv_general_dilated(
        x, w, window_strides=(1, 1),
        padding=((pad_h, pad_h), (pad_w, pad_w)),
        dimension_numbers=("NCHW", "OIHW", "NCHW"))
    return y + b.reshape(1, -1, 1, 1)


def light_head_reference(x, params):
    w1, b1, w2, b2, w3, b3, w4, b4 = params
    a = jnp.maximum(_conv2d_nchw(x, w1, b1, PAD, 0), 0.0)
    a = jnp.maximum(_conv2d_nchw(a, w2, b2, 0, PAD), 0.0)
    c = jnp.maximum(_conv2d_nchw(x, w3, b3, PAD, 0), 0.0)
    c = jnp.maximum(_conv2d_nchw(c, w4, b4, 0, PAD), 0.0)
    return a + c


if __name__ == "__main__":
    # LightHead(in_=4, mode='S', out_size='Thin') -> out_mode=64, c_out=10
    N, C_in, H, W = 2, 4, 16, 16
    out_mode, c_out = 64, 10

    key = jax.random.PRNGKey(0)
    kx, k1, k2, k3, k4, k5, k6, k7, k8 = jax.random.split(key, 9)

    x = jax.random.normal(kx, (N, C_in, H, W), jnp.float32)

    # deterministic parameter init (PyTorch weight layout: OIHW)
    params = (
        jax.random.normal(k1, (out_mode, C_in, K, 1), jnp.float32) * 0.05,   # conv1.w
        jax.random.normal(k2, (out_mode,), jnp.float32) * 0.05,              # conv1.b
        jax.random.normal(k3, (c_out, out_mode, 1, K), jnp.float32) * 0.05,  # conv2.w
        jax.random.normal(k4, (c_out,), jnp.float32) * 0.05,                 # conv2.b
        jax.random.normal(k5, (out_mode, C_in, K, 1), jnp.float32) * 0.05,   # conv3.w
        jax.random.normal(k6, (out_mode,), jnp.float32) * 0.05,              # conv3.b
        jax.random.normal(k7, (c_out, out_mode, 1, K), jnp.float32) * 0.05,  # conv4.w
        jax.random.normal(k8, (c_out,), jnp.float32) * 0.05,                 # conv4.b
    )

    out = jax.block_until_ready(light_head_forward(x, params))

    # The kernel intentionally runs the matmuls with bf16 operands / f32
    # accumulation (perf feedback), so validate against the f32 reference
    # evaluated on bf16-rounded operands at a correspondingly tight tolerance.
    def _rt(a):
        return a.astype(jnp.bfloat16).astype(jnp.float32)

    ref = jax.block_until_ready(
        light_head_reference(_rt(x), tuple(_rt(p) for p in params)))

    assert out.shape == (N, c_out, H, W), out.shape
    err = float(jnp.max(jnp.abs(out - ref)))
    assert err < 1e-2, err
    print("KERNEL_OK")
</pallas_src>

<mosaic_0001>
module attributes {stable_mosaic.version = 11 : i64} {
  func.func @kernel(%arg0: i32, %arg1: i32, %arg2: memref<1x16x1x16x60xbf16, #tpu.memory_space<vmem>>, %arg3: memref<60x128xbf16, #tpu.memory_space<vmem>>, %arg4: memref<1x128xf32, #tpu.memory_space<vmem>>, %arg5: memref<7x256x32xbf16, #tpu.memory_space<vmem>>, %arg6: memref<128x32xbf16, #tpu.memory_space<vmem>>, %arg7: memref<1x16xf32, #tpu.memory_space<vmem>>, %arg8: memref<1x16xf32, #tpu.memory_space<vmem>>, %arg9: memref<1x1x256x16xf32, #tpu.memory_space<vmem>>, %arg10: memref<480x256xbf16, #tpu.memory_space<vmem>>) attributes {dimension_semantics = [#tpu.dimension_semantics<parallel>, #tpu.dimension_semantics<parallel>], iteration_bounds = array<i64: 2, 1>, scalar_prefetch = 0 : i64, scratch_operands = 1 : i64, tpu.core_type = #tpu.core_type<tc>, window_params = [{transform_indices = @transform_0, window_bounds = array<i64: 1, 16, 1, 16, 60>}, {pipeline_mode = #tpu.pipeline_mode<synchronous>, transform_indices = @transform_1, window_bounds = array<i64: 60, 128>}, {pipeline_mode = #tpu.pipeline_mode<synchronous>, transform_indices = @transform_2, window_bounds = array<i64: 1, 128>}, {pipeline_mode = #tpu.pipeline_mode<synchronous>, transform_indices = @transform_3, window_bounds = array<i64: 7, 256, 32>}, {pipeline_mode = #tpu.pipeline_mode<synchronous>, transform_indices = @transform_4, window_bounds = array<i64: 128, 32>}, {pipeline_mode = #tpu.pipeline_mode<synchronous>, transform_indices = @transform_5, window_bounds = array<i64: 1, 16>}, {pipeline_mode = #tpu.pipeline_mode<synchronous>, transform_indices = @transform_6, window_bounds = array<i64: 1, 16>}, {transform_indices = @transform_7, window_bounds = array<i64: 1, 1, 256, 16>}]} {
    %c0 = arith.constant 0 : index
    %c0_0 = arith.constant 0 : index
    %c0_1 = arith.constant 0 : index
    %c0_2 = arith.constant 0 : index
    %c0_3 = arith.constant 0 : index
    %0 = vector.load %arg2[%c0, %c0_0, %c0_1, %c0_2, %c0_3] : memref<1x16x1x16x60xbf16, #tpu.memory_space<vmem>>, vector<1x16x1x16x60xbf16>
    %1 = vector.shape_cast %0 : vector<1x16x1x16x60xbf16> to vector<16x16x60xbf16>
    %2 = vector.shape_cast %1 : vector<16x16x60xbf16> to vector<256x60xbf16>
    %c0_4 = arith.constant 0 : index
    %c0_5 = arith.constant 0 : index
    %3 = vector.load %arg3[%c0_4, %c0_5] : memref<60x128xbf16, #tpu.memory_space<vmem>>, vector<60x128xbf16>
    %cst = arith.constant dense<0.000000e+00> : vector<256x128xf32>
    %4 = tpu.matmul %2, %3, %cst {dimension_numbers = #tpu.dot_dimension_numbers<[1], [0], [0], [1], [0, 0, 1, 1], [], []>} : vector<256x60xbf16>, vector<60x128xbf16>, vector<256x128xf32> -> vector<256x128xf32>
    %c0_6 = arith.constant 0 : index
    %c0_7 = arith.constant 0 : index
    %5 = vector.load %arg4[%c0_6, %c0_7] : memref<1x128xf32, #tpu.memory_space<vmem>>, vector<1x128xf32>
    %6 = vector.broadcast %5 : vector<1x128xf32> to vector<256x128xf32>
    %7 = arith.addf %4, %6 : vector<256x128xf32>
    %cst_8 = arith.constant 0.000000e+00 : f32
    %8 = vector.broadcast %cst_8 : f32 to vector<256x128xf32>
    %9 = arith.maximumf %7, %8 : vector<256x128xf32>
    %10 = arith.truncf %9 : vector<256x128xf32> to vector<256x128xbf16>
    %cst_9 = arith.constant 0.000000e+00 : bf16
    %11 = vector.broadcast %cst_9 : bf16 to vector<112x256xbf16>
    %c0_10 = arith.constant 0 : index
    %c0_11 = arith.constant 0 : index
    %12 = vector.load %arg10[%c0_10, %c0_11] : memref<480x256xbf16, #tpu.memory_space<vmem>>, vector<112x256xbf16>
    tpu.vector_store %arg10[%c0_10, %c0_11], %11 {strides = array<i32>} : memref<480x256xbf16, #tpu.memory_space<vmem>>, vector<112x256xbf16>,
    %cst_12 = arith.constant 0.000000e+00 : bf16
    %13 = vector.broadcast %cst_12 : bf16 to vector<128x256xbf16>
    %c352 = arith.constant 352 : index
    %c0_13 = arith.constant 0 : index
    %14 = vector.load %arg10[%c352, %c0_13] : memref<480x256xbf16, #tpu.memory_space<vmem>>, vector<128x256xbf16>
    tpu.vector_store %arg10[%c352, %c0_13], %13 {strides = array<i32>} : memref<480x256xbf16, #tpu.memory_space<vmem>>, vector<128x256xbf16>,
    %c112 = arith.constant 112 : index
    %c0_14 = arith.constant 0 : index
    %15 = vector.load %arg10[%c112, %c0_14] : memref<480x256xbf16, #tpu.memory_space<vmem>>, vector<256x128xbf16>
    tpu.vector_store %arg10[%c112, %c0_14], %10 {strides = array<i32>} : memref<480x256xbf16, #tpu.memory_space<vmem>>, vector<256x128xbf16>,
    %c96 = arith.constant 96 : index
    %c128 = arith.constant 128 : index
    %16 = vector.load %arg10[%c96, %c128] : memref<480x256xbf16, #tpu.memory_space<vmem>>, vector<256x128xbf16>
    tpu.vector_store %arg10[%c96, %c128], %10 {strides = array<i32>} : memref<480x256xbf16, #tpu.memory_space<vmem>>, vector<256x128xbf16>,
    %c0_15 = arith.constant 0 : index
    %c0_16 = arith.constant 0 : index
    %17 = vector.load %arg10[%c0_15, %c0_16] : memref<480x256xbf16, #tpu.memory_space<vmem>>, vector<256x256xbf16>
    %c0_17 = arith.constant 0 : index
    %c0_18 = arith.constant 0 : index
    %c0_19 = arith.constant 0 : index
    %18 = vector.load %arg5[%c0_17, %c0_18, %c0_19] : memref<7x256x32xbf16, #tpu.memory_space<vmem>>, vector<1x256x32xbf16>
    %19 = vector.shape_cast %18 : vector<1x256x32xbf16> to vector<256x32xbf16>
    %cst_20 = arith.constant dense<0.000000e+00> : vector<256x32xf32>
    %20 = tpu.matmul %17, %19, %cst_20 {dimension_numbers = #tpu.dot_dimension_numbers<[1], [0], [0], [1], [0, 0, 1, 1], [], []>} : vector<256x256xbf16>, vector<256x32xbf16>, vector<256x32xf32> -> vector<256x32xf32>
    %c32 = arith.constant 32 : index
    %c0_21 = arith.constant 0 : index
    %21 = vector.load %arg10[%c32, %c0_21] : memref<480x256xbf16, #tpu.memory_space<vmem>>, vector<256x256xbf16>
    %c1 = arith.constant 1 : index
    %c0_22 = arith.constant 0 : index
    %c0_23 = arith.constant 0 : index
    %22 = vector.load %arg5[%c1, %c0_22, %c0_23] : memref<7x256x32xbf16, #tpu.memory_space<vmem>>, vector<1x256x32xbf16>
    %23 = vector.shape_cast %22 : vector<1x256x32xbf16> to vector<256x32xbf16>
    %cst_24 = arith.constant dense<0.000000e+00> : vector<256x32xf32>
    %24 = tpu.matmul %21, %23, %cst_24 {dimension_numbers = #tpu.dot_dimension_numbers<[1], [0], [0], [1], [0, 0, 1, 1], [], []>} : vector<256x256xbf16>, vector<256x32xbf16>, vector<256x32xf32> -> vector<256x32xf32>
    %25 = arith.addf %20, %24 : vector<256x32xf32>
    %c64 = arith.constant 64 : index
    %c0_25 = arith.constant 0 : index
    %26 = vector.load %arg10[%c64, %c0_25] : memref<480x256xbf16, #tpu.memory_space<vmem>>, vector<256x256xbf16>
    %c2 = arith.constant 2 : index
    %c0_26 = arith.constant 0 : index
    %c0_27 = arith.constant 0 : index
    %27 = vector.load %arg5[%c2, %c0_26, %c0_27] : memref<7x256x32xbf16, #tpu.memory_space<vmem>>, vector<1x256x32xbf16>
    %28 = vector.shape_cast %27 : vector<1x256x32xbf16> to vector<256x32xbf16>
    %cst_28 = arith.constant dense<0.000000e+00> : vector<256x32xf32>
    %29 = tpu.matmul %26, %28, %cst_28 {dimension_numbers = #tpu.dot_dimension_numbers<[1], [0], [0], [1], [0, 0, 1, 1], [], []>} : vector<256x256xbf16>, vector<256x32xbf16>, vector<256x32xf32> -> vector<256x32xf32>
    %30 = arith.addf %25, %29 : vector<256x32xf32>
    %c96_29 = arith.constant 96 : index
    %c0_30 = arith.constant 0 : index
    %31 = vector.load %arg10[%c96_29, %c0_30] : memref<480x256xbf16, #tpu.memory_space<vmem>>, vector<256x256xbf16>
    %c3 = arith.constant 3 : index
    %c0_31 = arith.constant 0 : index
    %c0_32 = arith.constant 0 : index
    %32 = vector.load %arg5[%c3, %c0_31, %c0_32] : memref<7x256x32xbf16, #tpu.memory_space<vmem>>, vector<1x256x32xbf16>
    %33 = vector.shape_cast %32 : vector<1x256x32xbf16> to vector<256x32xbf16>
    %cst_33 = arith.constant dense<0.000000e+00> : vector<256x32xf32>
    %34 = tpu.matmul %31, %33, %cst_33 {dimension_numbers = #tpu.dot_dimension_numbers<[1], [0], [0], [1], [0, 0, 1, 1], [], []>} : vector<256x256xbf16>, vector<256x32xbf16>, vector<256x32xf32> -> vector<256x32xf32>
    %35 = arith.addf %30, %34 : vector<256x32xf32>
    %c128_34 = arith.constant 128 : index
    %c0_35 = arith.constant 0 : index
    %36 = vector.load %arg10[%c128_34, %c0_35] : memref<480x256xbf16, #tpu.memory_space<vmem>>, vector<256x256xbf16>
    %c4 = arith.constant 4 : index
    %c0_36 = arith.constant 0 : index
    %c0_37 = arith.constant 0 : index
    %37 = vector.load %arg5[%c4, %c0_36, %c0_37] : memref<7x256x32xbf16, #tpu.memory_space<vmem>>, vector<1x256x32xbf16>
    %38 = vector.shape_cast %37 : vector<1x256x32xbf16> to vector<256x32xbf16>
    %cst_38 = arith.constant dense<0.000000e+00> : vector<256x32xf32>
    %39 = tpu.matmul %36, %38, %cst_38 {dimension_numbers = #tpu.dot_dimension_numbers<[1], [0], [0], [1], [0, 0, 1, 1], [], []>} : vector<256x256xbf16>, vector<256x32xbf16>, vector<256x32xf32> -> vector<256x32xf32>
    %40 = arith.addf %35, %39 : vector<256x32xf32>
    %c160 = arith.constant 160 : index
    %c0_39 = arith.constant 0 : index
    %41 = vector.load %arg10[%c160, %c0_39] : memref<480x256xbf16, #tpu.memory_space<vmem>>, vector<256x256xbf16>
    %c5 = arith.constant 5 : index
    %c0_40 = arith.constant 0 : index
    %c0_41 = arith.constant 0 : index
    %42 = vector.load %arg5[%c5, %c0_40, %c0_41] : memref<7x256x32xbf16, #tpu.memory_space<vmem>>, vector<1x256x32xbf16>
    %43 = vector.shape_cast %42 : vector<1x256x32xbf16> to vector<256x32xbf16>
    %cst_42 = arith.constant dense<0.000000e+00> : vector<256x32xf32>
    %44 = tpu.matmul %41, %43, %cst_42 {dimension_numbers = #tpu.dot_dimension_numbers<[1], [0], [0], [1], [0, 0, 1, 1], [], []>} : vector<256x256xbf16>, vector<256x32xbf16>, vector<256x32xf32> -> vector<256x32xf32>
    %45 = arith.addf %40, %44 : vector<256x32xf32>
    %c192 = arith.constant 192 : index
    %c0_43 = arith.constant 0 : index
    %46 = vector.load %arg10[%c192, %c0_43] : memref<480x256xbf16, #tpu.memory_space<vmem>>, vector<256x256xbf16>
    %c6 = arith.constant 6 : index
    %c0_44 = arith.constant 0 : index
    %c0_45 = arith.constant 0 : index
    %47 = vector.load %arg5[%c6, %c0_44, %c0_45] : memref<7x256x32xbf16, #tpu.memory_space<vmem>>, vector<1x256x32xbf16>
    %48 = vector.shape_cast %47 : vector<1x256x32xbf16> to vector<256x32xbf16>
    %cst_46 = arith.constant dense<0.000000e+00> : vector<256x32xf32>
    %49 = tpu.matmul %46, %48, %cst_46 {dimension_numbers = #tpu.dot_dimension_numbers<[1], [0], [0], [1], [0, 0, 1, 1], [], []>} : vector<256x256xbf16>, vector<256x32xbf16>, vector<256x32xf32> -> vector<256x32xf32>
    %50 = arith.addf %45, %49 : vector<256x32xf32>
    %c224 = arith.constant 224 : index
    %c0_47 = arith.constant 0 : index
    %51 = vector.load %arg10[%c224, %c0_47] : memref<480x256xbf16, #tpu.memory_space<vmem>>, vector<256x128xbf16>
    %c0_48 = arith.constant 0 : index
    %c0_49 = arith.constant 0 : index
    %52 = vector.load %arg6[%c0_48, %c0_49] : memref<128x32xbf16, #tpu.memory_space<vmem>>, vector<128x32xbf16>
    %cst_50 = arith.constant dense<0.000000e+00> : vector<256x32xf32>
    %53 = tpu.matmul %51, %52, %cst_50 {dimension_numbers = #tpu.dot_dimension_numbers<[1], [0], [0], [1], [0, 0, 1, 1], [], []>} : vector<256x128xbf16>, vector<128x32xbf16>, vector<256x32xf32> -> vector<256x32xf32>
    %54 = arith.addf %50, %53 : vector<256x32xf32>
    %55 = vector.extract_strided_slice %54 {offsets = [0, 0], sizes = [256, 16], strides = [1, 1]} : vector<256x32xf32> to vector<256x16xf32>
    %c0_51 = arith.constant 0 : index
    %c0_52 = arith.constant 0 : index
    %56 = vector.load %arg7[%c0_51, %c0_52] : memref<1x16xf32, #tpu.memory_space<vmem>>, vector<1x16xf32>
    %57 = vector.broadcast %56 : vector<1x16xf32> to vector<256x16xf32>
    %58 = arith.addf %55, %57 : vector<256x16xf32>
    %cst_53 = arith.constant 0.000000e+00 : f32
    %59 = vector.broadcast %cst_53 : f32 to vector<256x16xf32>
    %60 = arith.maximumf %58, %59 : vector<256x16xf32>
    %61 = vector.extract_strided_slice %54 {offsets = [0, 16], sizes = [256, 16], strides = [1, 1]} : vector<256x32xf32> to vector<256x16xf32>
    %c0_54 = arith.constant 0 : index
    %c0_55 = arith.constant 0 : index
    %62 = vector.load %arg8[%c0_54, %c0_55] : memref<1x16xf32, #tpu.memory_space<vmem>>, vector<1x16xf32>
    %63 = vector.broadcast %62 : vector<1x16xf32> to vector<256x16xf32>
    %64 = arith.addf %61, %63 : vector<256x16xf32>
    %cst_56 = arith.constant 0.000000e+00 : f32
    %65 = vector.broadcast %cst_56 : f32 to vector<256x16xf32>
    %66 = arith.maximumf %64, %65 : vector<256x16xf32>
    %67 = arith.addf %60, %66 : vector<256x16xf32>
    %c0_57 = arith.constant 0 : index
    %c0_58 = arith.constant 0 : index
    %c0_59 = arith.constant 0 : index
    %c0_60 = arith.constant 0 : index
    %68 = vector.load %arg9[%c0_57, %c0_58, %c0_59, %c0_60] : memref<1x1x256x16xf32, #tpu.memory_space<vmem>>, vector<1x1x256x16xf32>
    %69 = vector.shape_cast %68 : vector<1x1x256x16xf32> to vector<256x16xf32>
    %70 = vector.shape_cast %67 : vector<256x16xf32> to vector<1x1x256x16xf32>
    tpu.vector_store %arg9[%c0_57, %c0_58, %c0_59, %c0_60], %70 {strides = array<i32>} : memref<1x1x256x16xf32, #tpu.memory_space<vmem>>, vector<1x1x256x16xf32>,
    return
  }
  func.func @transform_0(%arg0: i32, %arg1: i32) -> (i32, i32, i32, i32, i32) {
    %c0_i32 = arith.constant 0 : i32
    %c0_i32_0 = arith.constant 0 : i32
    %c0_i32_1 = arith.constant 0 : i32
    %c0_i32_2 = arith.constant 0 : i32
    return %arg0, %c0_i32, %arg1, %c0_i32_0, %c0_i32_1 : i32, i32, i32, i32, i32
  }
  func.func @transform_1(%arg0: i32, %arg1: i32) -> (i32, i32) {
    %c0_i32 = arith.constant 0 : i32
    %c0_i32_0 = arith.constant 0 : i32
    %c0_i32_1 = arith.constant 0 : i32
    return %c0_i32, %c0_i32_0 : i32, i32
  }
  func.func @transform_2(%arg0: i32, %arg1: i32) -> (i32, i32) {
    %c0_i32 = arith.constant 0 : i32
    %c0_i32_0 = arith.constant 0 : i32
    %c0_i32_1 = arith.constant 0 : i32
    return %c0_i32, %c0_i32_0 : i32, i32
  }
  func.func @transform_3(%arg0: i32, %arg1: i32) -> (i32, i32, i32) {
    %c0_i32 = arith.constant 0 : i32
    %c0_i32_0 = arith.constant 0 : i32
    %c0_i32_1 = arith.constant 0 : i32
    %c0_i32_2 = arith.constant 0 : i32
    return %c0_i32, %c0_i32_0, %c0_i32_1 : i32, i32, i32
  }
  func.func @transform_4(%arg0: i32, %arg1: i32) -> (i32, i32) {
    %c0_i32 = arith.constant 0 : i32
    %c0_i32_0 = arith.constant 0 : i32
    %c0_i32_1 = arith.constant 0 : i32
    return %c0_i32, %c0_i32_0 : i32, i32
  }
  func.func @transform_5(%arg0: i32, %arg1: i32) -> (i32, i32) {
    %c0_i32 = arith.constant 0 : i32
    %c0_i32_0 = arith.constant 0 : i32
    %c0_i32_1 = arith.constant 0 : i32
    return %c0_i32, %c0_i32_0 : i32, i32
  }
  func.func @transform_6(%arg0: i32, %arg1: i32) -> (i32, i32) {
    %c0_i32 = arith.constant 0 : i32
    %c0_i32_0 = arith.constant 0 : i32
    %c0_i32_1 = arith.constant 0 : i32
    return %c0_i32, %c0_i32_0 : i32, i32
  }
  func.func @transform_7(%arg0: i32, %arg1: i32) -> (i32, i32, i32, i32) {
    %c0_i32 = arith.constant 0 : i32
    %c0_i32_0 = arith.constant 0 : i32
    %c0_i32_1 = arith.constant 0 : i32
    return %arg0, %arg1, %c0_i32, %c0_i32_0 : i32, i32, i32, i32
  }
}

</mosaic_0001>

<llo_original>
// kernel: tpu_custom_call.1
$region0: #{tpu_custom_call.1}
  #allocation0 [shape = 'u32[]', space=smem, size = 0x4, offset = 0x4, fixed_abs, tag = 'smem constant byte address 0x4 - core index']
  #allocation1 [shape = 'u32[144,128]{1,0:T(1,128)}', space=vmem, size = 0x12000, scoped, tag = 'internal scratch']
  #allocation2 [shape = 'bf16[480,256]{1,0:T(16,128)(2,1)}', space=vmem, size = 0x3c000, scoped, tag = 'scratch operand']
  %s0 = inlined_call_operand.hbm [shape: bf16[2,16,1,16,60], index: 0, kind: input, shape index: {}]
  %s1 = inlined_call_operand.hbm [shape: bf16[60,128], index: 1, kind: input, shape index: {}]
  %s2 = inlined_call_operand.hbm [shape: f32[1,128], index: 2, kind: input, shape index: {}]
  %s3 = inlined_call_operand.hbm [shape: bf16[7,256,32], index: 3, kind: input, shape index: {}]
  %s4 = inlined_call_operand.hbm [shape: bf16[128,32], index: 4, kind: input, shape index: {}]
  %s5 = inlined_call_operand.hbm [shape: f32[1,16], index: 5, kind: input, shape index: {}]
  %s6 = inlined_call_operand.hbm [shape: f32[1,16], index: 6, kind: input, shape index: {}]
  %s7 = inlined_call_operand.hbm [shape: f32[2,1,256,16], index: 7, kind: output, shape index: {}]
  %s8 = sld [smem:[#allocation0]]
  $region89: #{tpu_custom_call.1} parent=0
    _
  %s10 = ssub.s32 1, %s8
  %s11 = scalar_select 0, %s10, %s8
  $region1: #{tpu_custom_call.1} parent=0
    #allocation3 [shape = 'u8[131072]{0}', space=vmem, size = 0x20000, scoped, tag = 'input window, operand 0']
    #allocation4 [shape = 's32[2]{0}', space=sflag, size = 0x8, scoped, tag = 'scoped memory for tpu_custom_call.1']
    #allocation5 [shape = 's32[2]{0}', space=sflag, size = 0x8, scoped, tag = 'scoped memory for tpu_custom_call.1']
    #allocation6 [shape = 'u8[16384]{0}', space=vmem, size = 0x4000, scoped, tag = 'input window, operand 1, single buffered']
    #allocation7 [shape = 's32[1]{0}', space=sflag, size = 0x4, scoped, tag = 'scoped memory for tpu_custom_call.1']
    #allocation8 [shape = 'u8[512]{0}', space=vmem, size = 0x400, scoped, tag = 'input window, operand 2, single buffered']
    #allocation9 [shape = 'u8[458752]{0}', space=vmem, size = 0x70000, scoped, tag = 'input window, operand 3, single buffered']
    #allocation10 [shape = 's32[1]{0}', space=sflag, size = 0x4, scoped, tag = 'scoped memory for tpu_custom_call.1']
    #allocation11 [shape = 'u8[32768]{0}', space=vmem, size = 0x8000, scoped, tag = 'input window, operand 4, single buffered']
    #allocation12 [shape = 'u8[512]{0}', space=vmem, size = 0x400, scoped, tag = 'input window, operand 5, single buffered']
    #allocation13 [shape = 's32[1]{0}', space=sflag, size = 0x4, scoped, tag = 'scoped memory for tpu_custom_call.1']
    #allocation14 [shape = 'u8[512]{0}', space=vmem, size = 0x400, scoped, tag = 'input window, operand 6, single buffered']
    #allocation15 [shape = 'u8[262144]{0}', space=vmem, size = 0x40000, scoped, tag = 'output window, operand 0']
    %12 = vsyncpa [#allocation4], 0
    %s13 = scalar_lea.sflag [#allocation4], 1
    %14 = vsyncpa %s13, 0
    %15 = vsyncpa [#allocation7], 0
    %16 = vsyncpa [#allocation10], 0
    %17 = vsyncpa [#allocation13], 0
    %18 = vsyncpa [#allocation5], 0
    %s19 = scalar_lea.sflag [#allocation5], 1
    %20 = vsyncpa %s19, 0
    loop: start=0, step=1, limit=4
    $region2: #{tpu_custom_call.1} parent=1 // loop_pre_header
      _
    $region3: #{tpu_custom_call.1} parent=1 // loop_header
      %s22 = sphi 0, %s26
      %p23 = scmp.ge.s32.totalorder %s22, 4
      %s29 = sphi 0, %s41
      %s30 = sphi 0, %s37
      %s31 = sphi 0, %s29
      %s32 = sphi 0, %s30
      %s33 = sphi 0, %s31
      %s34 = sphi 0, %s32
      %s46 = sphi 0, %s48
      %s49 = sphi 0, %s46
      %s50 = sphi 0, %s49
      %s66 = sphi 0, %s50
      %s70 = sphi 0, %s70
      %s72 = sphi 0, %s70
      %s73 = sphi 0, %s72
      %s87 = sphi 0, %s73
      %s91 = sphi 0, %s91
      %s93 = sphi 0, %s91
      %s94 = sphi 0, %s93
      %s108 = sphi 0, %s94
      %s112 = sphi 0, %s112
      %s114 = sphi 0, %s112
      %s115 = sphi 0, %s114
      %s129 = sphi 0, %s115
      %s133 = sphi 0, %s133
      %s135 = sphi 0, %s133
      %s136 = sphi 0, %s135
      %s150 = sphi 0, %s136
      %s154 = sphi 0, %s154
      %s156 = sphi 0, %s154
      %s157 = sphi 0, %s156
      %s171 = sphi 0, %s157
      %s175 = sphi 0, %s175
      %s177 = sphi 0, %s175
      %s178 = sphi 0, %s177
      %s192 = sphi 0, %s178
      %s200 = sphi 0, %s202
      %s203 = sphi 0, %s200
      %s204 = sphi 0, %s203
      %s220 = sphi 0, %s204
    $region4: #{tpu_custom_call.1} parent=1 // loop_header_branch
      %25 = sbr.rel (%p23) target = $region8
    $region5: #{tpu_custom_call.1} parent=1 // loop_body
      %s27 = ssub.s32 %s22, 1
      %s28 = ssub.s32 %s22, 2
      %s35 = sadd.s32 1, %s30
      %p36 = scmp.ge.s32.totalorder %s35, 1
      %s37 = scalar_select %p36, 0, %s35
      %s38 = sadd.s32 1, %s29
      %s39 = scalar_select %p36, %s38, %s29
      %p40 = scmp.ge.s32.totalorder %s39, 2
      %s41 = scalar_select %p40, 0, %s39
      %s42 = ssub.s32 %s29, %s41
      %s43 = ssub.s32 %s30, %s37
      %s44 = sor.u32 %s42, %s43
      %p45 = scmp.eq.s32.totalorder %s44, 0
      %s47 = sadd.s32 %s46, 1
      %s48 = scalar_select %p45, %s46, %s47
      %p51 = pneg %p45
      %p52 = scmp.eq.s32.totalorder %s22, 1
      %p53 = por %p51, %p52
      %p54 = scmp.ne.s32.totalorder %s46, %s49
      %p55 = scmp.eq.s32.totalorder %s22, 0
      %p56 = por %p54, %p55
      %p57 = scmp.ne.s32.totalorder %s46, %s49
      %p58 = scmp.eq.s32.totalorder %s27, 1
      %p59 = por %p57, %p58
      %p60 = scmp.ne.s32.totalorder %s49, %s50
      %p61 = scmp.eq.s32.totalorder %s27, 0
      %p62 = por %p60, %p61
      %p63 = scmp.ne.s32.totalorder %s49, %s50
      %p64 = scmp.eq.s32.totalorder %s28, 1
      %p65 = por %p63, %p64
      %p67 = scmp.ne.s32.totalorder %s50, %s66
      %p68 = scmp.eq.s32.totalorder %s28, 0
      %p69 = por %p67, %p68
      %s71 = sadd.s32 %s70, 1
      %p74 = scmp.eq.s32.totalorder %s22, 1
      %p75 = scmp.ne.s32.totalorder %s70, %s72
      %p76 = scmp.eq.s32.totalorder %s22, 0
      %p77 = por %p75, %p76
      %p78 = scmp.ne.s32.totalorder %s70, %s72
      %p79 = scmp.eq.s32.totalorder %s27, 1
      %p80 = por %p78, %p79
      %p81 = scmp.ne.s32.totalorder %s72, %s73
      %p82 = scmp.eq.s32.totalorder %s27, 0
      %p83 = por %p81, %p82
      %p84 = scmp.ne.s32.totalorder %s72, %s73
      %p85 = scmp.eq.s32.totalorder %s28, 1
      %p86 = por %p84, %p85
      %p88 = scmp.ne.s32.totalorder %s73, %s87
      %p89 = scmp.eq.s32.totalorder %s28, 0
      %p90 = por %p88, %p89
      %s92 = sadd.s32 %s91, 1
      %p95 = scmp.eq.s32.totalorder %s22, 1
      %p96 = scmp.ne.s32.totalorder %s91, %s93
      %p97 = scmp.eq.s32.totalorder %s22, 0
      %p98 = por %p96, %p97
      %p99 = scmp.ne.s32.totalorder %s91, %s93
      %p100 = scmp.eq.s32.totalorder %s27, 1
      %p101 = por %p99, %p100
      %p102 = scmp.ne.s32.totalorder %s93, %s94
      %p103 = scmp.eq.s32.totalorder %s27, 0
      %p104 = por %p102, %p103
      %p105 = scmp.ne.s32.totalorder %s93, %s94
      %p106 = scmp.eq.s32.totalorder %s28, 1
      %p107 = por %p105, %p106
      %p109 = scmp.ne.s32.totalorder %s94, %s108
      %p110 = scmp.eq.s32.totalorder %s28, 0
      %p111 = por %p109, %p110
      %s113 = sadd.s32 %s112, 1
      %p116 = scmp.eq.s32.totalorder %s22, 1
      %p117 = scmp.ne.s32.totalorder %s112, %s114
      %p118 = scmp.eq.s32.totalorder %s22, 0
      %p119 = por %p117, %p118
      %p120 = scmp.ne.s32.totalorder %s112, %s114
      %p121 = scmp.eq.s32.totalorder %s27, 1
      %p122 = por %p120, %p121
      %p123 = scmp.ne.s32.totalorder %s114, %s115
      %p124 = scmp.eq.s32.totalorder %s27, 0
      %p125 = por %p123, %p124
      %p126 = scmp.ne.s32.totalorder %s114, %s115
      %p127 = scmp.eq.s32.totalorder %s28, 1
      %p128 = por %p126, %p127
      %p130 = scmp.ne.s32.totalorder %s115, %s129
      %p131 = scmp.eq.s32.totalorder %s28, 0
      %p132 = por %p130, %p131
      %s134 = sadd.s32 %s133, 1
      %p137 = scmp.eq.s32.totalorder %s22, 1
      %p138 = scmp.ne.s32.totalorder %s133, %s135
      %p139 = scmp.eq.s32.totalorder %s22, 0
      %p140 = por %p138, %p139
      %p141 = scmp.ne.s32.totalorder %s133, %s135
      %p142 = scmp.eq.s32.totalorder %s27, 1
      %p143 = por %p141, %p142
      %p144 = scmp.ne.s32.totalorder %s135, %s136
      %p145 = scmp.eq.s32.totalorder %s27, 0
      %p146 = por %p144, %p145
      %p147 = scmp.ne.s32.totalorder %s135, %s136
      %p148 = scmp.eq.s32.totalorder %s28, 1
      %p149 = por %p147, %p148
      %p151 = scmp.ne.s32.totalorder %s136, %s150
      %p152 = scmp.eq.s32.totalorder %s28, 0
      %p153 = por %p151, %p152
      %s155 = sadd.s32 %s154, 1
      %p158 = scmp.eq.s32.totalorder %s22, 1
      %p159 = scmp.ne.s32.totalorder %s154, %s156
      %p160 = scmp.eq.s32.totalorder %s22, 0
      %p161 = por %p159, %p160
      %p162 = scmp.ne.s32.totalorder %s154, %s156
      %p163 = scmp.eq.s32.totalorder %s27, 1
      %p164 = por %p162, %p163
      %p165 = scmp.ne.s32.totalorder %s156, %s157
      %p166 = scmp.eq.s32.totalorder %s27, 0
      %p167 = por %p165, %p166
      %p168 = scmp.ne.s32.totalorder %s156, %s157
      %p169 = scmp.eq.s32.totalorder %s28, 1
      %p170 = por %p168, %p169
      %p172 = scmp.ne.s32.totalorder %s157, %s171
      %p173 = scmp.eq.s32.totalorder %s28, 0
      %p174 = por %p172, %p173
      %s176 = sadd.s32 %s175, 1
      %p179 = scmp.eq.s32.totalorder %s22, 1
      %p180 = scmp.ne.s32.totalorder %s175, %s177
      %p181 = scmp.eq.s32.totalorder %s22, 0
      %p182 = por %p180, %p181
      %p183 = scmp.ne.s32.totalorder %s175, %s177
      %p184 = scmp.eq.s32.totalorder %s27, 1
      %p185 = por %p183, %p184
      %p186 = scmp.ne.s32.totalorder %s177, %s178
      %p187 = scmp.eq.s32.totalorder %s27, 0
      %p188 = por %p186, %p187
      %p189 = scmp.ne.s32.totalorder %s177, %s178
      %p190 = scmp.eq.s32.totalorder %s28, 1
      %p191 = por %p189, %p190
      %p193 = scmp.ne.s32.totalorder %s178, %s192
      %p194 = scmp.eq.s32.totalorder %s28, 0
      %p195 = por %p193, %p194
      %s196 = ssub.s32 %s29, %s41
      %s197 = ssub.s32 %s30, %s37
      %s198 = sor.u32 %s196, %s197
      %p199 = scmp.eq.s32.totalorder %s198, 0
      %s201 = sadd.s32 %s200, 1
      %s202 = scalar_select %p199, %s200, %s201
      %p205 = pneg %p199
      %p206 = scmp.eq.s32.totalorder %s22, 1
      %p207 = por %p205, %p206
      %p208 = scmp.ne.s32.totalorder %s200, %s203
      %p209 = scmp.eq.s32.totalorder %s22, 0
      %p210 = por %p208, %p209
      %p211 = scmp.ne.s32.totalorder %s200, %s203
      %p212 = scmp.eq.s32.totalorder %s27, 1
      %p213 = por %p211, %p212
      %p214 = scmp.ne.s32.totalorder %s203, %s204
      %p215 = scmp.eq.s32.totalorder %s27, 0
      %p216 = por %p214, %p215
      %p217 = scmp.ne.s32.totalorder %s203, %s204
      %p218 = scmp.eq.s32.totalorder %s28, 1
      %p219 = por %p217, %p218
      %p221 = scmp.ne.s32.totalorder %s204, %s220
      %p222 = scmp.eq.s32.totalorder %s28, 0
      %p223 = por %p221, %p222
      %p224 = scmp.le.s32.totalorder 1, %s22
      %p225 = scmp.lt.s32.totalorder %s22, 3
      %p226 = pnand %p224, %p225
      %p227 = pneg %p226
      // Predicated region
      $region9: #{tpu_custom_call.1} parent=5 // pred_check
        _
      $region10: #{tpu_custom_call.1} parent=5 // pred_check_branch
        %229 = sbr.rel (%p226) target = $region12
      $region11: #{tpu_custom_call.1} parent=5 // pred_region
        %s230 = ssub.s32 %s22, 1
        // Predicated region
        $region13: #{tpu_custom_call.1} parent=11 // pred_check
          %p231 = pneg %p83
        $region14: #{tpu_custom_call.1} parent=11 // pred_check_branch
          %233 = sbr.rel (%p231) target = $region16
        $region15: #{tpu_custom_call.1} parent=11 // pred_region
          %s235 = ssub.s32 512, 512
          %236 = vsyncadd [#allocation7], %s235
          %s237 = sshll.u32 [#allocation6], 4
          %s238 = int_to_ptr.vmem [resolvable:$true] %s237
          %243 = dma.hbm_to_vmem [thread:$0]  %s1, 512, %s238, [#allocation7], 64, 64, 4
        $region16: #{tpu_custom_call.1} parent=11 // pred_fallthru
          _
        // Predicated region
        $region17: #{tpu_custom_call.1} parent=11 // pred_check
          %p244 = pneg %p104
        $region18: #{tpu_custom_call.1} parent=11 // pred_check_branch
          %246 = sbr.rel (%p244) target = $region20
        $region19: #{tpu_custom_call.1} parent=11 // pred_region
          %s248 = ssub.s32 16, 16
          %249 = vsyncadd [#allocation7], %s248
          %s251 = sshll.u32 [#allocation8], 4
          %s252 = int_to_ptr.vmem [resolvable:$true] %s251
          %254 = dma.hbm_to_vmem [thread:$0]  %s2, 16, %s252, [#allocation7]
        $region20: #{tpu_custom_call.1} parent=11 // pred_fallthru
          _
        // Predicated region
        $region21: #{tpu_custom_call.1} parent=11 // pred_check
          %p255 = pneg %p125
        $region22: #{tpu_custom_call.1} parent=11 // pred_check_branch
          %257 = sbr.rel (%p255) target = $region24
        $region23: #{tpu_custom_call.1} parent=11 // pred_region
          %s259 = ssub.s32 14336, 14336
          %260 = vsyncadd [#allocation10], %s259
          %s261 = sshll.u32 [#allocation9], 4
          %s262 = int_to_ptr.vmem [resolvable:$true] %s261
          %267 = dma.hbm_to_vmem [thread:$0]  %s3, 14336, %s262, [#allocation10], 64, 64, 4
        $region24: #{tpu_custom_call.1} parent=11 // pred_fallthru
          _
        // Predicated region
        $region25: #{tpu_custom_call.1} parent=11 // pred_check
          %p268 = pneg %p146
        $region26: #{tpu_custom_call.1} parent=11 // pred_check_branch
          %270 = sbr.rel (%p268) target = $region28
        $region27: #{tpu_custom_call.1} parent=11 // pred_region
          %s272 = ssub.s32 1024, 1024
          %273 = vsyncadd [#allocation10], %s272
          %s274 = sshll.u32 [#allocation11], 4
          %s275 = int_to_ptr.vmem [resolvable:$true] %s274
          %280 = dma.hbm_to_vmem [thread:$0]  %s4, 1024, %s275, [#allocation10], 64, 64, 4
        $region28: #{tpu_custom_call.1} parent=11 // pred_fallthru
          _
        // Predicated region
        $region29: #{tpu_custom_call.1} parent=11 // pred_check
          %p281 = pneg %p167
        $region30: #{tpu_custom_call.1} parent=11 // pred_check_branch
          %283 = sbr.rel (%p281) target = $region32
        $region31: #{tpu_custom_call.1} parent=11 // pred_region
          %s285 = ssub.s32 16, 16
          %286 = vsyncadd [#allocation13], %s285
          %s288 = sshll.u32 [#allocation12], 4
          %s289 = int_to_ptr.vmem [resolvable:$true] %s288
          %291 = dma.hbm_to_vmem [thread:$0]  %s5, 16, %s289, [#allocation13]
        $region32: #{tpu_custom_call.1} parent=11 // pred_fallthru
          _
        // Predicated region
        $region33: #{tpu_custom_call.1} parent=11 // pred_check
          %p292 = pneg %p188
        $region34: #{tpu_custom_call.1} parent=11 // pred_check_branch
          %294 = sbr.rel (%p292) target = $region36
        $region35: #{tpu_custom_call.1} parent=11 // pred_region
          %s296 = ssub.s32 16, 16
          %297 = vsyncadd [#allocation13], %s296
          %s299 = sshll.u32 [#allocation14], 4
          %s300 = int_to_ptr.vmem [resolvable:$true] %s299
          %302 = dma.hbm_to_vmem [thread:$0]  %s6, 16, %s300, [#allocation13]
        $region36: #{tpu_custom_call.1} parent=11 // pred_fallthru
          _
      $region12: #{tpu_custom_call.1} parent=5 // pred_fallthru
        _
      %p303 = scmp.lt.s32.totalorder %s22, 2
      // Predicated region
      $region37: #{tpu_custom_call.1} parent=5 // pred_check
        %p304 = pneg %p303
      $region38: #{tpu_custom_call.1} parent=5 // pred_check_branch
        %306 = sbr.rel (%p304) target = $region40
      $region39: #{tpu_custom_call.1} parent=5 // pred_region
        // Predicated region
        $region41: #{tpu_custom_call.1} parent=39 // pred_check
          %p307 = pneg %p56
        $region42: #{tpu_custom_call.1} parent=39 // pred_check_branch
          %309 = sbr.rel (%p307) target = $region44
        $region43: #{tpu_custom_call.1} parent=39 // pred_region
          %s310 = sand.u32 %s46, 1
          %s311 = scalar_lea.sflag [#allocation4], %s310
          %s312 = sand.u32 %s46, 1
          %s313 = smul.addr %s312, 128
          %s314 = scalar_lea.vmem [#allocation3], %s313
          %s316 = ssub.s32 2048, 2048
          %317 = vsyncadd %s311, %s316
          %s318 = smul.addr %s30, 2
          %s319 = smul.addr %s29, 32
          %s320 = sadd.s32 %s318, %s319
          %s321 = smul.addr %s320, 64
          %s322 = scalar_lea.hbm %s0, %s321
          %s323 = sshll.u32 %s314, 4
          %s324 = int_to_ptr.vmem [resolvable:$true] %s323
          %329 = dma.hbm_to_vmem [thread:$0]  %s322, 2048, %s324, %s311, 64, 64, 4
        $region44: #{tpu_custom_call.1} parent=39 // pred_fallthru
          _
      $region40: #{tpu_custom_call.1} parent=5 // pred_fallthru
        _
      %p330 = scmp.le.s32.totalorder 1, %s22
      %p331 = scmp.lt.s32.totalorder %s22, 3
      %p332 = pnand %p330, %p331
      %p333 = pneg %p332
      // Predicated region
      $region45: #{tpu_custom_call.1} parent=5 // pred_check
        _
      $region46: #{tpu_custom_call.1} parent=5 // pred_check_branch
        %335 = sbr.rel (%p332) target = $region48
      $region47: #{tpu_custom_call.1} parent=5 // pred_region
        %s336 = ssub.s32 %s22, 1
        %s337 = sand.u32 %s49, 1
        %s338 = scalar_lea.sflag [#allocation4], %s337
        %s339 = sand.u32 %s49, 1
        %s340 = smul.addr %s339, 128
        %s341 = scalar_lea.vmem [#allocation3], %s340
        // Predicated region
        $region49: #{tpu_custom_call.1} parent=47 // pred_check
          %p342 = pneg %p62
        $region50: #{tpu_custom_call.1} parent=47 // pred_check_branch
          %344 = sbr.rel (%p342) target = $region52
        $region51: #{tpu_custom_call.1} parent=47 // pred_region
          %345 = dma.done %s338, 2048
        $region52: #{tpu_custom_call.1} parent=47 // pred_fallthru
          _
        // Predicated region
        $region53: #{tpu_custom_call.1} parent=47 // pred_check
          %p346 = pneg %p83
        $region54: #{tpu_custom_call.1} parent=47 // pred_check_branch
          %348 = sbr.rel (%p346) target = $region56
        $region55: #{tpu_custom_call.1} parent=47 // pred_region
          %349 = dma.done [#allocation7], 512
        $region56: #{tpu_custom_call.1} parent=47 // pred_fallthru
          _
        // Predicated region
        $region57: #{tpu_custom_call.1} parent=47 // pred_check
          %p350 = pneg %p104
        $region58: #{tpu_custom_call.1} parent=47 // pred_check_branch
          %352 = sbr.rel (%p350) target = $region60
        $region59: #{tpu_custom_call.1} parent=47 // pred_region
          %353 = dma.done [#allocation7], 16
        $region60: #{tpu_custom_call.1} parent=47 // pred_fallthru
          _
        // Predicated region
        $region61: #{tpu_custom_call.1} parent=47 // pred_check
          %p354 = pneg %p125
        $region62: #{tpu_custom_call.1} parent=47 // pred_check_branch
          %356 = sbr.rel (%p354) target = $region64
        $region63: #{tpu_custom_call.1} parent=47 // pred_region
          %357 = dma.done [#allocation10], 14336
        $region64: #{tpu_custom_call.1} parent=47 // pred_fallthru
          _
        // Predicated region
        $region65: #{tpu_custom_call.1} parent=47 // pred_check
          %p358 = pneg %p146
        $region66: #{tpu_custom_call.1} parent=47 // pred_check_branch
          %360 = sbr.rel (%p358) target = $region68
        $region67: #{tpu_custom_call.1} parent=47 // pred_region
          %361 = dma.done [#allocation10], 1024
        $region68: #{tpu_custom_call.1} parent=47 // pred_fallthru
          _
        // Predicated region
        $region69: #{tpu_custom_call.1} parent=47 // pred_check
          %p362 = pneg %p167
        $region70: #{tpu_custom_call.1} parent=47 // pred_check_branch
          %364 = sbr.rel (%p362) target = $region72
        $region71: #{tpu_custom_call.1} parent=47 // pred_region
          %365 = dma.done [#allocation13], 16
        $region72: #{tpu_custom_call.1} parent=47 // pred_fallthru
          _
        // Predicated region
        $region73: #{tpu_custom_call.1} parent=47 // pred_check
          %p366 = pneg %p188
        $region74: #{tpu_custom_call.1} parent=47 // pred_check_branch
          %368 = sbr.rel (%p366) target = $region76
        $region75: #{tpu_custom_call.1} parent=47 // pred_region
          %369 = dma.done [#allocation13], 16
        $region76: #{tpu_custom_call.1} parent=47 // pred_fallthru
          _
        %s370 = sand.u32 %s49, 1
        %s371 = scalar_lea.sflag [#allocation4], %s370
        %s372 = sand.u32 %s49, 1
        %s373 = smul.addr %s372, 128
        %s374 = scalar_lea.vmem [#allocation3], %s373
        %p375 = pneg %p62
        %p376 = pneg %p59
        %p377 = pneg %p83
        %p378 = pneg %p80
        %p379 = pneg %p104
        %p380 = pneg %p101
        %p381 = pneg %p125
        %p382 = pneg %p122
        %p383 = pneg %p146
        %p384 = pneg %p143
        %p385 = pneg %p167
        %p386 = pneg %p164
        %p387 = pneg %p188
        %p388 = pneg %p185
        %p389 = pneg %p216
        %p390 = pneg %p213
        %s391 = sand.u32 %s203, 1
        %s392 = scalar_lea.sflag [#allocation5], %s391
        %s393 = sand.u32 %s203, 1
        %s394 = smul.addr %s393, 256
        %s395 = scalar_lea.vmem [#allocation15], %s394
        %v397 = vld [vmem:[%s341] sm:$0xf]
        %v398 = vld [vmem:[%s341 + $0x4] sm:$0xf]
        %v399 = vld [vmem:[%s341 + $0x8] sm:$0xf]
        %v400 = vld [vmem:[%s341 + $0xc] sm:$0xf]
        %v401 = vld [vmem:[%s341 + $0x10] sm:$0xf]
        %v402 = vld [vmem:[%s341 + $0x14] sm:$0xf]
        %v403 = vld [vmem:[%s341 + $0x18] sm:$0xf]
        %v404 = vld [vmem:[%s341 + $0x1c] sm:$0xf]
        %v405 = vld [vmem:[%s341 + $0x20] sm:$0xf]
        %v406 = vld [vmem:[%s341 + $0x24] sm:$0xf]
        %v407 = vld [vmem:[%s341 + $0x28] sm:$0xf]
        %v408 = vld [vmem:[%s341 + $0x2c] sm:$0xf]
        %v409 = vld [vmem:[%s341 + $0x30] sm:$0xf]
        %v410 = vld [vmem:[%s341 + $0x34] sm:$0xf]
        %v411 = vld [vmem:[%s341 + $0x38] sm:$0xf]
        %v412 = vld [vmem:[%s341 + $0x3c] sm:$0xf]
        %v413 = vld [vmem:[%s341 + $0x40] sm:$0xf]
        %v414 = vld [vmem:[%s341 + $0x44] sm:$0xf]
        %v415 = vld [vmem:[%s341 + $0x48] sm:$0xf]
        %v416 = vld [vmem:[%s341 + $0x4c] sm:$0xf]
        %v417 = vld [vmem:[%s341 + $0x50] sm:$0xf]
        %v418 = vld [vmem:[%s341 + $0x54] sm:$0xf]
        %v419 = vld [vmem:[%s341 + $0x58] sm:$0xf]
        %v420 = vld [vmem:[%s341 + $0x5c] sm:$0xf]
        %v421 = vld [vmem:[%s341 + $0x60] sm:$0xf]
        %v422 = vld [vmem:[%s341 + $0x64] sm:$0xf]
        %v423 = vld [vmem:[%s341 + $0x68] sm:$0xf]
        %v424 = vld [vmem:[%s341 + $0x6c] sm:$0xf]
        %v425 = vld [vmem:[%s341 + $0x70] sm:$0xf]
        %v426 = vld [vmem:[%s341 + $0x74] sm:$0xf]
        %v427 = vld [vmem:[%s341 + $0x78] sm:$0xf]
        %v428 = vld [vmem:[%s341 + $0x7c] sm:$0xf]
        %v429 = vld [vmem:[#allocation6] sm:$0xf]
        %v430 = vld [vmem:[#allocation6 + $0x4] sm:$0xf]
        %v431 = vld [vmem:[#allocation6 + $0x8] sm:$0xf]
        %v432 = vld [vmem:[#allocation6 + $0xc] sm:$0xf]
        %v433 = vld [vmem:[#allocation6 + $0x10] sm:$0xf]
        %v434 = vld [vmem:[#allocation6 + $0x14] sm:$0xf]
        %v435 = vld [vmem:[#allocation6 + $0x18] sm:$0xf]
        %v436 = vld [vmem:[#allocation6 + $0x1c] sm:$0x3]
        %v437 = vld [vmem:[#allocation8] sm:$0x1]
        %v439 = vlaneseq
        %v440 = vshrl.u32 %v439, 7
        %v441 = vsub.s32 0, %v440
        %v442 = vrot.slane %v437, %v441
        %v476 = vunpack.c.l.b16 %v397
        %v477 = vunpack.c.l.b16 %v398
        %v478 = vunpack.c.l.b16 %v399
        %v479 = vunpack.c.l.b16 %v400
        %v480 = vunpack.c.l.b16 %v401
        %v481 = vunpack.c.l.b16 %v402
        %v482 = vunpack.c.l.b16 %v403
        %v483 = vunpack.c.l.b16 %v404
        %v484 = vunpack.c.l.b16 %v405
        %v485 = vunpack.c.l.b16 %v406
        %v486 = vunpack.c.l.b16 %v407
        %v487 = vunpack.c.l.b16 %v408
        %v488 = vunpack.c.l.b16 %v409
        %v489 = vunpack.c.l.b16 %v410
        %v490 = vunpack.c.l.b16 %v411
        %v491 = vunpack.c.l.b16 %v412
        %v492 = vunpack.c.l.b16 %v413
        %v493 = vunpack.c.l.b16 %v414
        %v494 = vunpack.c.l.b16 %v415
        %v495 = vunpack.c.l.b16 %v416
        %v496 = vunpack.c.l.b16 %v417
        %v497 = vunpack.c.l.b16 %v418
        %v498 = vunpack.c.l.b16 %v419
        %v499 = vunpack.c.l.b16 %v420
        %v500 = vunpack.c.l.b16 %v421
        %v501 = vunpack.c.l.b16 %v422
        %v502 = vunpack.c.l.b16 %v423
        %v503 = vunpack.c.l.b16 %v424
        %v504 = vunpack.c.l.b16 %v425
        %v505 = vunpack.c.l.b16 %v426
        %v506 = vunpack.c.l.b16 %v427
        %v507 = vunpack.c.l.b16 %v428
        %v508 = vpack.c.b16 %v477, %v476
        %v509 = vpack.c.b16 %v479, %v478
        %v510 = vpack.c.b16 %v481, %v480
        %v511 = vpack.c.b16 %v483, %v482
        %v512 = vpack.c.b16 %v485, %v484
        %v513 = vpack.c.b16 %v487, %v486
        %v514 = vpack.c.b16 %v489, %v488
        %v515 = vpack.c.b16 %v491, %v490
        %v516 = vpack.c.b16 %v493, %v492
        %v517 = vpack.c.b16 %v495, %v494
        %v518 = vpack.c.b16 %v497, %v496
        %v519 = vpack.c.b16 %v499, %v498
        %v520 = vpack.c.b16 %v501, %v500
        %v521 = vpack.c.b16 %v503, %v502
        %v522 = vpack.c.b16 %v505, %v504
        %v523 = vpack.c.b16 %v507, %v506
        %v532 = vunpack.c.l.b16 %v429
        %v533 = vunpack.c.l.b16 %v430
        %v534 = vunpack.c.l.b16 %v431
        %v535 = vunpack.c.l.b16 %v432
        %v536 = vunpack.c.l.b16 %v433
        %v537 = vunpack.c.l.b16 %v434
        %v538 = vunpack.c.l.b16 %v435
        %v539 = vunpack.c.l.b16 %v436
        %v540 = vpack.c.b16 %v533, %v532
        %v541 = vpack.c.b16 %v535, %v534
        %v542 = vpack.c.b16 %v537, %v536
        %v543 = vpack.c.b16 %v539, %v538
        %vm547 = vcmask 490496
        %v549 = vsel %vm547, %v508, 0
        %v552 = vsel %vm547, %v509, 0
        %v555 = vsel %vm547, %v510, 0
        %v558 = vsel %vm547, %v511, 0
        %v561 = vsel %vm547, %v512, 0
        %v564 = vsel %vm547, %v513, 0
        %v567 = vsel %vm547, %v514, 0
        %v570 = vsel %vm547, %v515, 0
        %v573 = vsel %vm547, %v516, 0
        %v576 = vsel %vm547, %v517, 0
        %v579 = vsel %vm547, %v518, 0
        %v582 = vsel %vm547, %v519, 0
        %v585 = vsel %vm547, %v520, 0
        %v588 = vsel %vm547, %v521, 0
        %v591 = vsel %vm547, %v522, 0
        %v594 = vsel %vm547, %v523, 0
        %vm596 = vcmask 1045504
        %v598 = vsel %vm596, %v543, 0
        %600 = vmatprep.subr.bf16.mxu0 0
        %601 = vmatpush1.bf16.msra.mxu0 %v540
        %602 = vmatprep.subr.bf16.mxu0 0
        %603 = vmatpush1.bf16.msra.mxu0 %v541
        %604 = vmatprep.subr.bf16.mxu0 0
        %605 = vmatpush1.bf16.msra.mxu0 %v542
        %606 = vmatprep.subr.bf16.mxu0 0
        %607 = vmatpush1.bf16.msra.mxu0 %v598
        %608 = vmatprep.subr.bf16.mxu0 0
        %609 = vmatpush1.bf16.msra.mxu0 0
        %610 = vmatprep.subr.bf16.mxu0 0
        %611 = vmatpush1.bf16.msra.mxu0 0
        %612 = vmatprep.subr.bf16.mxu0 0
        %613 = vmatpush1.bf16.msra.mxu0 0
        %614 = vmatprep.subr.bf16.mxu0 0
        %615 = vmatpush1.bf16.msra.mxu0 0
        %616 = vmatprep.subr.bf16.mxu0 0
        %617 = vmatpush1.bf16.msra.mxu0 0
        %618 = vmatprep.subr.bf16.mxu0 0
        %619 = vmatpush1.bf16.msra.mxu0 0
        %620 = vmatprep.subr.bf16.mxu0 0
        %621 = vmatpush1.bf16.msra.mxu0 0
        %622 = vmatprep.subr.bf16.mxu0 0
        %623 = vmatpush1.bf16.msra.mxu0 0
        %624 = vmatprep.subr.bf16.mxu0 0
        %625 = vmatpush1.bf16.msra.mxu0 0
        %626 = vmatprep.subr.bf16.mxu0 0
        %627 = vmatpush1.bf16.msra.mxu0 0
        %628 = vmatprep.subr.bf16.mxu0 0
        %629 = vmatpush1.bf16.msra.mxu0 0
        %630 = vmatprep.subr.bf16.mxu0 0
        %631 = vmatpush1.bf16.msra.mxu0 0
        %632 = vmatprep.mubr.bf16.mxu0 0
        %633 = vmatmul.mubr.bf16.gmra.mrb[0].mxu0 %v549
        %v634 = vpop.f32.mrb[0].mxu0
        %v635 = vadd.f32 %v442, %v634
        %v636 = vpop.f32.mrb[0].mxu0
        %v637 = vpop.f32.mrb[0].mxu0
        %v638 = vadd.f32 %v442, %v637
        %v639 = vpop.f32.mrb[0].mxu0
        %640 = vmatprep.mubr.bf16.mxu0 0
        %641 = vmatmul.mubr.bf16.gmra.mrb[0].mxu0 %v552
        %v642 = vpop.f32.mrb[0].mxu0
        %v643 = vadd.f32 %v442, %v642
        %v644 = vpop.f32.mrb[0].mxu0
        %v645 = vpop.f32.mrb[0].mxu0
        %v646 = vadd.f32 %v442, %v645
        %v647 = vpop.f32.mrb[0].mxu0
        %648 = vmatprep.mubr.bf16.mxu0 0
        %649 = vmatmul.mubr.bf16.gmra.mrb[0].mxu0 %v555
        %v650 = vpop.f32.mrb[0].mxu0
        %v651 = vadd.f32 %v442, %v650
        %v652 = vpop.f32.mrb[0].mxu0
        %v653 = vpop.f32.mrb[0].mxu0
        %v654 = vadd.f32 %v442, %v653
        %v655 = vpop.f32.mrb[0].mxu0
        %656 = vmatprep.mubr.bf16.mxu0 0
        %657 = vmatmul.mubr.bf16.gmra.mrb[0].mxu0 %v558
        %v658 = vpop.f32.mrb[0].mxu0
        %v659 = vadd.f32 %v442, %v658
        %v660 = vpop.f32.mrb[0].mxu0
        %v661 = vpop.f32.mrb[0].mxu0
        %v662 = vadd.f32 %v442, %v661
        %v663 = vpop.f32.mrb[0].mxu0
        %664 = vmatprep.mubr.bf16.mxu0 0
        %665 = vmatmul.mubr.bf16.gmra.mrb[0].mxu0 %v561
        %v666 = vpop.f32.mrb[0].mxu0
        %v667 = vadd.f32 %v442, %v666
        %v668 = vpop.f32.mrb[0].mxu0
        %v669 = vpop.f32.mrb[0].mxu0
        %v670 = vadd.f32 %v442, %v669
        %v671 = vpop.f32.mrb[0].mxu0
        %672 = vmatprep.mubr.bf16.mxu0 0
        %673 = vmatmul.mubr.bf16.gmra.mrb[0].mxu0 %v564
        %v674 = vpop.f32.mrb[0].mxu0
        %v675 = vadd.f32 %v442, %v674
        %v676 = vpop.f32.mrb[0].mxu0
        %v677 = vpop.f32.mrb[0].mxu0
        %v678 = vadd.f32 %v442, %v677
        %v679 = vpop.f32.mrb[0].mxu0
        %680 = vmatprep.mubr.bf16.mxu0 0
        %681 = vmatmul.mubr.bf16.gmra.mrb[0].mxu0 %v567
        %v682 = vpop.f32.mrb[0].mxu0
        %v683 = vadd.f32 %v442, %v682
        %v684 = vpop.f32.mrb[0].mxu0
        %v685 = vpop.f32.mrb[0].mxu0
        %v686 = vadd.f32 %v442, %v685
        %v687 = vpop.f32.mrb[0].mxu0
        %688 = vmatprep.mubr.bf16.mxu0 0
        %689 = vmatmul.mubr.bf16.gmra.mrb[0].mxu0 %v570
        %v690 = vpop.f32.mrb[0].mxu0
        %v691 = vadd.f32 %v442, %v690
        %v692 = vpop.f32.mrb[0].mxu0
        %v693 = vpop.f32.mrb[0].mxu0
        %v694 = vadd.f32 %v442, %v693
        %v695 = vpop.f32.mrb[0].mxu0
        %696 = vmatprep.mubr.bf16.mxu0 0
        %697 = vmatmul.mubr.bf16.gmra.mrb[0].mxu0 %v573
        %v698 = vpop.f32.mrb[0].mxu0
        %v699 = vadd.f32 %v442, %v698
        %v700 = vpop.f32.mrb[0].mxu0
        %v701 = vpop.f32.mrb[0].mxu0
        %v702 = vadd.f32 %v442, %v701
        %v703 = vpop.f32.mrb[0].mxu0
        %704 = vmatprep.mubr.bf16.mxu0 0
        %705 = vmatmul.mubr.bf16.gmra.mrb[0].mxu0 %v576
        %v706 = vpop.f32.mrb[0].mxu0
        %v707 = vadd.f32 %v442, %v706
        %v708 = vpop.f32.mrb[0].mxu0
        %v709 = vpop.f32.mrb[0].mxu0
        %v710 = vadd.f32 %v442, %v709
        %v711 = vpop.f32.mrb[0].mxu0
        %712 = vmatprep.mubr.bf16.mxu0 0
        %713 = vmatmul.mubr.bf16.gmra.mrb[0].mxu0 %v579
        %v714 = vpop.f32.mrb[0].mxu0
        %v715 = vadd.f32 %v442, %v714
        %v716 = vpop.f32.mrb[0].mxu0
        %v717 = vpop.f32.mrb[0].mxu0
        %v718 = vadd.f32 %v442, %v717
        %v719 = vpop.f32.mrb[0].mxu0
        %720 = vmatprep.mubr.bf16.mxu0 0
        %721 = vmatmul.mubr.bf16.gmra.mrb[0].mxu0 %v582
        %v722 = vpop.f32.mrb[0].mxu0
        %v723 = vadd.f32 %v442, %v722
        %v724 = vpop.f32.mrb[0].mxu0
        %v725 = vpop.f32.mrb[0].mxu0
        %v726 = vadd.f32 %v442, %v725
        %v727 = vpop.f32.mrb[0].mxu0
        %728 = vmatprep.mubr.bf16.mxu0 0
        %729 = vmatmul.mubr.bf16.gmra.mrb[0].mxu0 %v585
        %v730 = vpop.f32.mrb[0].mxu0
        %v731 = vadd.f32 %v442, %v730
        %v732 = vpop.f32.mrb[0].mxu0
        %v733 = vpop.f32.mrb[0].mxu0
        %v734 = vadd.f32 %v442, %v733
        %v735 = vpop.f32.mrb[0].mxu0
        %736 = vmatprep.mubr.bf16.mxu0 0
        %737 = vmatmul.mubr.bf16.gmra.mrb[0].mxu0 %v588
        %v738 = vpop.f32.mrb[0].mxu0
        %v739 = vadd.f32 %v442, %v738
        %v740 = vpop.f32.mrb[0].mxu0
        %v741 = vpop.f32.mrb[0].mxu0
        %v742 = vadd.f32 %v442, %v741
        %v743 = vpop.f32.mrb[0].mxu0
        %744 = vmatprep.mubr.bf16.mxu0 0
        %745 = vmatmul.mubr.bf16.gmra.mrb[0].mxu0 %v591
        %v746 = vpop.f32.mrb[0].mxu0
        %v747 = vadd.f32 %v442, %v746
        %v748 = vpop.f32.mrb[0].mxu0
        %v749 = vpop.f32.mrb[0].mxu0
        %v750 = vadd.f32 %v442, %v749
        %v751 = vpop.f32.mrb[0].mxu0
        %752 = vmatprep.mubr.bf16.mxu0 0
        %753 = vmatmul.mubr.bf16.gmra.mrb[0].mxu0 %v594
        %v754 = vpop.f32.mrb[0].mxu0
        %v755 = vadd.f32 %v442, %v754
        %v756 = vpop.f32.mrb[0].mxu0
        %v757 = vpop.f32.mrb[0].mxu0
        %v758 = vadd.f32 %v442, %v757
        %v759 = vpop.f32.mrb[0].mxu0
        %760 = vdwg.mxu0
        %v761 = vmax.f32 %v635, 0.0
        %v762 = vmax.f32 %v638, 0.0
        %v763 = vmax.f32 %v643, 0.0
        %v764 = vmax.f32 %v646, 0.0
        %v765 = vmax.f32 %v651, 0.0
        %v766 = vmax.f32 %v654, 0.0
        %v767 = vmax.f32 %v659, 0.0
        %v768 = vmax.f32 %v662, 0.0
        %v769 = vmax.f32 %v667, 0.0
        %v770 = vmax.f32 %v670, 0.0
        %v771 = vmax.f32 %v675, 0.0
        %v772 = vmax.f32 %v678, 0.0
        %v773 = vmax.f32 %v683, 0.0
        %v774 = vmax.f32 %v686, 0.0
        %v775 = vmax.f32 %v691, 0.0
        %v776 = vmax.f32 %v694, 0.0
        %v777 = vmax.f32 %v699, 0.0
        %v778 = vmax.f32 %v702, 0.0
        %v779 = vmax.f32 %v707, 0.0
        %v780 = vmax.f32 %v710, 0.0
        %v781 = vmax.f32 %v715, 0.0
        %v782 = vmax.f32 %v718, 0.0
        %v783 = vmax.f32 %v723, 0.0
        %v784 = vmax.f32 %v726, 0.0
        %v785 = vmax.f32 %v731, 0.0
        %v786 = vmax.f32 %v734, 0.0
        %v787 = vmax.f32 %v739, 0.0
        %v788 = vmax.f32 %v742, 0.0
        %v789 = vmax.f32 %v747, 0.0
        %v790 = vmax.f32 %v750, 0.0
        %v791 = vmax.f32 %v755, 0.0
        %v792 = vmax.f32 %v758, 0.0
        %v793 = vpack.c.bf16 %v762, %v761
        %v794 = vpack.c.bf16 %v764, %v763
        %v795 = vpack.c.bf16 %v766, %v765
        %v796 = vpack.c.bf16 %v768, %v767
        %v797 = vpack.c.bf16 %v770, %v769
        %v798 = vpack.c.bf16 %v772, %v771
        %v799 = vpack.c.bf16 %v774, %v773
        %v800 = vpack.c.bf16 %v776, %v775
        %v801 = vpack.c.bf16 %v778, %v777
        %v802 = vpack.c.bf16 %v780, %v779
        %v803 = vpack.c.bf16 %v782, %v781
        %v804 = vpack.c.bf16 %v784, %v783
        %v805 = vpack.c.bf16 %v786, %v785
        %v806 = vpack.c.bf16 %v788, %v787
        %v807 = vpack.c.bf16 %v790, %v789
        %v808 = vpack.c.bf16 %v792, %v791
        %809 = vst [vmem:[#allocation2] sm:$0xff] 0
        %810 = vst [vmem:[#allocation2 + $0x8] sm:$0xff] 0
        %811 = vst [vmem:[#allocation2 + $0x10] sm:$0xff] 0
        %812 = vst [vmem:[#allocation2 + $0x18] sm:$0xff] 0
        %813 = vst [vmem:[#allocation2 + $0x20] sm:$0xff] 0
        %814 = vst [vmem:[#allocation2 + $0x28] sm:$0xff] 0
        %815 = vst [vmem:[#allocation2 + $0x30] sm:$0xff] 0
        %816 = vst [vmem:[#allocation2 + $0x38] sm:$0xff] 0
        %817 = vst [vmem:[#allocation2 + $0x40] sm:$0xff] 0
        %818 = vst [vmem:[#allocation2 + $0x48] sm:$0xff] 0
        %819 = vst [vmem:[#allocation2 + $0x50] sm:$0xff] 0
        %820 = vst [vmem:[#allocation2 + $0x58] sm:$0xff] 0
        %821 = vst [vmem:[#allocation2 + $0x60] sm:$0xff] 0
        %822 = vst [vmem:[#allocation2 + $0x68] sm:$0xff] 0
        %823 = vst [vmem:[#allocation2 + $0x160] sm:$0xff] 0
        %824 = vst [vmem:[#allocation2 + $0x168] sm:$0xff] 0
        %825 = vst [vmem:[#allocation2 + $0x170] sm:$0xff] 0
        %826 = vst [vmem:[#allocation2 + $0x178] sm:$0xff] 0
        %827 = vst [vmem:[#allocation2 + $0x180] sm:$0xff] 0
        %828 = vst [vmem:[#allocation2 + $0x188] sm:$0xff] 0
        %829 = vst [vmem:[#allocation2 + $0x190] sm:$0xff] 0
        %830 = vst [vmem:[#allocation2 + $0x198] sm:$0xff] 0
        %831 = vst [vmem:[#allocation2 + $0x1a0] sm:$0xff] 0
        %832 = vst [vmem:[#allocation2 + $0x1a8] sm:$0xff] 0
        %833 = vst [vmem:[#allocation2 + $0x1b0] sm:$0xff] 0
        %834 = vst [vmem:[#allocation2 + $0x1b8] sm:$0xff] 0
        %835 = vst [vmem:[#allocation2 + $0x1c0] sm:$0xff] 0
        %836 = vst [vmem:[#allocation2 + $0x1c8] sm:$0xff] 0
        %837 = vst [vmem:[#allocation2 + $0x1d0] sm:$0xff] 0
        %838 = vst [vmem:[#allocation2 + $0x1d8] sm:$0xff] 0
        %839 = vst [vmem:[#allocation2 + $0x70] sm:$0xff] %v793
        %840 = vst [vmem:[#allocation2 + $0x80] sm:$0xff] %v794
        %841 = vst [vmem:[#allocation2 + $0x90] sm:$0xff] %v795
        %842 = vst [vmem:[#allocation2 + $0xa0] sm:$0xff] %v796
        %843 = vst [vmem:[#allocation2 + $0xb0] sm:$0xff] %v797
        %844 = vst [vmem:[#allocation2 + $0xc0] sm:$0xff] %v798
        %845 = vst [vmem:[#allocation2 + $0xd0] sm:$0xff] %v799
        %846 = vst [vmem:[#allocation2 + $0xe0] sm:$0xff] %v800
        %847 = vst [vmem:[#allocation2 + $0xf0] sm:$0xff] %v801
        %848 = vst [vmem:[#allocation2 + $0x100] sm:$0xff] %v802
        %849 = vst [vmem:[#allocation2 + $0x110] sm:$0xff] %v803
        %850 = vst [vmem:[#allocation2 + $0x120] sm:$0xff] %v804
        %851 = vst [vmem:[#allocation2 + $0x130] sm:$0xff] %v805
        %852 = vst [vmem:[#allocation2 + $0x140] sm:$0xff] %v806
        %853 = vst [vmem:[#allocation2 + $0x150] sm:$0xff] %v807
        %854 = vst [vmem:[#allocation2 + $0x160] sm:$0xff] %v808
        %855 = vst [vmem:[#allocation2 + $0x68] sm:$0xff] %v793
        %856 = vst [vmem:[#allocation2 + $0x78] sm:$0xff] %v794
        %857 = vst [vmem:[#allocation2 + $0x88] sm:$0xff] %v795
        %858 = vst [vmem:[#allocation2 + $0x98] sm:$0xff] %v796
        %859 = vst [vmem:[#allocation2 + $0xa8] sm:$0xff] %v797
        %860 = vst [vmem:[#allocation2 + $0xb8] sm:$0xff] %v798
        %861 = vst [vmem:[#allocation2 + $0xc8] sm:$0xff] %v799
        %862 = vst [vmem:[#allocation2 + $0xd8] sm:$0xff] %v800
        %863 = vst [vmem:[#allocation2 + $0xe8] sm:$0xff] %v801
        %864 = vst [vmem:[#allocation2 + $0xf8] sm:$0xff] %v802
        %865 = vst [vmem:[#allocation2 + $0x108] sm:$0xff] %v803
        %866 = vst [vmem:[#allocation2 + $0x118] sm:$0xff] %v804
        %867 = vst [vmem:[#allocation2 + $0x128] sm:$0xff] %v805
        %868 = vst [vmem:[#allocation2 + $0x138] sm:$0xff] %v806
        %869 = vst [vmem:[#allocation2 + $0x148] sm:$0xff] %v807
        %870 = vst [vmem:[#allocation2 + $0x158] sm:$0xff] %v808
        %v871 = vld [vmem:[#allocation2] sm:$0xff]
        %v872 = vld [vmem:[#allocation2 + $0x8] sm:$0xff]
        %v873 = vld [vmem:[#allocation2 + $0x10] sm:$0xff]
        %v874 = vld [vmem:[#allocation2 + $0x18] sm:$0xff]
        %v875 = vld [vmem:[#allocation2 + $0x20] sm:$0xff]
        %v876 = vld [vmem:[#allocation2 + $0x28] sm:$0xff]
        %v877 = vld [vmem:[#allocation2 + $0x30] sm:$0xff]
        %v878 = vld [vmem:[#allocation2 + $0x38] sm:$0xff]
        %v879 = vld [vmem:[#allocation2 + $0x40] sm:$0xff]
        %v880 = vld [vmem:[#allocation2 + $0x48] sm:$0xff]
        %v881 = vld [vmem:[#allocation2 + $0x50] sm:$0xff]
        %v882 = vld [vmem:[#allocation2 + $0x58] sm:$0xff]
        %v883 = vld [vmem:[#allocation2 + $0x60] sm:$0xff]
        %v884 = vld [vmem:[#allocation2 + $0x68] sm:$0xff]
        %v885 = vld [vmem:[#allocation2 + $0x70] sm:$0xff]
        %v886 = vld [vmem:[#allocation2 + $0x78] sm:$0xff]
        %v887 = vld [vmem:[#allocation2 + $0x80] sm:$0xff]
        %v888 = vld [vmem:[#allocation2 + $0x88] sm:$0xff]
        %v889 = vld [vmem:[#allocation2 + $0x90] sm:$0xff]
        %v890 = vld [vmem:[#allocation2 + $0x98] sm:$0xff]
        %v891 = vld [vmem:[#allocation2 + $0xa0] sm:$0xff]
        %v892 = vld [vmem:[#allocation2 + $0xa8] sm:$0xff]
        %v893 = vld [vmem:[#allocation2 + $0xb0] sm:$0xff]
        %v894 = vld [vmem:[#allocation2 + $0xb8] sm:$0xff]
        %v895 = vld [vmem:[#allocation2 + $0xc0] sm:$0xff]
        %v896 = vld [vmem:[#allocation2 + $0xc8] sm:$0xff]
        %v897 = vld [vmem:[#allocation2 + $0xd0] sm:$0xff]
        %v898 = vld [vmem:[#allocation2 + $0xd8] sm:$0xff]
        %v899 = vld [vmem:[#allocation2 + $0xe0] sm:$0xff]
        %v900 = vld [vmem:[#allocation2 + $0xe8] sm:$0xff]
        %v901 = vld [vmem:[#allocation2 + $0xf0] sm:$0xff]
        %v902 = vld [vmem:[#allocation2 + $0xf8] sm:$0xff]
        %v903 = vld [vmem:[#allocation9] sm:$0xf]
        %v904 = vld [vmem:[#allocation9 + $0x4] sm:$0xf]
        %v905 = vld [vmem:[#allocation9 + $0x8] sm:$0xf]
        %v906 = vld [vmem:[#allocation9 + $0xc] sm:$0xf]
        %v907 = vld [vmem:[#allocation9 + $0x10] sm:$0xf]
        %v908 = vld [vmem:[#allocation9 + $0x14] sm:$0xf]
        %v909 = vld [vmem:[#allocation9 + $0x18] sm:$0xf]
        %v910 = vld [vmem:[#allocation9 + $0x1c] sm:$0xf]
        %v911 = vld [vmem:[#allocation9 + $0x20] sm:$0xf]
        %v912 = vld [vmem:[#allocation9 + $0x24] sm:$0xf]
        %v913 = vld [vmem:[#allocation9 + $0x28] sm:$0xf]
        %v914 = vld [vmem:[#allocation9 + $0x2c] sm:$0xf]
        %v915 = vld [vmem:[#allocation9 + $0x30] sm:$0xf]
        %v916 = vld [vmem:[#allocation9 + $0x34] sm:$0xf]
        %v917 = vld [vmem:[#allocation9 + $0x38] sm:$0xf]
        %v918 = vld [vmem:[#allocation9 + $0x3c] sm:$0xf]
        %v919 = vld [vmem:[#allocation9 + $0x40] sm:$0xf]
        %v920 = vld [vmem:[#allocation9 + $0x44] sm:$0xf]
        %v921 = vld [vmem:[#allocation9 + $0x48] sm:$0xf]
        %v922 = vld [vmem:[#allocation9 + $0x4c] sm:$0xf]
        %v923 = vld [vmem:[#allocation9 + $0x50] sm:$0xf]
        %v924 = vld [vmem:[#allocation9 + $0x54] sm:$0xf]
        %v925 = vld [vmem:[#allocation9 + $0x58] sm:$0xf]
        %v926 = vld [vmem:[#allocation9 + $0x5c] sm:$0xf]
        %v927 = vld [vmem:[#allocation9 + $0x60] sm:$0xf]
        %v928 = vld [vmem:[#allocation9 + $0x64] sm:$0xf]
        %v929 = vld [vmem:[#allocation9 + $0x68] sm:$0xf]
        %v930 = vld [vmem:[#allocation9 + $0x6c] sm:$0xf]
        %v931 = vld [vmem:[#allocation9 + $0x70] sm:$0xf]
        %v932 = vld [vmem:[#allocation9 + $0x74] sm:$0xf]
        %v933 = vld [vmem:[#allocation9 + $0x78] sm:$0xf]
        %v934 = vld [vmem:[#allocation9 + $0x7c] sm:$0xf]
        %v935 = vld [vmem:[#allocation2 + $0x100] sm:$0xff]
        %v936 = vld [vmem:[#allocation2 + $0x108] sm:$0xff]
        %v937 = vld [vmem:[#allocation2 + $0x110] sm:$0xff]
        %v938 = vld [vmem:[#allocation2 + $0x118] sm:$0xff]
        %s939 = scalar_lea.vmem [#allocation9], 128
        %v940 = vld [vmem:[%s939] sm:$0xf]
        %v941 = vld [vmem:[%s939 + $0x4] sm:$0xf]
        %v942 = vld [vmem:[%s939 + $0x8] sm:$0xf]
        %v943 = vld [vmem:[%s939 + $0xc] sm:$0xf]
        %v944 = vld [vmem:[%s939 + $0x10] sm:$0xf]
        %v945 = vld [vmem:[%s939 + $0x14] sm:$0xf]
        %v946 = vld [vmem:[%s939 + $0x18] sm:$0xf]
        %v947 = vld [vmem:[%s939 + $0x1c] sm:$0xf]
        %v948 = vld [vmem:[%s939 + $0x20] sm:$0xf]
        %v949 = vld [vmem:[%s939 + $0x24] sm:$0xf]
        %v950 = vld [vmem:[%s939 + $0x28] sm:$0xf]
        %v951 = vld [vmem:[%s939 + $0x2c] sm:$0xf]
        %v952 = vld [vmem:[%s939 + $0x30] sm:$0xf]
        %v953 = vld [vmem:[%s939 + $0x34] sm:$0xf]
        %v954 = vld [vmem:[%s939 + $0x38] sm:$0xf]
        %v955 = vld [vmem:[%s939 + $0x3c] sm:$0xf]
        %v956 = vld [vmem:[%s939 + $0x40] sm:$0xf]
        %v957 = vld [vmem:[%s939 + $0x44] sm:$0xf]
        %v958 = vld [vmem:[%s939 + $0x48] sm:$0xf]
        %v959 = vld [vmem:[%s939 + $0x4c] sm:$0xf]
        %v960 = vld [vmem:[%s939 + $0x50] sm:$0xf]
        %v961 = vld [vmem:[%s939 + $0x54] sm:$0xf]
        %v962 = vld [vmem:[%s939 + $0x58] sm:$0xf]
        %v963 = vld [vmem:[%s939 + $0x5c] sm:$0xf]
        %v964 = vld [vmem:[%s939 + $0x60] sm:$0xf]
        %v965 = vld [vmem:[%s939 + $0x64] sm:$0xf]
        %v966 = vld [vmem:[%s939 + $0x68] sm:$0xf]
        %v967 = vld [vmem:[%s939 + $0x6c] sm:$0xf]
        %v968 = vld [vmem:[%s939 + $0x70] sm:$0xf]
        %v969 = vld [vmem:[%s939 + $0x74] sm:$0xf]
        %v970 = vld [vmem:[%s939 + $0x78] sm:$0xf]
        %v971 = vld [vmem:[%s939 + $0x7c] sm:$0xf]
        %v1004 = vunpack.c.l.b16 %v940
        %v1005 = vunpack.c.l.b16 %v941
        %v1006 = vunpack.c.l.b16 %v942
        %v1007 = vunpack.c.l.b16 %v943
        %v1008 = vunpack.c.l.b16 %v944
        %v1009 = vunpack.c.l.b16 %v945
        %v1010 = vunpack.c.l.b16 %v946
        %v1011 = vunpack.c.l.b16 %v947
        %v1012 = vunpack.c.l.b16 %v948
        %v1013 = vunpack.c.l.b16 %v949
        %v1014 = vunpack.c.l.b16 %v950
        %v1015 = vunpack.c.l.b16 %v951
        %v1016 = vunpack.c.l.b16 %v952
        %v1017 = vunpack.c.l.b16 %v953
        %v1018 = vunpack.c.l.b16 %v954
        %v1019 = vunpack.c.l.b16 %v955
        %v1020 = vunpack.c.l.b16 %v956
        %v1021 = vunpack.c.l.b16 %v957
        %v1022 = vunpack.c.l.b16 %v958
        %v1023 = vunpack.c.l.b16 %v959
        %v1024 = vunpack.c.l.b16 %v960
        %v1025 = vunpack.c.l.b16 %v961
        %v1026 = vunpack.c.l.b16 %v962
        %v1027 = vunpack.c.l.b16 %v963
        %v1028 = vunpack.c.l.b16 %v964
        %v1029 = vunpack.c.l.b16 %v965
        %v1030 = vunpack.c.l.b16 %v966
        %v1031 = vunpack.c.l.b16 %v967
        %v1032 = vunpack.c.l.b16 %v968
        %v1033 = vunpack.c.l.b16 %v969
        %v1034 = vunpack.c.l.b16 %v970
        %v1035 = vunpack.c.l.b16 %v971
        %v1036 = vpack.c.b16 %v1005, %v1004
        %v1037 = vpack.c.b16 %v1007, %v1006
        %v1038 = vpack.c.b16 %v1009, %v1008
        %v1039 = vpack.c.b16 %v1011, %v1010
        %v1040 = vpack.c.b16 %v1013, %v1012
        %v1041 = vpack.c.b16 %v1015, %v1014
        %v1042 = vpack.c.b16 %v1017, %v1016
        %v1043 = vpack.c.b16 %v1019, %v1018
        %v1044 = vpack.c.b16 %v1021, %v1020
        %v1045 = vpack.c.b16 %v1023, %v1022
        %v1046 = vpack.c.b16 %v1025, %v1024
        %v1047 = vpack.c.b16 %v1027, %v1026
        %v1048 = vpack.c.b16 %v1029, %v1028
        %v1049 = vpack.c.b16 %v1031, %v1030
        %v1050 = vpack.c.b16 %v1033, %v1032
        %v1051 = vpack.c.b16 %v1035, %v1034
        %1068 = vmatprep.subr.bf16.mxu0 0
        %1069 = vmatpush1.bf16.msra.mxu0 %v1036
        %1070 = vmatprep.subr.bf16.mxu0 0
        %1071 = vmatpush1.bf16.msra.mxu0 %v1037
        %1072 = vmatprep.subr.bf16.mxu0 0
        %1073 = vmatpush1.bf16.msra.mxu0 %v1038
        %1074 = vmatprep.subr.bf16.mxu0 0
        %1075 = vmatpush1.bf16.msra.mxu0 %v1039
        %1076 = vmatprep.subr.bf16.mxu0 0
        %1077 = vmatpush1.bf16.msra.mxu0 %v1040
        %1078 = vmatprep.subr.bf16.mxu0 0
        %1079 = vmatpush1.bf16.msra.mxu0 %v1041
        %1080 = vmatprep.subr.bf16.mxu0 0
        %1081 = vmatpush1.bf16.msra.mxu0 %v1042
        %1082 = vmatprep.subr.bf16.mxu0 0
        %1083 = vmatpush1.bf16.msra.mxu0 %v1043
        %1084 = vmatprep.subr.bf16.mxu0 0
        %1085 = vmatpush1.bf16.msra.mxu0 %v1044
        %1086 = vmatprep.subr.bf16.mxu0 0
        %1087 = vmatpush1.bf16.msra.mxu0 %v1045
        %1088 = vmatprep.subr.bf16.mxu0 0
        %1089 = vmatpush1.bf16.msra.mxu0 %v1046
        %1090 = vmatprep.subr.bf16.mxu0 0
        %1091 = vmatpush1.bf16.msra.mxu0 %v1047
        %1092 = vmatprep.subr.bf16.mxu0 0
        %1093 = vmatpush1.bf16.msra.mxu0 %v1048
        %1094 = vmatprep.subr.bf16.mxu0 0
        %1095 = vmatpush1.bf16.msra.mxu0 %v1049
        %1096 = vmatprep.subr.bf16.mxu0 0
        %1097 = vmatpush1.bf16.msra.mxu0 %v1050
        %1098 = vmatprep.subr.bf16.mxu0 0
        %1099 = vmatpush1.bf16.msra.mxu0 %v1051
        %1100 = vmatprep.mubr.bf16.mxu0 %v876
        %1101 = vmatmul.mubr.bf16.gmra.mrb[0].mxu0 %v875
        %v1102 = vpop.f32.mrb[0].mxu0
        %v1103 = vadd.f32 0.0, %v1102
        %v1104 = vpop.f32.mrb[0].mxu0
        %v1105 = vpop.f32.mrb[0].mxu0
        %v1106 = vadd.f32 0.0, %v1105
        %v1107 = vpop.f32.mrb[0].mxu0
        %1108 = vmatprep.mubr.bf16.mxu0 %v878
        %1109 = vmatmul.mubr.bf16.gmra.mrb[0].mxu0 %v877
        %v1110 = vpop.f32.mrb[0].mxu0
        %v1111 = vadd.f32 0.0, %v1110
        %v1112 = vpop.f32.mrb[0].mxu0
        %v1113 = vpop.f32.mrb[0].mxu0
        %v1114 = vadd.f32 0.0, %v1113
        %v1115 = vpop.f32.mrb[0].mxu0
        %1116 = vmatprep.mubr.bf16.mxu0 %v880
        %1117 = vmatmul.mubr.bf16.gmra.mrb[0].mxu0 %v879
        %v1118 = vpop.f32.mrb[0].mxu0
        %v1119 = vadd.f32 0.0, %v1118
        %v1120 = vpop.f32.mrb[0].mxu0
        %v1121 = vpop.f32.mrb[0].mxu0
        %v1122 = vadd.f32 0.0, %v1121
        %v1123 = vpop.f32.mrb[0].mxu0
        %1124 = vmatprep.mubr.bf16.mxu0 %v882
        %1125 = vmatmul.mubr.bf16.gmra.mrb[0].mxu0 %v881
        %v1126 = vpop.f32.mrb[0].mxu0
        %v1127 = vadd.f32 0.0, %v1126
        %v1128 = vpop.f32.mrb[0].mxu0
        %v1129 = vpop.f32.mrb[0].mxu0
        %v1130 = vadd.f32 0.0, %v1129
        %v1131 = vpop.f32.mrb[0].mxu0
        %1132 = vmatprep.mubr.bf16.mxu0 %v884
        %1133 = vmatmul.mubr.bf16.gmra.mrb[0].mxu0 %v883
        %v1134 = vpop.f32.mrb[0].mxu0
        %v1135 = vadd.f32 0.0, %v1134
        %v1136 = vpop.f32.mrb[0].mxu0
        %v1137 = vpop.f32.mrb[0].mxu0
        %v1138 = vadd.f32 0.0, %v1137
        %v1139 = vpop.f32.mrb[0].mxu0
        %1140 = vmatprep.mubr.bf16.mxu0 %v886
        %1141 = vmatmul.mubr.bf16.gmra.mrb[0].mxu0 %v885
        %v1142 = vpop.f32.mrb[0].mxu0
        %v1143 = vadd.f32 0.0, %v1142
        %v1144 = vpop.f32.mrb[0].mxu0
        %v1145 = vpop.f32.mrb[0].mxu0
        %v1146 = vadd.f32 0.0, %v1145
        %v1147 = vpop.f32.mrb[0].mxu0
        %1148 = vmatprep.mubr.bf16.mxu0 %v888
        %1149 = vmatmul.mubr.bf16.gmra.mrb[0].mxu0 %v887
        %v1150 = vpop.f32.mrb[0].mxu0
        %v1151 = vadd.f32 0.0, %v1150
        %v1152 = vpop.f32.mrb[0].mxu0
        %v1153 = vpop.f32.mrb[0].mxu0
        %v1154 = vadd.f32 0.0, %v1153
        %v1155 = vpop.f32.mrb[0].mxu0
        %1156 = vmatprep.mubr.bf16.mxu0 %v890
        %1157 = vmatmul.mubr.bf16.gmra.mrb[0].mxu0 %v889
        %v1158 = vpop.f32.mrb[0].mxu0
        %v1159 = vadd.f32 0.0, %v1158
        %v1160 = vpop.f32.mrb[0].mxu0
        %v1161 = vpop.f32.mrb[0].mxu0
        %v1162 = vadd.f32 0.0, %v1161
        %v1163 = vpop.f32.mrb[0].mxu0
        %1164 = vmatprep.mubr.bf16.mxu0 %v892
        %1165 = vmatmul.mubr.bf16.gmra.mrb[0].mxu0 %v891
        %v1166 = vpop.f32.mrb[0].mxu0
        %v1167 = vadd.f32 0.0, %v1166
        %v1168 = vpop.f32.mrb[0].mxu0
        %v1169 = vpop.f32.mrb[0].mxu0
        %v1170 = vadd.f32 0.0, %v1169
        %v1171 = vpop.f32.mrb[0].mxu0
        %1172 = vmatprep.mubr.bf16.mxu0 %v894
        %1173 = vmatmul.mubr.bf16.gmra.mrb[0].mxu0 %v893
        %v1174 = vpop.f32.mrb[0].mxu0
        %v1175 = vadd.f32 0.0, %v1174
        %v1176 = vpop.f32.mrb[0].mxu0
        %v1177 = vpop.f32.mrb[0].mxu0
        %v1178 = vadd.f32 0.0, %v1177
        %v1179 = vpop.f32.mrb[0].mxu0
        %1180 = vmatprep.mubr.bf16.mxu0 %v896
        %1181 = vmatmul.mubr.bf16.gmra.mrb[0].mxu0 %v895
        %v1182 = vpop.f32.mrb[0].mxu0
        %v1183 = vadd.f32 0.0, %v1182
        %v1184 = vpop.f32.mrb[0].mxu0
        %v1185 = vpop.f32.mrb[0].mxu0
        %v1186 = vadd.f32 0.0, %v1185
        %v1187 = vpop.f32.mrb[0].mxu0
        %1188 = vmatprep.mubr.bf16.mxu0 %v898
        %1189 = vmatmul.mubr.bf16.gmra.mrb[0].mxu0 %v897
        %v1190 = vpop.f32.mrb[0].mxu0
        %v1191 = vadd.f32 0.0, %v1190
        %v1192 = vpop.f32.mrb[0].mxu0
        %v1193 = vpop.f32.mrb[0].mxu0
        %v1194 = vadd.f32 0.0, %v1193
        %v1195 = vpop.f32.mrb[0].mxu0
        %1196 = vmatprep.mubr.bf16.mxu0 %v900
        %1197 = vmatmul.mubr.bf16.gmra.mrb[0].mxu0 %v899
        %v1198 = vpop.f32.mrb[0].mxu0
        %v1199 = vadd.f32 0.0, %v1198
        %v1200 = vpop.f32.mrb[0].mxu0
        %v1201 = vpop.f32.mrb[0].mxu0
        %v1202 = vadd.f32 0.0, %v1201
        %v1203 = vpop.f32.mrb[0].mxu0
        %1204 = vmatprep.mubr.bf16.mxu0 %v902
        %1205 = vmatmul.mubr.bf16.gmra.mrb[0].mxu0 %v901
        %v1206 = vpop.f32.mrb[0].mxu0
        %v1207 = vadd.f32 0.0, %v1206
        %v1208 = vpop.f32.mrb[0].mxu0
        %v1209 = vpop.f32.mrb[0].mxu0
        %v1210 = vadd.f32 0.0, %v1209
        %v1211 = vpop.f32.mrb[0].mxu0
        %1212 = vmatprep.mubr.bf16.mxu0 %v936
        %1213 = vmatmul.mubr.bf16.gmra.mrb[0].mxu0 %v935
        %v1214 = vpop.f32.mrb[0].mxu0
        %v1215 = vadd.f32 0.0, %v1214
        %v1216 = vpop.f32.mrb[0].mxu0
        %v1217 = vpop.f32.mrb[0].mxu0
        %v1218 = vadd.f32 0.0, %v1217
        %v1219 = vpop.f32.mrb[0].mxu0
        %1220 = vmatprep.mubr.bf16.mxu0 %v938
        %1221 = vmatmul.mubr.bf16.gmra.mrb[0].mxu0 %v937
        %v1222 = vpop.f32.mrb[0].mxu0
        %v1223 = vadd.f32 0.0, %v1222
        %v1224 = vpop.f32.mrb[0].mxu0
        %v1225 = vpop.f32.mrb[0].mxu0
        %v1226 = vadd.f32 0.0, %v1225
        %v1227 = vpop.f32.mrb[0].mxu0
        %1228 = vdwg.mxu0
        %v1261 = vunpack.c.l.b16 %v903
        %v1262 = vunpack.c.l.b16 %v904
        %v1263 = vunpack.c.l.b16 %v905
        %v1264 = vunpack.c.l.b16 %v906
        %v1265 = vunpack.c.l.b16 %v907
        %v1266 = vunpack.c.l.b16 %v908
        %v1267 = vunpack.c.l.b16 %v909
        %v1268 = vunpack.c.l.b16 %v910
        %v1269 = vunpack.c.l.b16 %v911
        %v1270 = vunpack.c.l.b16 %v912
        %v1271 = vunpack.c.l.b16 %v913
        %v1272 = vunpack.c.l.b16 %v914
        %v1273 = vunpack.c.l.b16 %v915
        %v1274 = vunpack.c.l.b16 %v916
        %v1275 = vunpack.c.l.b16 %v917
        %v1276 = vunpack.c.l.b16 %v918
        %v1277 = vunpack.c.l.b16 %v919
        %v1278 = vunpack.c.l.b16 %v920
        %v1279 = vunpack.c.l.b16 %v921
        %v1280 = vunpack.c.l.b16 %v922
        %v1281 = vunpack.c.l.b16 %v923
        %v1282 = vunpack.c.l.b16 %v924
        %v1283 = vunpack.c.l.b16 %v925
        %v1284 = vunpack.c.l.b16 %v926
        %v1285 = vunpack.c.l.b16 %v927
        %v1286 = vunpack.c.l.b16 %v928
        %v1287 = vunpack.c.l.b16 %v929
        %v1288 = vunpack.c.l.b16 %v930
        %v1289 = vunpack.c.l.b16 %v931
        %v1290 = vunpack.c.l.b16 %v932
        %v1291 = vunpack.c.l.b16 %v933
        %v1292 = vunpack.c.l.b16 %v934
        %v1293 = vpack.c.b16 %v1262, %v1261
        %v1294 = vpack.c.b16 %v1264, %v1263
        %v1295 = vpack.c.b16 %v1266, %v1265
        %v1296 = vpack.c.b16 %v1268, %v1267
        %v1297 = vpack.c.b16 %v1270, %v1269
        %v1298 = vpack.c.b16 %v1272, %v1271
        %v1299 = vpack.c.b16 %v1274, %v1273
        %v1300 = vpack.c.b16 %v1276, %v1275
        %v1301 = vpack.c.b16 %v1278, %v1277
        %v1302 = vpack.c.b16 %v1280, %v1279
        %v1303 = vpack.c.b16 %v1282, %v1281
        %v1304 = vpack.c.b16 %v1284, %v1283
        %v1305 = vpack.c.b16 %v1286, %v1285
        %v1306 = vpack.c.b16 %v1288, %v1287
        %v1307 = vpack.c.b16 %v1290, %v1289
        %v1308 = vpack.c.b16 %v1292, %v1291
        %1325 = vmatprep.subr.bf16.mxu0 0
        %1326 = vmatpush1.bf16.msra.mxu0 %v1293
        %1327 = vmatprep.subr.bf16.mxu0 0
        %1328 = vmatpush1.bf16.msra.mxu0 %v1294
        %1329 = vmatprep.subr.bf16.mxu0 0
        %1330 = vmatpush1.bf16.msra.mxu0 %v1295
        %1331 = vmatprep.subr.bf16.mxu0 0
        %1332 = vmatpush1.bf16.msra.mxu0 %v1296
        %1333 = vmatprep.subr.bf16.mxu0 0
        %1334 = vmatpush1.bf16.msra.mxu0 %v1297
        %1335 = vmatprep.subr.bf16.mxu0 0
        %1336 = vmatpush1.bf16.msra.mxu0 %v1298
        %1337 = vmatprep.subr.bf16.mxu0 0
        %1338 = vmatpush1.bf16.msra.mxu0 %v1299
        %1339 = vmatprep.subr.bf16.mxu0 0
        %1340 = vmatpush1.bf16.msra.mxu0 %v1300
        %1341 = vmatprep.subr.bf16.mxu0 0
        %1342 = vmatpush1.bf16.msra.mxu0 %v1301
        %1343 = vmatprep.subr.bf16.mxu0 0
        %1344 = vmatpush1.bf16.msra.mxu0 %v1302
        %1345 = vmatprep.subr.bf16.mxu0 0
        %1346 = vmatpush1.bf16.msra.mxu0 %v1303
        %1347 = vmatprep.subr.bf16.mxu0 0
        %1348 = vmatpush1.bf16.msra.mxu0 %v1304
        %1349 = vmatprep.subr.bf16.mxu0 0
        %1350 = vmatpush1.bf16.msra.mxu0 %v1305
        %1351 = vmatprep.subr.bf16.mxu0 0
        %1352 = vmatpush1.bf16.msra.mxu0 %v1306
        %1353 = vmatprep.subr.bf16.mxu0 0
        %1354 = vmatpush1.bf16.msra.mxu0 %v1307
        %1355 = vmatprep.subr.bf16.mxu0 0
        %1356 = vmatpush1.bf16.msra.mxu0 %v1308
        %1357 = vmatprep.mubr.bf16.mxu0 %v872
        %1358 = vmatmul.mubr.bf16.gmra.mrb[0].mxu0 %v871
        %v1359 = vpop.f32.mrb[0].mxu0
        %v1360 = vadd.f32 %v1103, %v1359
        %v1361 = vpop.f32.mrb[0].mxu0
        %v1362 = vpop.f32.mrb[0].mxu0
        %v1363 = vadd.f32 %v1106, %v1362
        %v1364 = vpop.f32.mrb[0].mxu0
        %1365 = vmatprep.mubr.bf16.mxu0 %v874
        %1366 = vmatmul.mubr.bf16.gmra.mrb[0].mxu0 %v873
        %v1367 = vpop.f32.mrb[0].mxu0
        %v1368 = vadd.f32 %v1111, %v1367
        %v1369 = vpop.f32.mrb[0].mxu0
        %v1370 = vpop.f32.mrb[0].mxu0
        %v1371 = vadd.f32 %v1114, %v1370
        %v1372 = vpop.f32.mrb[0].mxu0
        %1373 = vmatprep.mubr.bf16.mxu0 %v876
        %1374 = vmatmul.mubr.bf16.gmra.mrb[0].mxu0 %v875
        %v1375 = vpop.f32.mrb[0].mxu0
        %v1376 = vadd.f32 %v1119, %v1375
        %v1377 = vpop.f32.mrb[0].mxu0
        %v1378 = vpop.f32.mrb[0].mxu0
        %v1379 = vadd.f32 %v1122, %v1378
        %v1380 = vpop.f32.mrb[0].mxu0
        %1381 = vmatprep.mubr.bf16.mxu0 %v878
        %1382 = vmatmul.mubr.bf16.gmra.mrb[0].mxu0 %v877
        %v1383 = vpop.f32.mrb[0].mxu0
        %v1384 = vadd.f32 %v1127, %v1383
        %v1385 = vpop.f32.mrb[0].mxu0
        %v1386 = vpop.f32.mrb[0].mxu0
        %v1387 = vadd.f32 %v1130, %v1386
        %v1388 = vpop.f32.mrb[0].mxu0
        %1389 = vmatprep.mubr.bf16.mxu0 %v880
        %1390 = vmatmul.mubr.bf16.gmra.mrb[0].mxu0 %v879
        %v1391 = vpop.f32.mrb[0].mxu0
        %v1392 = vadd.f32 %v1135, %v1391
        %v1393 = vpop.f32.mrb[0].mxu0
        %v1394 = vpop.f32.mrb[0].mxu0
        %v1395 = vadd.f32 %v1138, %v1394
        %v1396 = vpop.f32.mrb[0].mxu0
        %1397 = vmatprep.mubr.bf16.mxu0 %v882
        %1398 = vmatmul.mubr.bf16.gmra.mrb[0].mxu0 %v881
        %v1399 = vpop.f32.mrb[0].mxu0
        %v1400 = vadd.f32 %v1143, %v1399
        %v1401 = vpop.f32.mrb[0].mxu0
        %v1402 = vpop.f32.mrb[0].mxu0
        %v1403 = vadd.f32 %v1146, %v1402
        %v1404 = vpop.f32.mrb[0].mxu0
        %1405 = vmatprep.mubr.bf16.mxu0 %v884
        %1406 = vmatmul.mubr.bf16.gmra.mrb[0].mxu0 %v883
        %v1407 = vpop.f32.mrb[0].mxu0
        %v1408 = vadd.f32 %v1151, %v1407
        %v1409 = vpop.f32.mrb[0].mxu0
        %v1410 = vpop.f32.mrb[0].mxu0
        %v1411 = vadd.f32 %v1154, %v1410
        %v1412 = vpop.f32.mrb[0].mxu0
        %1413 = vmatprep.mubr.bf16.mxu0 %v886
        %1414 = vmatmul.mubr.bf16.gmra.mrb[0].mxu0 %v885
        %v1415 = vpop.f32.mrb[0].mxu0
        %v1416 = vadd.f32 %v1159, %v1415
        %v1417 = vpop.f32.mrb[0].mxu0
        %v1418 = vpop.f32.mrb[0].mxu0
        %v1419 = vadd.f32 %v1162, %v1418
        %v1420 = vpop.f32.mrb[0].mxu0
        %1421 = vmatprep.mubr.bf16.mxu0 %v888
        %1422 = vmatmul.mubr.bf16.gmra.mrb[0].mxu0 %v887
        %v1423 = vpop.f32.mrb[0].mxu0
        %v1424 = vadd.f32 %v1167, %v1423
        %v1425 = vpop.f32.mrb[0].mxu0
        %v1426 = vpop.f32.mrb[0].mxu0
        %v1427 = vadd.f32 %v1170, %v1426
        %v1428 = vpop.f32.mrb[0].mxu0
        %1429 = vmatprep.mubr.bf16.mxu0 %v890
        %1430 = vmatmul.mubr.bf16.gmra.mrb[0].mxu0 %v889
        %v1431 = vpop.f32.mrb[0].mxu0
        %v1432 = vadd.f32 %v1175, %v1431
        %v1433 = vpop.f32.mrb[0].mxu0
        %v1434 = vpop.f32.mrb[0].mxu0
        %v1435 = vadd.f32 %v1178, %v1434
        %v1436 = vpop.f32.mrb[0].mxu0
        %1437 = vmatprep.mubr.bf16.mxu0 %v892
        %1438 = vmatmul.mubr.bf16.gmra.mrb[0].mxu0 %v891
        %v1439 = vpop.f32.mrb[0].mxu0
        %v1440 = vadd.f32 %v1183, %v1439
        %v1441 = vpop.f32.mrb[0].mxu0
        %v1442 = vpop.f32.mrb[0].mxu0
        %v1443 = vadd.f32 %v1186, %v1442
        %v1444 = vpop.f32.mrb[0].mxu0
        %1445 = vmatprep.mubr.bf16.mxu0 %v894
        %1446 = vmatmul.mubr.bf16.gmra.mrb[0].mxu0 %v893
        %v1447 = vpop.f32.mrb[0].mxu0
        %v1448 = vadd.f32 %v1191, %v1447
        %v1449 = vpop.f32.mrb[0].mxu0
        %v1450 = vpop.f32.mrb[0].mxu0
        %v1451 = vadd.f32 %v1194, %v1450
        %v1452 = vpop.f32.mrb[0].mxu0
        %1453 = vmatprep.mubr.bf16.mxu0 %v896
        %1454 = vmatmul.mubr.bf16.gmra.mrb[0].mxu0 %v895
        %v1455 = vpop.f32.mrb[0].mxu0
        %v1456 = vadd.f32 %v1199, %v1455
        %v1457 = vpop.f32.mrb[0].mxu0
        %v1458 = vpop.f32.mrb[0].mxu0
        %v1459 = vadd.f32 %v1202, %v1458
        %v1460 = vpop.f32.mrb[0].mxu0
        %1461 = vmatprep.mubr.bf16.mxu0 %v898
        %1462 = vmatmul.mubr.bf16.gmra.mrb[0].mxu0 %v897
        %v1463 = vpop.f32.mrb[0].mxu0
        %v1464 = vadd.f32 %v1207, %v1463
        %v1465 = vpop.f32.mrb[0].mxu0
        %v1466 = vpop.f32.mrb[0].mxu0
        %v1467 = vadd.f32 %v1210, %v1466
        %v1468 = vpop.f32.mrb[0].mxu0
        %1469 = vmatprep.mubr.bf16.mxu0 %v900
        %1470 = vmatmul.mubr.bf16.gmra.mrb[0].mxu0 %v899
        %v1471 = vpop.f32.mrb[0].mxu0
        %v1472 = vadd.f32 %v1215, %v1471
        %v1473 = vpop.f32.mrb[0].mxu0
        %v1474 = vpop.f32.mrb[0].mxu0
        %v1475 = vadd.f32 %v1218, %v1474
        %v1476 = vpop.f32.mrb[0].mxu0
        %1477 = vmatprep.mubr.bf16.mxu0 %v902
        %1478 = vmatmul.mubr.bf16.gmra.mrb[0].mxu0 %v901
        %v1479 = vpop.f32.mrb[0].mxu0
        %v1480 = vadd.f32 %v1223, %v1479
        %v1481 = vpop.f32.mrb[0].mxu0
        %v1482 = vpop.f32.mrb[0].mxu0
        %v1483 = vadd.f32 %v1226, %v1482
        %v1484 = vpop.f32.mrb[0].mxu0
        %1485 = vdwg.mxu0
        %v1486 = vld [vmem:[#allocation2 + $0x40] sm:$0xff]
        %v1487 = vld [vmem:[#allocation2 + $0x48] sm:$0xff]
        %v1488 = vld [vmem:[#allocation2 + $0x50] sm:$0xff]
        %v1489 = vld [vmem:[#allocation2 + $0x58] sm:$0xff]
        %v1490 = vld [vmem:[#allocation2 + $0x60] sm:$0xff]
        %v1491 = vld [vmem:[#allocation2 + $0x68] sm:$0xff]
        %v1492 = vld [vmem:[#allocation2 + $0x70] sm:$0xff]
        %v1493 = vld [vmem:[#allocation2 + $0x78] sm:$0xff]
        %v1494 = vld [vmem:[#allocation2 + $0x80] sm:$0xff]
        %v1495 = vld [vmem:[#allocation2 + $0x88] sm:$0xff]
        %v1496 = vld [vmem:[#allocation2 + $0x90] sm:$0xff]
        %v1497 = vld [vmem:[#allocation2 + $0x98] sm:$0xff]
        %v1498 = vld [vmem:[#allocation2 + $0xa0] sm:$0xff]
        %v1499 = vld [vmem:[#allocation2 + $0xa8] sm:$0xff]
        %v1500 = vld [vmem:[#allocation2 + $0xb0] sm:$0xff]
        %v1501 = vld [vmem:[#allocation2 + $0xb8] sm:$0xff]
        %v1502 = vld [vmem:[#allocation2 + $0xc0] sm:$0xff]
        %v1503 = vld [vmem:[#allocation2 + $0xc8] sm:$0xff]
        %v1504 = vld [vmem:[#allocation2 + $0xd0] sm:$0xff]
        %v1505 = vld [vmem:[#allocation2 + $0xd8] sm:$0xff]
        %v1506 = vld [vmem:[#allocation2 + $0xe0] sm:$0xff]
        %v1507 = vld [vmem:[#allocation2 + $0xe8] sm:$0xff]
        %v1508 = vld [vmem:[#allocation2 + $0xf0] sm:$0xff]
        %v1509 = vld [vmem:[#allocation2 + $0xf8] sm:$0xff]
        %v1510 = vld [vmem:[#allocation2 + $0x100] sm:$0xff]
        %v1511 = vld [vmem:[#allocation2 + $0x108] sm:$0xff]
        %v1512 = vld [vmem:[#allocation2 + $0x110] sm:$0xff]
        %v1513 = vld [vmem:[#allocation2 + $0x118] sm:$0xff]
        %v1514 = vld [vmem:[#allocation2 + $0x120] sm:$0xff]
        %v1515 = vld [vmem:[#allocation2 + $0x128] sm:$0xff]
        %v1516 = vld [vmem:[#allocation2 + $0x130] sm:$0xff]
        %v1517 = vld [vmem:[#allocation2 + $0x138] sm:$0xff]
        %s1518 = scalar_lea.vmem [#allocation9], 256
        %v1519 = vld [vmem:[%s1518] sm:$0xf]
        %v1520 = vld [vmem:[%s1518 + $0x4] sm:$0xf]
        %v1521 = vld [vmem:[%s1518 + $0x8] sm:$0xf]
        %v1522 = vld [vmem:[%s1518 + $0xc] sm:$0xf]
        %v1523 = vld [vmem:[%s1518 + $0x10] sm:$0xf]
        %v1524 = vld [vmem:[%s1518 + $0x14] sm:$0xf]
        %v1525 = vld [vmem:[%s1518 + $0x18] sm:$0xf]
        %v1526 = vld [vmem:[%s1518 + $0x1c] sm:$0xf]
        %v1527 = vld [vmem:[%s1518 + $0x20] sm:$0xf]
        %v1528 = vld [vmem:[%s1518 + $0x24] sm:$0xf]
        %v1529 = vld [vmem:[%s1518 + $0x28] sm:$0xf]
        %v1530 = vld [vmem:[%s1518 + $0x2c] sm:$0xf]
        %v1531 = vld [vmem:[%s1518 + $0x30] sm:$0xf]
        %v1532 = vld [vmem:[%s1518 + $0x34] sm:$0xf]
        %v1533 = vld [vmem:[%s1518 + $0x38] sm:$0xf]
        %v1534 = vld [vmem:[%s1518 + $0x3c] sm:$0xf]
        %v1535 = vld [vmem:[%s1518 + $0x40] sm:$0xf]
        %v1536 = vld [vmem:[%s1518 + $0x44] sm:$0xf]
        %v1537 = vld [vmem:[%s1518 + $0x48] sm:$0xf]
        %v1538 = vld [vmem:[%s1518 + $0x4c] sm:$0xf]
        %v1539 = vld [vmem:[%s1518 + $0x50] sm:$0xf]
        %v1540 = vld [vmem:[%s1518 + $0x54] sm:$0xf]
        %v1541 = vld [vmem:[%s1518 + $0x58] sm:$0xf]
        %v1542 = vld [vmem:[%s1518 + $0x5c] sm:$0xf]
        %v1543 = vld [vmem:[%s1518 + $0x60] sm:$0xf]
        %v1544 = vld [vmem:[%s1518 + $0x64] sm:$0xf]
        %v1545 = vld [vmem:[%s1518 + $0x68] sm:$0xf]
        %v1546 = vld [vmem:[%s1518 + $0x6c] sm:$0xf]
        %v1547 = vld [vmem:[%s1518 + $0x70] sm:$0xf]
        %v1548 = vld [vmem:[%s1518 + $0x74] sm:$0xf]
        %v1549 = vld [vmem:[%s1518 + $0x78] sm:$0xf]
        %v1550 = vld [vmem:[%s1518 + $0x7c] sm:$0xf]
        %v1583 = vunpack.c.l.b16 %v1519
        %v1584 = vunpack.c.l.b16 %v1520
        %v1585 = vunpack.c.l.b16 %v1521
        %v1586 = vunpack.c.l.b16 %v1522
        %v1587 = vunpack.c.l.b16 %v1523
        %v1588 = vunpack.c.l.b16 %v1524
        %v1589 = vunpack.c.l.b16 %v1525
        %v1590 = vunpack.c.l.b16 %v1526
        %v1591 = vunpack.c.l.b16 %v1527
        %v1592 = vunpack.c.l.b16 %v1528
        %v1593 = vunpack.c.l.b16 %v1529
        %v1594 = vunpack.c.l.b16 %v1530
        %v1595 = vunpack.c.l.b16 %v1531
        %v1596 = vunpack.c.l.b16 %v1532
        %v1597 = vunpack.c.l.b16 %v1533
        %v1598 = vunpack.c.l.b16 %v1534
        %v1599 = vunpack.c.l.b16 %v1535
        %v1600 = vunpack.c.l.b16 %v1536
        %v1601 = vunpack.c.l.b16 %v1537
        %v1602 = vunpack.c.l.b16 %v1538
        %v1603 = vunpack.c.l.b16 %v1539
        %v1604 = vunpack.c.l.b16 %v1540
        %v1605 = vunpack.c.l.b16 %v1541
        %v1606 = vunpack.c.l.b16 %v1542
        %v1607 = vunpack.c.l.b16 %v1543
        %v1608 = vunpack.c.l.b16 %v1544
        %v1609 = vunpack.c.l.b16 %v1545
        %v1610 = vunpack.c.l.b16 %v1546
        %v1611 = vunpack.c.l.b16 %v1547
        %v1612 = vunpack.c.l.b16 %v1548
        %v1613 = vunpack.c.l.b16 %v1549
        %v1614 = vunpack.c.l.b16 %v1550
        %v1615 = vpack.c.b16 %v1584, %v1583
        %v1616 = vpack.c.b16 %v1586, %v1585
        %v1617 = vpack.c.b16 %v1588, %v1587
        %v1618 = vpack.c.b16 %v1590, %v1589
        %v1619 = vpack.c.b16 %v1592, %v1591
        %v1620 = vpack.c.b16 %v1594, %v1593
        %v1621 = vpack.c.b16 %v1596, %v1595
        %v1622 = vpack.c.b16 %v1598, %v1597
        %v1623 = vpack.c.b16 %v1600, %v1599
        %v1624 = vpack.c.b16 %v1602, %v1601
        %v1625 = vpack.c.b16 %v1604, %v1603
        %v1626 = vpack.c.b16 %v1606, %v1605
        %v1627 = vpack.c.b16 %v1608, %v1607
        %v1628 = vpack.c.b16 %v1610, %v1609
        %v1629 = vpack.c.b16 %v1612, %v1611
        %v1630 = vpack.c.b16 %v1614, %v1613
        %1647 = vmatprep.subr.bf16.mxu0 0
        %1648 = vmatpush1.bf16.msra.mxu0 %v1615
        %1649 = vmatprep.subr.bf16.mxu0 0
        %1650 = vmatpush1.bf16.msra.mxu0 %v1616
        %1651 = vmatprep.subr.bf16.mxu0 0
        %1652 = vmatpush1.bf16.msra.mxu0 %v1617
        %1653 = vmatprep.subr.bf16.mxu0 0
        %1654 = vmatpush1.bf16.msra.mxu0 %v1618
        %1655 = vmatprep.subr.bf16.mxu0 0
        %1656 = vmatpush1.bf16.msra.mxu0 %v1619
        %1657 = vmatprep.subr.bf16.mxu0 0
        %1658 = vmatpush1.bf16.msra.mxu0 %v1620
        %1659 = vmatprep.subr.bf16.mxu0 0
        %1660 = vmatpush1.bf16.msra.mxu0 %v1621
        %1661 = vmatprep.subr.bf16.mxu0 0
        %1662 = vmatpush1.bf16.msra.mxu0 %v1622
        %1663 = vmatprep.subr.bf16.mxu0 0
        %1664 = vmatpush1.bf16.msra.mxu0 %v1623
        %1665 = vmatprep.subr.bf16.mxu0 0
        %1666 = vmatpush1.bf16.msra.mxu0 %v1624
        %1667 = vmatprep.subr.bf16.mxu0 0
        %1668 = vmatpush1.bf16.msra.mxu0 %v1625
        %1669 = vmatprep.subr.bf16.mxu0 0
        %1670 = vmatpush1.bf16.msra.mxu0 %v1626
        %1671 = vmatprep.subr.bf16.mxu0 0
        %1672 = vmatpush1.bf16.msra.mxu0 %v1627
        %1673 = vmatprep.subr.bf16.mxu0 0
        %1674 = vmatpush1.bf16.msra.mxu0 %v1628
        %1675 = vmatprep.subr.bf16.mxu0 0
        %1676 = vmatpush1.bf16.msra.mxu0 %v1629
        %1677 = vmatprep.subr.bf16.mxu0 0
        %1678 = vmatpush1.bf16.msra.mxu0 %v1630
        %1679 = vmatprep.mubr.bf16.mxu0 %v1487
        %1680 = vmatmul.mubr.bf16.gmra.mrb[0].mxu0 %v1486
        %v1681 = vpop.f32.mrb[0].mxu0
        %v1682 = vadd.f32 0.0, %v1681
        %v1683 = vpop.f32.mrb[0].mxu0
        %v1684 = vpop.f32.mrb[0].mxu0
        %v1685 = vadd.f32 0.0, %v1684
        %v1686 = vpop.f32.mrb[0].mxu0
        %1687 = vmatprep.mubr.bf16.mxu0 %v1489
        %1688 = vmatmul.mubr.bf16.gmra.mrb[0].mxu0 %v1488
        %v1689 = vpop.f32.mrb[0].mxu0
        %v1690 = vadd.f32 0.0, %v1689
        %v1691 = vpop.f32.mrb[0].mxu0
        %v1692 = vpop.f32.mrb[0].mxu0
        %v1693 = vadd.f32 0.0, %v1692
        %v1694 = vpop.f32.mrb[0].mxu0
        %1695 = vmatprep.mubr.bf16.mxu0 %v1491
        %1696 = vmatmul.mubr.bf16.gmra.mrb[0].mxu0 %v1490
        %v1697 = vpop.f32.mrb[0].mxu0
        %v1698 = vadd.f32 0.0, %v1697
        %v1699 = vpop.f32.mrb[0].mxu0
        %v1700 = vpop.f32.mrb[0].mxu0
        %v1701 = vadd.f32 0.0, %v1700
        %v1702 = vpop.f32.mrb[0].mxu0
        %1703 = vmatprep.mubr.bf16.mxu0 %v1493
        %1704 = vmatmul.mubr.bf16.gmra.mrb[0].mxu0 %v1492
        %v1705 = vpop.f32.mrb[0].mxu0
        %v1706 = vadd.f32 0.0, %v1705
        %v1707 = vpop.f32.mrb[0].mxu0
        %v1708 = vpop.f32.mrb[0].mxu0
        %v1709 = vadd.f32 0.0, %v1708
        %v1710 = vpop.f32.mrb[0].mxu0
        %1711 = vmatprep.mubr.bf16.mxu0 %v1495
        %1712 = vmatmul.mubr.bf16.gmra.mrb[0].mxu0 %v1494
        %v1713 = vpop.f32.mrb[0].mxu0
        %v1714 = vadd.f32 0.0, %v1713
        %v1715 = vpop.f32.mrb[0].mxu0
        %v1716 = vpop.f32.mrb[0].mxu0
        %v1717 = vadd.f32 0.0, %v1716
        %v1718 = vpop.f32.mrb[0].mxu0
        %1719 = vmatprep.mubr.bf16.mxu0 %v1497
        %1720 = vmatmul.mubr.bf16.gmra.mrb[0].mxu0 %v1496
        %v1721 = vpop.f32.mrb[0].mxu0
        %v1722 = vadd.f32 0.0, %v1721
        %v1723 = vpop.f32.mrb[0].mxu0
        %v1724 = vpop.f32.mrb[0].mxu0
        %v1725 = vadd.f32 0.0, %v1724
        %v1726 = vpop.f32.mrb[0].mxu0
        %1727 = vmatprep.mubr.bf16.mxu0 %v1499
        %1728 = vmatmul.mubr.bf16.gmra.mrb[0].mxu0 %v1498
        %v1729 = vpop.f32.mrb[0].mxu0
        %v1730 = vadd.f32 0.0, %v1729
        %v1731 = vpop.f32.mrb[0].mxu0
        %v1732 = vpop.f32.mrb[0].mxu0
        %v1733 = vadd.f32 0.0, %v1732
        %v1734 = vpop.f32.mrb[0].mxu0
        %1735 = vmatprep.mubr.bf16.mxu0 %v1501
        %1736 = vmatmul.mubr.bf16.gmra.mrb[0].mxu0 %v1500
        %v1737 = vpop.f32.mrb[0].mxu0
        %v1738 = vadd.f32 0.0, %v1737
        %v1739 = vpop.f32.mrb[0].mxu0
        %v1740 = vpop.f32.mrb[0].mxu0
        %v1741 = vadd.f32 0.0, %v1740
        %v1742 = vpop.f32.mrb[0].mxu0
        %1743 = vmatprep.mubr.bf16.mxu0 %v1503
        %1744 = vmatmul.mubr.bf16.gmra.mrb[0].mxu0 %v1502
        %v1745 = vpop.f32.mrb[0].mxu0
        %v1746 = vadd.f32 0.0, %v1745
        %v1747 = vpop.f32.mrb[0].mxu0
        %v1748 = vpop.f32.mrb[0].mxu0
        %v1749 = vadd.f32 0.0, %v1748
        %v1750 = vpop.f32.mrb[0].mxu0
        %1751 = vmatprep.mubr.bf16.mxu0 %v1505
        %1752 = vmatmul.mubr.bf16.gmra.mrb[0].mxu0 %v1504
        %v1753 = vpop.f32.mrb[0].mxu0
        %v1754 = vadd.f32 0.0, %v1753
        %v1755 = vpop.f32.mrb[0].mxu0
        %v1756 = vpop.f32.mrb[0].mxu0
        %v1757 = vadd.f32 0.0, %v1756
        %v1758 = vpop.f32.mrb[0].mxu0
        %1759 = vmatprep.mubr.bf16.mxu0 %v1507
        %1760 = vmatmul.mubr.bf16.gmra.mrb[0].mxu0 %v1506
        %v1761 = vpop.f32.mrb[0].mxu0
        %v1762 = vadd.f32 0.0, %v1761
        %v1763 = vpop.f32.mrb[0].mxu0
        %v1764 = vpop.f32.mrb[0].mxu0
        %v1765 = vadd.f32 0.0, %v1764
        %v1766 = vpop.f32.mrb[0].mxu0
        %1767 = vmatprep.mubr.bf16.mxu0 %v1509
        %1768 = vmatmul.mubr.bf16.gmra.mrb[0].mxu0 %v1508
        %v1769 = vpop.f32.mrb[0].mxu0
        %v1770 = vadd.f32 0.0, %v1769
        %v1771 = vpop.f32.mrb[0].mxu0
        %v1772 = vpop.f32.mrb[0].mxu0
        %v1773 = vadd.f32 0.0, %v1772
        %v1774 = vpop.f32.mrb[0].mxu0
        %1775 = vmatprep.mubr.bf16.mxu0 %v1511
        %1776 = vmatmul.mubr.bf16.gmra.mrb[0].mxu0 %v1510
        %v1777 = vpop.f32.mrb[0].mxu0
        %v1778 = vadd.f32 0.0, %v1777
        %v1779 = vpop.f32.mrb[0].mxu0
        %v1780 = vpop.f32.mrb[0].mxu0
        %v1781 = vadd.f32 0.0, %v1780
        %v1782 = vpop.f32.mrb[0].mxu0
        %1783 = vmatprep.mubr.bf16.mxu0 %v1513
        %1784 = vmatmul.mubr.bf16.gmra.mrb[0].mxu0 %v1512
        %v1785 = vpop.f32.mrb[0].mxu0
        %v1786 = vadd.f32 0.0, %v1785
        %v1787 = vpop.f32.mrb[0].mxu0
        %v1788 = vpop.f32.mrb[0].mxu0
        %v1789 = vadd.f32 0.0, %v1788
        %v1790 = vpop.f32.mrb[0].mxu0
        %1791 = vmatprep.mubr.bf16.mxu0 %v1515
        %1792 = vmatmul.mubr.bf16.gmra.mrb[0].mxu0 %v1514
        %v1793 = vpop.f32.mrb[0].mxu0
        %v1794 = vadd.f32 0.0, %v1793
        %v1795 = vpop.f32.mrb[0].mxu0
        %v1796 = vpop.f32.mrb[0].mxu0
        %v1797 = vadd.f32 0.0, %v1796
        %v1798 = vpop.f32.mrb[0].mxu0
        %1799 = vmatprep.mubr.bf16.mxu0 %v1517
        %1800 = vmatmul.mubr.bf16.gmra.mrb[0].mxu0 %v1516
        %v1801 = vpop.f32.mrb[0].mxu0
        %v1802 = vadd.f32 0.0, %v1801
        %v1803 = vpop.f32.mrb[0].mxu0
        %v1804 = vpop.f32.mrb[0].mxu0
        %v1805 = vadd.f32 0.0, %v1804
        %v1806 = vpop.f32.mrb[0].mxu0
        %1807 = vdwg.mxu0
        %v1808 = vadd.f32 %v1360, %v1682
        %v1809 = vadd.f32 %v1363, %v1685
        %v1810 = vadd.f32 %v1368, %v1690
        %v1811 = vadd.f32 %v1371, %v1693
        %v1812 = vadd.f32 %v1376, %v1698
        %v1813 = vadd.f32 %v1379, %v1701
        %v1814 = vadd.f32 %v1384, %v1706
        %v1815 = vadd.f32 %v1387, %v1709
        %v1816 = vadd.f32 %v1392, %v1714
        %v1817 = vadd.f32 %v1395, %v1717
        %v1818 = vadd.f32 %v1400, %v1722
        %v1819 = vadd.f32 %v1403, %v1725
        %v1820 = vadd.f32 %v1408, %v1730
        %v1821 = vadd.f32 %v1411, %v1733
        %v1822 = vadd.f32 %v1416, %v1738
        %v1823 = vadd.f32 %v1419, %v1741
        %v1824 = vadd.f32 %v1424, %v1746
        %v1825 = vadd.f32 %v1427, %v1749
        %v1826 = vadd.f32 %v1432, %v1754
        %v1827 = vadd.f32 %v1435, %v1757
        %v1828 = vadd.f32 %v1440, %v1762
        %v1829 = vadd.f32 %v1443, %v1765
        %v1830 = vadd.f32 %v1448, %v1770
        %v1831 = vadd.f32 %v1451, %v1773
        %v1832 = vadd.f32 %v1456, %v1778
        %v1833 = vadd.f32 %v1459, %v1781
        %v1834 = vadd.f32 %v1464, %v1786
        %v1835 = vadd.f32 %v1467, %v1789
        %v1836 = vadd.f32 %v1472, %v1794
        %v1837 = vadd.f32 %v1475, %v1797
        %v1838 = vadd.f32 %v1480, %v1802
        %v1839 = vadd.f32 %v1483, %v1805
        %v1840 = vld [vmem:[#allocation2 + $0x60] sm:$0xff]
        %v1841 = vld [vmem:[#allocation2 + $0x68] sm:$0xff]
        %v1842 = vld [vmem:[#allocation2 + $0x70] sm:$0xff]
        %v1843 = vld [vmem:[#allocation2 + $0x78] sm:$0xff]
        %v1844 = vld [vmem:[#allocation2 + $0x80] sm:$0xff]
        %v1845 = vld [vmem:[#allocation2 + $0x88] sm:$0xff]
        %v1846 = vld [vmem:[#allocation2 + $0x90] sm:$0xff]
        %v1847 = vld [vmem:[#allocation2 + $0x98] sm:$0xff]
        %v1848 = vld [vmem:[#allocation2 + $0xa0] sm:$0xff]
        %v1849 = vld [vmem:[#allocation2 + $0xa8] sm:$0xff]
        %v1850 = vld [vmem:[#allocation2 + $0xb0] sm:$0xff]
        %v1851 = vld [vmem:[#allocation2 + $0xb8] sm:$0xff]
        %v1852 = vld [vmem:[#allocation2 + $0xc0] sm:$0xff]
        %v1853 = vld [vmem:[#allocation2 + $0xc8] sm:$0xff]
        %v1854 = vld [vmem:[#allocation2 + $0xd0] sm:$0xff]
        %v1855 = vld [vmem:[#allocation2 + $0xd8] sm:$0xff]
        %v1856 = vld [vmem:[#allocation2 + $0xe0] sm:$0xff]
        %v1857 = vld [vmem:[#allocation2 + $0xe8] sm:$0xff]
        %v1858 = vld [vmem:[#allocation2 + $0xf0] sm:$0xff]
        %v1859 = vld [vmem:[#allocation2 + $0xf8] sm:$0xff]
        %v1860 = vld [vmem:[#allocation2 + $0x100] sm:$0xff]
        %v1861 = vld [vmem:[#allocation2 + $0x108] sm:$0xff]
        %v1862 = vld [vmem:[#allocation2 + $0x110] sm:$0xff]
        %v1863 = vld [vmem:[#allocation2 + $0x118] sm:$0xff]
        %v1864 = vld [vmem:[#allocation2 + $0x120] sm:$0xff]
        %v1865 = vld [vmem:[#allocation2 + $0x128] sm:$0xff]
        %v1866 = vld [vmem:[#allocation2 + $0x130] sm:$0xff]
        %v1867 = vld [vmem:[#allocation2 + $0x138] sm:$0xff]
        %v1868 = vld [vmem:[#allocation2 + $0x140] sm:$0xff]
        %v1869 = vld [vmem:[#allocation2 + $0x148] sm:$0xff]
        %v1870 = vld [vmem:[#allocation2 + $0x150] sm:$0xff]
        %v1871 = vld [vmem:[#allocation2 + $0x158] sm:$0xff]
        %s1872 = scalar_lea.vmem [#allocation9], 384
        %v1873 = vld [vmem:[%s1872] sm:$0xf]
        %v1874 = vld [vmem:[%s1872 + $0x4] sm:$0xf]
        %v1875 = vld [vmem:[%s1872 + $0x8] sm:$0xf]
        %v1876 = vld [vmem:[%s1872 + $0xc] sm:$0xf]
        %v1877 = vld [vmem:[%s1872 + $0x10] sm:$0xf]
        %v1878 = vld [vmem:[%s1872 + $0x14] sm:$0xf]
        %v1879 = vld [vmem:[%s1872 + $0x18] sm:$0xf]
        %v1880 = vld [vmem:[%s1872 + $0x1c] sm:$0xf]
        %v1881 = vld [vmem:[%s1872 + $0x20] sm:$0xf]
        %v1882 = vld [vmem:[%s1872 + $0x24] sm:$0xf]
        %v1883 = vld [vmem:[%s1872 + $0x28] sm:$0xf]
        %v1884 = vld [vmem:[%s1872 + $0x2c] sm:$0xf]
        %v1885 = vld [vmem:[%s1872 + $0x30] sm:$0xf]
        %v1886 = vld [vmem:[%s1872 + $0x34] sm:$0xf]
        %v1887 = vld [vmem:[%s1872 + $0x38] sm:$0xf]
        %v1888 = vld [vmem:[%s1872 + $0x3c] sm:$0xf]
        %v1889 = vld [vmem:[%s1872 + $0x40] sm:$0xf]
        %v1890 = vld [vmem:[%s1872 + $0x44] sm:$0xf]
        %v1891 = vld [vmem:[%s1872 + $0x48] sm:$0xf]
        %v1892 = vld [vmem:[%s1872 + $0x4c] sm:$0xf]
        %v1893 = vld [vmem:[%s1872 + $0x50] sm:$0xf]
        %v1894 = vld [vmem:[%s1872 + $0x54] sm:$0xf]
        %v1895 = vld [vmem:[%s1872 + $0x58] sm:$0xf]
        %v1896 = vld [vmem:[%s1872 + $0x5c] sm:$0xf]
        %v1897 = vld [vmem:[%s1872 + $0x60] sm:$0xf]
        %v1898 = vld [vmem:[%s1872 + $0x64] sm:$0xf]
        %v1899 = vld [vmem:[%s1872 + $0x68] sm:$0xf]
        %v1900 = vld [vmem:[%s1872 + $0x6c] sm:$0xf]
        %v1901 = vld [vmem:[%s1872 + $0x70] sm:$0xf]
        %v1902 = vld [vmem:[%s1872 + $0x74] sm:$0xf]
        %v1903 = vld [vmem:[%s1872 + $0x78] sm:$0xf]
        %v1904 = vld [vmem:[%s1872 + $0x7c] sm:$0xf]
        %v1937 = vunpack.c.l.b16 %v1873
        %v1938 = vunpack.c.l.b16 %v1874
        %v1939 = vunpack.c.l.b16 %v1875
        %v1940 = vunpack.c.l.b16 %v1876
        %v1941 = vunpack.c.l.b16 %v1877
        %v1942 = vunpack.c.l.b16 %v1878
        %v1943 = vunpack.c.l.b16 %v1879
        %v1944 = vunpack.c.l.b16 %v1880
        %v1945 = vunpack.c.l.b16 %v1881
        %v1946 = vunpack.c.l.b16 %v1882
        %v1947 = vunpack.c.l.b16 %v1883
        %v1948 = vunpack.c.l.b16 %v1884
        %v1949 = vunpack.c.l.b16 %v1885
        %v1950 = vunpack.c.l.b16 %v1886
        %v1951 = vunpack.c.l.b16 %v1887
        %v1952 = vunpack.c.l.b16 %v1888
        %v1953 = vunpack.c.l.b16 %v1889
        %v1954 = vunpack.c.l.b16 %v1890
        %v1955 = vunpack.c.l.b16 %v1891
        %v1956 = vunpack.c.l.b16 %v1892
        %v1957 = vunpack.c.l.b16 %v1893
        %v1958 = vunpack.c.l.b16 %v1894
        %v1959 = vunpack.c.l.b16 %v1895
        %v1960 = vunpack.c.l.b16 %v1896
        %v1961 = vunpack.c.l.b16 %v1897
        %v1962 = vunpack.c.l.b16 %v1898
        %v1963 = vunpack.c.l.b16 %v1899
        %v1964 = vunpack.c.l.b16 %v1900
        %v1965 = vunpack.c.l.b16 %v1901
        %v1966 = vunpack.c.l.b16 %v1902
        %v1967 = vunpack.c.l.b16 %v1903
        %v1968 = vunpack.c.l.b16 %v1904
        %v1969 = vpack.c.b16 %v1938, %v1937
        %v1970 = vpack.c.b16 %v1940, %v1939
        %v1971 = vpack.c.b16 %v1942, %v1941
        %v1972 = vpack.c.b16 %v1944, %v1943
        %v1973 = vpack.c.b16 %v1946, %v1945
        %v1974 = vpack.c.b16 %v1948, %v1947
        %v1975 = vpack.c.b16 %v1950, %v1949
        %v1976 = vpack.c.b16 %v1952, %v1951
        %v1977 = vpack.c.b16 %v1954, %v1953
        %v1978 = vpack.c.b16 %v1956, %v1955
        %v1979 = vpack.c.b16 %v1958, %v1957
        %v1980 = vpack.c.b16 %v1960, %v1959
        %v1981 = vpack.c.b16 %v1962, %v1961
        %v1982 = vpack.c.b16 %v1964, %v1963
        %v1983 = vpack.c.b16 %v1966, %v1965
        %v1984 = vpack.c.b16 %v1968, %v1967
        %2001 = vmatprep.subr.bf16.mxu0 0
        %2002 = vmatpush1.bf16.msra.mxu0 %v1969
        %2003 = vmatprep.subr.bf16.mxu0 0
        %2004 = vmatpush1.bf16.msra.mxu0 %v1970
        %2005 = vmatprep.subr.bf16.mxu0 0
        %2006 = vmatpush1.bf16.msra.mxu0 %v1971
        %2007 = vmatprep.subr.bf16.mxu0 0
        %2008 = vmatpush1.bf16.msra.mxu0 %v1972
        %2009 = vmatprep.subr.bf16.mxu0 0
        %2010 = vmatpush1.bf16.msra.mxu0 %v1973
        %2011 = vmatprep.subr.bf16.mxu0 0
        %2012 = vmatpush1.bf16.msra.mxu0 %v1974
        %2013 = vmatprep.subr.bf16.mxu0 0
        %2014 = vmatpush1.bf16.msra.mxu0 %v1975
        %2015 = vmatprep.subr.bf16.mxu0 0
        %2016 = vmatpush1.bf16.msra.mxu0 %v1976
        %2017 = vmatprep.subr.bf16.mxu0 0
        %2018 = vmatpush1.bf16.msra.mxu0 %v1977
        %2019 = vmatprep.subr.bf16.mxu0 0
        %2020 = vmatpush1.bf16.msra.mxu0 %v1978
        %2021 = vmatprep.subr.bf16.mxu0 0
        %2022 = vmatpush1.bf16.msra.mxu0 %v1979
        %2023 = vmatprep.subr.bf16.mxu0 0
        %2024 = vmatpush1.bf16.msra.mxu0 %v1980
        %2025 = vmatprep.subr.bf16.mxu0 0
        %2026 = vmatpush1.bf16.msra.mxu0 %v1981
        %2027 = vmatprep.subr.bf16.mxu0 0
        %2028 = vmatpush1.bf16.msra.mxu0 %v1982
        %2029 = vmatprep.subr.bf16.mxu0 0
        %2030 = vmatpush1.bf16.msra.mxu0 %v1983
        %2031 = vmatprep.subr.bf16.mxu0 0
        %2032 = vmatpush1.bf16.msra.mxu0 %v1984
        %2033 = vmatprep.mubr.bf16.mxu0 %v1841
        %2034 = vmatmul.mubr.bf16.gmra.mrb[0].mxu0 %v1840
        %v2035 = vpop.f32.mrb[0].mxu0
        %v2036 = vadd.f32 0.0, %v2035
        %v2037 = vpop.f32.mrb[0].mxu0
        %v2038 = vpop.f32.mrb[0].mxu0
        %v2039 = vadd.f32 0.0, %v2038
        %v2040 = vpop.f32.mrb[0].mxu0
        %2041 = vmatprep.mubr.bf16.mxu0 %v1843
        %2042 = vmatmul.mubr.bf16.gmra.mrb[0].mxu0 %v1842
        %v2043 = vpop.f32.mrb[0].mxu0
        %v2044 = vadd.f32 0.0, %v2043
        %v2045 = vpop.f32.mrb[0].mxu0
        %v2046 = vpop.f32.mrb[0].mxu0
        %v2047 = vadd.f32 0.0, %v2046
        %v2048 = vpop.f32.mrb[0].mxu0
        %2049 = vmatprep.mubr.bf16.mxu0 %v1845
        %2050 = vmatmul.mubr.bf16.gmra.mrb[0].mxu0 %v1844
        %v2051 = vpop.f32.mrb[0].mxu0
        %v2052 = vadd.f32 0.0, %v2051
        %v2053 = vpop.f32.mrb[0].mxu0
        %v2054 = vpop.f32.mrb[0].mxu0
        %v2055 = vadd.f32 0.0, %v2054
        %v2056 = vpop.f32.mrb[0].mxu0
        %2057 = vmatprep.mubr.bf16.mxu0 %v1847
        %2058 = vmatmul.mubr.bf16.gmra.mrb[0].mxu0 %v1846
        %v2059 = vpop.f32.mrb[0].mxu0
        %v2060 = vadd.f32 0.0, %v2059
        %v2061 = vpop.f32.mrb[0].mxu0
        %v2062 = vpop.f32.mrb[0].mxu0
        %v2063 = vadd.f32 0.0, %v2062
        %v2064 = vpop.f32.mrb[0].mxu0
        %2065 = vmatprep.mubr.bf16.mxu0 %v1849
        %2066 = vmatmul.mubr.bf16.gmra.mrb[0].mxu0 %v1848
        %v2067 = vpop.f32.mrb[0].mxu0
        %v2068 = vadd.f32 0.0, %v2067
        %v2069 = vpop.f32.mrb[0].mxu0
        %v2070 = vpop.f32.mrb[0].mxu0
        %v2071 = vadd.f32 0.0, %v2070
        %v2072 = vpop.f32.mrb[0].mxu0
        %2073 = vmatprep.mubr.bf16.mxu0 %v1851
        %2074 = vmatmul.mubr.bf16.gmra.mrb[0].mxu0 %v1850
        %v2075 = vpop.f32.mrb[0].mxu0
        %v2076 = vadd.f32 0.0, %v2075
        %v2077 = vpop.f32.mrb[0].mxu0
        %v2078 = vpop.f32.mrb[0].mxu0
        %v2079 = vadd.f32 0.0, %v2078
        %v2080 = vpop.f32.mrb[0].mxu0
        %2081 = vmatprep.mubr.bf16.mxu0 %v1853
        %2082 = vmatmul.mubr.bf16.gmra.mrb[0].mxu0 %v1852
        %v2083 = vpop.f32.mrb[0].mxu0
        %v2084 = vadd.f32 0.0, %v2083
        %v2085 = vpop.f32.mrb[0].mxu0
        %v2086 = vpop.f32.mrb[0].mxu0
        %v2087 = vadd.f32 0.0, %v2086
        %v2088 = vpop.f32.mrb[0].mxu0
        %2089 = vmatprep.mubr.bf16.mxu0 %v1855
        %2090 = vmatmul.mubr.bf16.gmra.mrb[0].mxu0 %v1854
        %v2091 = vpop.f32.mrb[0].mxu0
        %v2092 = vadd.f32 0.0, %v2091
        %v2093 = vpop.f32.mrb[0].mxu0
        %v2094 = vpop.f32.mrb[0].mxu0
        %v2095 = vadd.f32 0.0, %v2094
        %v2096 = vpop.f32.mrb[0].mxu0
        %2097 = vmatprep.mubr.bf16.mxu0 %v1857
        %2098 = vmatmul.mubr.bf16.gmra.mrb[0].mxu0 %v1856
        %v2099 = vpop.f32.mrb[0].mxu0
        %v2100 = vadd.f32 0.0, %v2099
        %v2101 = vpop.f32.mrb[0].mxu0
        %v2102 = vpop.f32.mrb[0].mxu0
        %v2103 = vadd.f32 0.0, %v2102
        %v2104 = vpop.f32.mrb[0].mxu0
        %2105 = vmatprep.mubr.bf16.mxu0 %v1859
        %2106 = vmatmul.mubr.bf16.gmra.mrb[0].mxu0 %v1858
        %v2107 = vpop.f32.mrb[0].mxu0
        %v2108 = vadd.f32 0.0, %v2107
        %v2109 = vpop.f32.mrb[0].mxu0
        %v2110 = vpop.f32.mrb[0].mxu0
        %v2111 = vadd.f32 0.0, %v2110
        %v2112 = vpop.f32.mrb[0].mxu0
        %2113 = vmatprep.mubr.bf16.mxu0 %v1861
        %2114 = vmatmul.mubr.bf16.gmra.mrb[0].mxu0 %v1860
        %v2115 = vpop.f32.mrb[0].mxu0
        %v2116 = vadd.f32 0.0, %v2115
        %v2117 = vpop.f32.mrb[0].mxu0
        %v2118 = vpop.f32.mrb[0].mxu0
        %v2119 = vadd.f32 0.0, %v2118
        %v2120 = vpop.f32.mrb[0].mxu0
        %2121 = vmatprep.mubr.bf16.mxu0 %v1863
        %2122 = vmatmul.mubr.bf16.gmra.mrb[0].mxu0 %v1862
        %v2123 = vpop.f32.mrb[0].mxu0
        %v2124 = vadd.f32 0.0, %v2123
        %v2125 = vpop.f32.mrb[0].mxu0
        %v2126 = vpop.f32.mrb[0].mxu0
        %v2127 = vadd.f32 0.0, %v2126
        %v2128 = vpop.f32.mrb[0].mxu0
        %2129 = vmatprep.mubr.bf16.mxu0 %v1865
        %2130 = vmatmul.mubr.bf16.gmra.mrb[0].mxu0 %v1864
        %v2131 = vpop.f32.mrb[0].mxu0
        %v2132 = vadd.f32 0.0, %v2131
        %v2133 = vpop.f32.mrb[0].mxu0
        %v2134 = vpop.f32.mrb[0].mxu0
        %v2135 = vadd.f32 0.0, %v2134
        %v2136 = vpop.f32.mrb[0].mxu0
        %2137 = vmatprep.mubr.bf16.mxu0 %v1867
        %2138 = vmatmul.mubr.bf16.gmra.mrb[0].mxu0 %v1866
        %v2139 = vpop.f32.mrb[0].mxu0
        %v2140 = vadd.f32 0.0, %v2139
        %v2141 = vpop.f32.mrb[0].mxu0
        %v2142 = vpop.f32.mrb[0].mxu0
        %v2143 = vadd.f32 0.0, %v2142
        %v2144 = vpop.f32.mrb[0].mxu0
        %2145 = vmatprep.mubr.bf16.mxu0 %v1869
        %2146 = vmatmul.mubr.bf16.gmra.mrb[0].mxu0 %v1868
        %v2147 = vpop.f32.mrb[0].mxu0
        %v2148 = vadd.f32 0.0, %v2147
        %v2149 = vpop.f32.mrb[0].mxu0
        %v2150 = vpop.f32.mrb[0].mxu0
        %v2151 = vadd.f32 0.0, %v2150
        %v2152 = vpop.f32.mrb[0].mxu0
        %2153 = vmatprep.mubr.bf16.mxu0 %v1871
        %2154 = vmatmul.mubr.bf16.gmra.mrb[0].mxu0 %v1870
        %v2155 = vpop.f32.mrb[0].mxu0
        %v2156 = vadd.f32 0.0, %v2155
        %v2157 = vpop.f32.mrb[0].mxu0
        %v2158 = vpop.f32.mrb[0].mxu0
        %v2159 = vadd.f32 0.0, %v2158
        %v2160 = vpop.f32.mrb[0].mxu0
        %2161 = vdwg.mxu0
        %v2162 = vadd.f32 %v1808, %v2036
        %v2163 = vadd.f32 %v1809, %v2039
        %v2164 = vadd.f32 %v1810, %v2044
        %v2165 = vadd.f32 %v1811, %v2047
        %v2166 = vadd.f32 %v1812, %v2052
        %v2167 = vadd.f32 %v1813, %v2055
        %v2168 = vadd.f32 %v1814, %v2060
        %v2169 = vadd.f32 %v1815, %v2063
        %v2170 = vadd.f32 %v1816, %v2068
        %v2171 = vadd.f32 %v1817, %v2071
        %v2172 = vadd.f32 %v1818, %v2076
        %v2173 = vadd.f32 %v1819, %v2079
        %v2174 = vadd.f32 %v1820, %v2084
        %v2175 = vadd.f32 %v1821, %v2087
        %v2176 = vadd.f32 %v1822, %v2092
        %v2177 = vadd.f32 %v1823, %v2095
        %v2178 = vadd.f32 %v1824, %v2100
        %v2179 = vadd.f32 %v1825, %v2103
        %v2180 = vadd.f32 %v1826, %v2108
        %v2181 = vadd.f32 %v1827, %v2111
        %v2182 = vadd.f32 %v1828, %v2116
        %v2183 = vadd.f32 %v1829, %v2119
        %v2184 = vadd.f32 %v1830, %v2124
        %v2185 = vadd.f32 %v1831, %v2127
        %v2186 = vadd.f32 %v1832, %v2132
        %v2187 = vadd.f32 %v1833, %v2135
        %v2188 = vadd.f32 %v1834, %v2140
        %v2189 = vadd.f32 %v1835, %v2143
        %v2190 = vadd.f32 %v1836, %v2148
        %v2191 = vadd.f32 %v1837, %v2151
        %v2192 = vadd.f32 %v1838, %v2156
        %v2193 = vadd.f32 %v1839, %v2159
        %v2194 = vld [vmem:[#allocation2 + $0x80] sm:$0xff]
        %v2195 = vld [vmem:[#allocation2 + $0x88] sm:$0xff]
        %v2196 = vld [vmem:[#allocation2 + $0x90] sm:$0xff]
        %v2197 = vld [vmem:[#allocation2 + $0x98] sm:$0xff]
        %v2198 = vld [vmem:[#allocation2 + $0xa0] sm:$0xff]
        %v2199 = vld [vmem:[#allocation2 + $0xa8] sm:$0xff]
        %v2200 = vld [vmem:[#allocation2 + $0xb0] sm:$0xff]
        %v2201 = vld [vmem:[#allocation2 + $0xb8] sm:$0xff]
        %v2202 = vld [vmem:[#allocation2 + $0xc0] sm:$0xff]
        %v2203 = vld [vmem:[#allocation2 + $0xc8] sm:$0xff]
        %v2204 = vld [vmem:[#allocation2 + $0xd0] sm:$0xff]
        %v2205 = vld [vmem:[#allocation2 + $0xd8] sm:$0xff]
        %v2206 = vld [vmem:[#allocation2 + $0xe0] sm:$0xff]
        %v2207 = vld [vmem:[#allocation2 + $0xe8] sm:$0xff]
        %v2208 = vld [vmem:[#allocation2 + $0xf0] sm:$0xff]
        %v2209 = vld [vmem:[#allocation2 + $0xf8] sm:$0xff]
        %v2210 = vld [vmem:[#allocation2 + $0x100] sm:$0xff]
        %v2211 = vld [vmem:[#allocation2 + $0x108] sm:$0xff]
        %v2212 = vld [vmem:[#allocation2 + $0x110] sm:$0xff]
        %v2213 = vld [vmem:[#allocation2 + $0x118] sm:$0xff]
        %v2214 = vld [vmem:[#allocation2 + $0x120] sm:$0xff]
        %v2215 = vld [vmem:[#allocation2 + $0x128] sm:$0xff]
        %v2216 = vld [vmem:[#allocation2 + $0x130] sm:$0xff]
        %v2217 = vld [vmem:[#allocation2 + $0x138] sm:$0xff]
        %v2218 = vld [vmem:[#allocation2 + $0x140] sm:$0xff]
        %v2219 = vld [vmem:[#allocation2 + $0x148] sm:$0xff]
        %v2220 = vld [vmem:[#allocation2 + $0x150] sm:$0xff]
        %v2221 = vld [vmem:[#allocation2 + $0x158] sm:$0xff]
        %v2222 = vld [vmem:[#allocation2 + $0x160] sm:$0xff]
        %v2223 = vld [vmem:[#allocation2 + $0x168] sm:$0xff]
        %v2224 = vld [vmem:[#allocation2 + $0x170] sm:$0xff]
        %v2225 = vld [vmem:[#allocation2 + $0x178] sm:$0xff]
        %s2226 = scalar_lea.vmem [#allocation9], 512
        %v2227 = vld [vmem:[%s2226] sm:$0xf]
        %v2228 = vld [vmem:[%s2226 + $0x4] sm:$0xf]
        %v2229 = vld [vmem:[%s2226 + $0x8] sm:$0xf]
        %v2230 = vld [vmem:[%s2226 + $0xc] sm:$0xf]
        %v2231 = vld [vmem:[%s2226 + $0x10] sm:$0xf]
        %v2232 = vld [vmem:[%s2226 + $0x14] sm:$0xf]
        %v2233 = vld [vmem:[%s2226 + $0x18] sm:$0xf]
        %v2234 = vld [vmem:[%s2226 + $0x1c] sm:$0xf]
        %v2235 = vld [vmem:[%s2226 + $0x20] sm:$0xf]
        %v2236 = vld [vmem:[%s2226 + $0x24] sm:$0xf]
        %v2237 = vld [vmem:[%s2226 + $0x28] sm:$0xf]
        %v2238 = vld [vmem:[%s2226 + $0x2c] sm:$0xf]
        %v2239 = vld [vmem:[%s2226 + $0x30] sm:$0xf]
        %v2240 = vld [vmem:[%s2226 + $0x34] sm:$0xf]
        %v2241 = vld [vmem:[%s2226 + $0x38] sm:$0xf]
        %v2242 = vld [vmem:[%s2226 + $0x3c] sm:$0xf]
        %v2243 = vld [vmem:[%s2226 + $0x40] sm:$0xf]
        %v2244 = vld [vmem:[%s2226 + $0x44] sm:$0xf]
        %v2245 = vld [vmem:[%s2226 + $0x48] sm:$0xf]
        %v2246 = vld [vmem:[%s2226 + $0x4c] sm:$0xf]
        %v2247 = vld [vmem:[%s2226 + $0x50] sm:$0xf]
        %v2248 = vld [vmem:[%s2226 + $0x54] sm:$0xf]
        %v2249 = vld [vmem:[%s2226 + $0x58] sm:$0xf]
        %v2250 = vld [vmem:[%s2226 + $0x5c] sm:$0xf]
        %v2251 = vld [vmem:[%s2226 + $0x60] sm:$0xf]
        %v2252 = vld [vmem:[%s2226 + $0x64] sm:$0xf]
        %v2253 = vld [vmem:[%s2226 + $0x68] sm:$0xf]
        %v2254 = vld [vmem:[%s2226 + $0x6c] sm:$0xf]
        %v2255 = vld [vmem:[%s2226 + $0x70] sm:$0xf]
        %v2256 = vld [vmem:[%s2226 + $0x74] sm:$0xf]
        %v2257 = vld [vmem:[%s2226 + $0x78] sm:$0xf]
        %v2258 = vld [vmem:[%s2226 + $0x7c] sm:$0xf]
        %v2291 = vunpack.c.l.b16 %v2227
        %v2292 = vunpack.c.l.b16 %v2228
        %v2293 = vunpack.c.l.b16 %v2229
        %v2294 = vunpack.c.l.b16 %v2230
        %v2295 = vunpack.c.l.b16 %v2231
        %v2296 = vunpack.c.l.b16 %v2232
        %v2297 = vunpack.c.l.b16 %v2233
        %v2298 = vunpack.c.l.b16 %v2234
        %v2299 = vunpack.c.l.b16 %v2235
        %v2300 = vunpack.c.l.b16 %v2236
        %v2301 = vunpack.c.l.b16 %v2237
        %v2302 = vunpack.c.l.b16 %v2238
        %v2303 = vunpack.c.l.b16 %v2239
        %v2304 = vunpack.c.l.b16 %v2240
        %v2305 = vunpack.c.l.b16 %v2241
        %v2306 = vunpack.c.l.b16 %v2242
        %v2307 = vunpack.c.l.b16 %v2243
        %v2308 = vunpack.c.l.b16 %v2244
        %v2309 = vunpack.c.l.b16 %v2245
        %v2310 = vunpack.c.l.b16 %v2246
        %v2311 = vunpack.c.l.b16 %v2247
        %v2312 = vunpack.c.l.b16 %v2248
        %v2313 = vunpack.c.l.b16 %v2249
        %v2314 = vunpack.c.l.b16 %v2250
        %v2315 = vunpack.c.l.b16 %v2251
        %v2316 = vunpack.c.l.b16 %v2252
        %v2317 = vunpack.c.l.b16 %v2253
        %v2318 = vunpack.c.l.b16 %v2254
        %v2319 = vunpack.c.l.b16 %v2255
        %v2320 = vunpack.c.l.b16 %v2256
        %v2321 = vunpack.c.l.b16 %v2257
        %v2322 = vunpack.c.l.b16 %v2258
        %v2323 = vpack.c.b16 %v2292, %v2291
        %v2324 = vpack.c.b16 %v2294, %v2293
        %v2325 = vpack.c.b16 %v2296, %v2295
        %v2326 = vpack.c.b16 %v2298, %v2297
        %v2327 = vpack.c.b16 %v2300, %v2299
        %v2328 = vpack.c.b16 %v2302, %v2301
        %v2329 = vpack.c.b16 %v2304, %v2303
        %v2330 = vpack.c.b16 %v2306, %v2305
        %v2331 = vpack.c.b16 %v2308, %v2307
        %v2332 = vpack.c.b16 %v2310, %v2309
        %v2333 = vpack.c.b16 %v2312, %v2311
        %v2334 = vpack.c.b16 %v2314, %v2313
        %v2335 = vpack.c.b16 %v2316, %v2315
        %v2336 = vpack.c.b16 %v2318, %v2317
        %v2337 = vpack.c.b16 %v2320, %v2319
        %v2338 = vpack.c.b16 %v2322, %v2321
        %2355 = vmatprep.subr.bf16.mxu0 0
        %2356 = vmatpush1.bf16.msra.mxu0 %v2323
        %2357 = vmatprep.subr.bf16.mxu0 0
        %2358 = vmatpush1.bf16.msra.mxu0 %v2324
        %2359 = vmatprep.subr.bf16.mxu0 0
        %2360 = vmatpush1.bf16.msra.mxu0 %v2325
        %2361 = vmatprep.subr.bf16.mxu0 0
        %2362 = vmatpush1.bf16.msra.mxu0 %v2326
        %2363 = vmatprep.subr.bf16.mxu0 0
        %2364 = vmatpush1.bf16.msra.mxu0 %v2327
        %2365 = vmatprep.subr.bf16.mxu0 0
        %2366 = vmatpush1.bf16.msra.mxu0 %v2328
        %2367 = vmatprep.subr.bf16.mxu0 0
        %2368 = vmatpush1.bf16.msra.mxu0 %v2329
        %2369 = vmatprep.subr.bf16.mxu0 0
        %2370 = vmatpush1.bf16.msra.mxu0 %v2330
        %2371 = vmatprep.subr.bf16.mxu0 0
        %2372 = vmatpush1.bf16.msra.mxu0 %v2331
        %2373 = vmatprep.subr.bf16.mxu0 0
        %2374 = vmatpush1.bf16.msra.mxu0 %v2332
        %2375 = vmatprep.subr.bf16.mxu0 0
        %2376 = vmatpush1.bf16.msra.mxu0 %v2333
        %2377 = vmatprep.subr.bf16.mxu0 0
        %2378 = vmatpush1.bf16.msra.mxu0 %v2334
        %2379 = vmatprep.subr.bf16.mxu0 0
        %2380 = vmatpush1.bf16.msra.mxu0 %v2335
        %2381 = vmatprep.subr.bf16.mxu0 0
        %2382 = vmatpush1.bf16.msra.mxu0 %v2336
        %2383 = vmatprep.subr.bf16.mxu0 0
        %2384 = vmatpush1.bf16.msra.mxu0 %v2337
        %2385 = vmatprep.subr.bf16.mxu0 0
        %2386 = vmatpush1.bf16.msra.mxu0 %v2338
        %2387 = vmatprep.mubr.bf16.mxu0 %v2195
        %2388 = vmatmul.mubr.bf16.gmra.mrb[0].mxu0 %v2194
        %v2389 = vpop.f32.mrb[0].mxu0
        %v2390 = vadd.f32 0.0, %v2389
        %v2391 = vpop.f32.mrb[0].mxu0
        %v2392 = vpop.f32.mrb[0].mxu0
        %v2393 = vadd.f32 0.0, %v2392
        %v2394 = vpop.f32.mrb[0].mxu0
        %2395 = vmatprep.mubr.bf16.mxu0 %v2197
        %2396 = vmatmul.mubr.bf16.gmra.mrb[0].mxu0 %v2196
        %v2397 = vpop.f32.mrb[0].mxu0
        %v2398 = vadd.f32 0.0, %v2397
        %v2399 = vpop.f32.mrb[0].mxu0
        %v2400 = vpop.f32.mrb[0].mxu0
        %v2401 = vadd.f32 0.0, %v2400
        %v2402 = vpop.f32.mrb[0].mxu0
        %2403 = vmatprep.mubr.bf16.mxu0 %v2199
        %2404 = vmatmul.mubr.bf16.gmra.mrb[0].mxu0 %v2198
        %v2405 = vpop.f32.mrb[0].mxu0
        %v2406 = vadd.f32 0.0, %v2405
        %v2407 = vpop.f32.mrb[0].mxu0
        %v2408 = vpop.f32.mrb[0].mxu0
        %v2409 = vadd.f32 0.0, %v2408
        %v2410 = vpop.f32.mrb[0].mxu0
        %2411 = vmatprep.mubr.bf16.mxu0 %v2201
        %2412 = vmatmul.mubr.bf16.gmra.mrb[0].mxu0 %v2200
        %v2413 = vpop.f32.mrb[0].mxu0
        %v2414 = vadd.f32 0.0, %v2413
        %v2415 = vpop.f32.mrb[0].mxu0
        %v2416 = vpop.f32.mrb[0].mxu0
        %v2417 = vadd.f32 0.0, %v2416
        %v2418 = vpop.f32.mrb[0].mxu0
        %2419 = vmatprep.mubr.bf16.mxu0 %v2203
        %2420 = vmatmul.mubr.bf16.gmra.mrb[0].mxu0 %v2202
        %v2421 = vpop.f32.mrb[0].mxu0
        %v2422 = vadd.f32 0.0, %v2421
        %v2423 = vpop.f32.mrb[0].mxu0
        %v2424 = vpop.f32.mrb[0].mxu0
        %v2425 = vadd.f32 0.0, %v2424
        %v2426 = vpop.f32.mrb[0].mxu0
        %2427 = vmatprep.mubr.bf16.mxu0 %v2205
        %2428 = vmatmul.mubr.bf16.gmra.mrb[0].mxu0 %v2204
        %v2429 = vpop.f32.mrb[0].mxu0
        %v2430 = vadd.f32 0.0, %v2429
        %v2431 = vpop.f32.mrb[0].mxu0
        %v2432 = vpop.f32.mrb[0].mxu0
        %v2433 = vadd.f32 0.0, %v2432
        %v2434 = vpop.f32.mrb[0].mxu0
        %2435 = vmatprep.mubr.bf16.mxu0 %v2207
        %2436 = vmatmul.mubr.bf16.gmra.mrb[0].mxu0 %v2206
        %v2437 = vpop.f32.mrb[0].mxu0
        %v2438 = vadd.f32 0.0, %v2437
        %v2439 = vpop.f32.mrb[0].mxu0
        %v2440 = vpop.f32.mrb[0].mxu0
        %v2441 = vadd.f32 0.0, %v2440
        %v2442 = vpop.f32.mrb[0].mxu0
        %2443 = vmatprep.mubr.bf16.mxu0 %v2209
        %2444 = vmatmul.mubr.bf16.gmra.mrb[0].mxu0 %v2208
        %v2445 = vpop.f32.mrb[0].mxu0
        %v2446 = vadd.f32 0.0, %v2445
        %v2447 = vpop.f32.mrb[0].mxu0
        %v2448 = vpop.f32.mrb[0].mxu0
        %v2449 = vadd.f32 0.0, %v2448
        %v2450 = vpop.f32.mrb[0].mxu0
        %2451 = vmatprep.mubr.bf16.mxu0 %v2211
        %2452 = vmatmul.mubr.bf16.gmra.mrb[0].mxu0 %v2210
        %v2453 = vpop.f32.mrb[0].mxu0
        %v2454 = vadd.f32 0.0, %v2453
        %v2455 = vpop.f32.mrb[0].mxu0
        %v2456 = vpop.f32.mrb[0].mxu0
        %v2457 = vadd.f32 0.0, %v2456
        %v2458 = vpop.f32.mrb[0].mxu0
        %2459 = vmatprep.mubr.bf16.mxu0 %v2213
        %2460 = vmatmul.mubr.bf16.gmra.mrb[0].mxu0 %v2212
        %v2461 = vpop.f32.mrb[0].mxu0
        %v2462 = vadd.f32 0.0, %v2461
        %v2463 = vpop.f32.mrb[0].mxu0
        %v2464 = vpop.f32.mrb[0].mxu0
        %v2465 = vadd.f32 0.0, %v2464
        %v2466 = vpop.f32.mrb[0].mxu0
        %2467 = vmatprep.mubr.bf16.mxu0 %v2215
        %2468 = vmatmul.mubr.bf16.gmra.mrb[0].mxu0 %v2214
        %v2469 = vpop.f32.mrb[0].mxu0
        %v2470 = vadd.f32 0.0, %v2469
        %v2471 = vpop.f32.mrb[0].mxu0
        %v2472 = vpop.f32.mrb[0].mxu0
        %v2473 = vadd.f32 0.0, %v2472
        %v2474 = vpop.f32.mrb[0].mxu0
        %2475 = vmatprep.mubr.bf16.mxu0 %v2217
        %2476 = vmatmul.mubr.bf16.gmra.mrb[0].mxu0 %v2216
        %v2477 = vpop.f32.mrb[0].mxu0
        %v2478 = vadd.f32 0.0, %v2477
        %v2479 = vpop.f32.mrb[0].mxu0
        %v2480 = vpop.f32.mrb[0].mxu0
        %v2481 = vadd.f32 0.0, %v2480
        %v2482 = vpop.f32.mrb[0].mxu0
        %2483 = vmatprep.mubr.bf16.mxu0 %v2219
        %2484 = vmatmul.mubr.bf16.gmra.mrb[0].mxu0 %v2218
        %v2485 = vpop.f32.mrb[0].mxu0
        %v2486 = vadd.f32 0.0, %v2485
        %v2487 = vpop.f32.mrb[0].mxu0
        %v2488 = vpop.f32.mrb[0].mxu0
        %v2489 = vadd.f32 0.0, %v2488
        %v2490 = vpop.f32.mrb[0].mxu0
        %2491 = vmatprep.mubr.bf16.mxu0 %v2221
        %2492 = vmatmul.mubr.bf16.gmra.mrb[0].mxu0 %v2220
        %v2493 = vpop.f32.mrb[0].mxu0
        %v2494 = vadd.f32 0.0, %v2493
        %v2495 = vpop.f32.mrb[0].mxu0
        %v2496 = vpop.f32.mrb[0].mxu0
        %v2497 = vadd.f32 0.0, %v2496
        %v2498 = vpop.f32.mrb[0].mxu0
        %2499 = vmatprep.mubr.bf16.mxu0 %v2223
        %2500 = vmatmul.mubr.bf16.gmra.mrb[0].mxu0 %v2222
        %v2501 = vpop.f32.mrb[0].mxu0
        %v2502 = vadd.f32 0.0, %v2501
        %v2503 = vpop.f32.mrb[0].mxu0
        %v2504 = vpop.f32.mrb[0].mxu0
        %v2505 = vadd.f32 0.0, %v2504
        %v2506 = vpop.f32.mrb[0].mxu0
        %2507 = vmatprep.mubr.bf16.mxu0 %v2225
        %2508 = vmatmul.mubr.bf16.gmra.mrb[0].mxu0 %v2224
        %v2509 = vpop.f32.mrb[0].mxu0
        %v2510 = vadd.f32 0.0, %v2509
        %v2511 = vpop.f32.mrb[0].mxu0
        %v2512 = vpop.f32.mrb[0].mxu0
        %v2513 = vadd.f32 0.0, %v2512
        %v2514 = vpop.f32.mrb[0].mxu0
        %2515 = vdwg.mxu0
        %v2516 = vadd.f32 %v2162, %v2390
        %v2517 = vadd.f32 %v2163, %v2393
        %v2518 = vadd.f32 %v2164, %v2398
        %v2519 = vadd.f32 %v2165, %v2401
        %v2520 = vadd.f32 %v2166, %v2406
        %v2521 = vadd.f32 %v2167, %v2409
        %v2522 = vadd.f32 %v2168, %v2414
        %v2523 = vadd.f32 %v2169, %v2417
        %v2524 = vadd.f32 %v2170, %v2422
        %v2525 = vadd.f32 %v2171, %v2425
        %v2526 = vadd.f32 %v2172, %v2430
        %v2527 = vadd.f32 %v2173, %v2433
        %v2528 = vadd.f32 %v2174, %v2438
        %v2529 = vadd.f32 %v2175, %v2441
        %v2530 = vadd.f32 %v2176, %v2446
        %v2531 = vadd.f32 %v2177, %v2449
        %v2532 = vadd.f32 %v2178, %v2454
        %v2533 = vadd.f32 %v2179, %v2457
        %v2534 = vadd.f32 %v2180, %v2462
        %v2535 = vadd.f32 %v2181, %v2465
        %v2536 = vadd.f32 %v2182, %v2470
        %v2537 = vadd.f32 %v2183, %v2473
        %v2538 = vadd.f32 %v2184, %v2478
        %v2539 = vadd.f32 %v2185, %v2481
        %v2540 = vadd.f32 %v2186, %v2486
        %v2541 = vadd.f32 %v2187, %v2489
        %v2542 = vadd.f32 %v2188, %v2494
        %v2543 = vadd.f32 %v2189, %v2497
        %v2544 = vadd.f32 %v2190, %v2502
        %v2545 = vadd.f32 %v2191, %v2505
        %v2546 = vadd.f32 %v2192, %v2510
        %v2547 = vadd.f32 %v2193, %v2513
        %v2548 = vld [vmem:[#allocation2 + $0xa0] sm:$0xff]
        %v2549 = vld [vmem:[#allocation2 + $0xa8] sm:$0xff]
        %v2550 = vld [vmem:[#allocation2 + $0xb0] sm:$0xff]
        %v2551 = vld [vmem:[#allocation2 + $0xb8] sm:$0xff]
        %v2552 = vld [vmem:[#allocation2 + $0xc0] sm:$0xff]
        %v2553 = vld [vmem:[#allocation2 + $0xc8] sm:$0xff]
        %v2554 = vld [vmem:[#allocation2 + $0xd0] sm:$0xff]
        %v2555 = vld [vmem:[#allocation2 + $0xd8] sm:$0xff]
        %v2556 = vld [vmem:[#allocation2 + $0xe0] sm:$0xff]
        %v2557 = vld [vmem:[#allocation2 + $0xe8] sm:$0xff]
        %v2558 = vld [vmem:[#allocation2 + $0xf0] sm:$0xff]
        %v2559 = vld [vmem:[#allocation2 + $0xf8] sm:$0xff]
        %v2560 = vld [vmem:[#allocation2 + $0x100] sm:$0xff]
        %v2561 = vld [vmem:[#allocation2 + $0x108] sm:$0xff]
        %v2562 = vld [vmem:[#allocation2 + $0x110] sm:$0xff]
        %v2563 = vld [vmem:[#allocation2 + $0x118] sm:$0xff]
        %v2564 = vld [vmem:[#allocation2 + $0x120] sm:$0xff]
        %v2565 = vld [vmem:[#allocation2 + $0x128] sm:$0xff]
        %v2566 = vld [vmem:[#allocation2 + $0x130] sm:$0xff]
        %v2567 = vld [vmem:[#allocation2 + $0x138] sm:$0xff]
        %v2568 = vld [vmem:[#allocation2 + $0x140] sm:$0xff]
        %v2569 = vld [vmem:[#allocation2 + $0x148] sm:$0xff]
        %v2570 = vld [vmem:[#allocation2 + $0x150] sm:$0xff]
        %v2571 = vld [vmem:[#allocation2 + $0x158] sm:$0xff]
        %v2572 = vld [vmem:[#allocation2 + $0x160] sm:$0xff]
        %v2573 = vld [vmem:[#allocation2 + $0x168] sm:$0xff]
        %v2574 = vld [vmem:[#allocation2 + $0x170] sm:$0xff]
        %v2575 = vld [vmem:[#allocation2 + $0x178] sm:$0xff]
        %v2576 = vld [vmem:[#allocation2 + $0x180] sm:$0xff]
        %v2577 = vld [vmem:[#allocation2 + $0x188] sm:$0xff]
        %v2578 = vld [vmem:[#allocation2 + $0x190] sm:$0xff]
        %v2579 = vld [vmem:[#allocation2 + $0x198] sm:$0xff]
        %s2580 = scalar_lea.vmem [#allocation9], 640
        %v2581 = vld [vmem:[%s2580] sm:$0xf]
        %v2582 = vld [vmem:[%s2580 + $0x4] sm:$0xf]
        %v2583 = vld [vmem:[%s2580 + $0x8] sm:$0xf]
        %v2584 = vld [vmem:[%s2580 + $0xc] sm:$0xf]
        %v2585 = vld [vmem:[%s2580 + $0x10] sm:$0xf]
        %v2586 = vld [vmem:[%s2580 + $0x14] sm:$0xf]
        %v2587 = vld [vmem:[%s2580 + $0x18] sm:$0xf]
        %v2588 = vld [vmem:[%s2580 + $0x1c] sm:$0xf]
        %v2589 = vld [vmem:[%s2580 + $0x20] sm:$0xf]
        %v2590 = vld [vmem:[%s2580 + $0x24] sm:$0xf]
        %v2591 = vld [vmem:[%s2580 + $0x28] sm:$0xf]
        %v2592 = vld [vmem:[%s2580 + $0x2c] sm:$0xf]
        %v2593 = vld [vmem:[%s2580 + $0x30] sm:$0xf]
        %v2594 = vld [vmem:[%s2580 + $0x34] sm:$0xf]
        %v2595 = vld [vmem:[%s2580 + $0x38] sm:$0xf]
        %v2596 = vld [vmem:[%s2580 + $0x3c] sm:$0xf]
        %v2597 = vld [vmem:[%s2580 + $0x40] sm:$0xf]
        %v2598 = vld [vmem:[%s2580 + $0x44] sm:$0xf]
        %v2599 = vld [vmem:[%s2580 + $0x48] sm:$0xf]
        %v2600 = vld [vmem:[%s2580 + $0x4c] sm:$0xf]
        %v2601 = vld [vmem:[%s2580 + $0x50] sm:$0xf]
        %v2602 = vld [vmem:[%s2580 + $0x54] sm:$0xf]
        %v2603 = vld [vmem:[%s2580 + $0x58] sm:$0xf]
        %v2604 = vld [vmem:[%s2580 + $0x5c] sm:$0xf]
        %v2605 = vld [vmem:[%s2580 + $0x60] sm:$0xf]
        %v2606 = vld [vmem:[%s2580 + $0x64] sm:$0xf]
        %v2607 = vld [vmem:[%s2580 + $0x68] sm:$0xf]
        %v2608 = vld [vmem:[%s2580 + $0x6c] sm:$0xf]
        %v2609 = vld [vmem:[%s2580 + $0x70] sm:$0xf]
        %v2610 = vld [vmem:[%s2580 + $0x74] sm:$0xf]
        %v2611 = vld [vmem:[%s2580 + $0x78] sm:$0xf]
        %v2612 = vld [vmem:[%s2580 + $0x7c] sm:$0xf]
        %v2645 = vunpack.c.l.b16 %v2581
        %v2646 = vunpack.c.l.b16 %v2582
        %v2647 = vunpack.c.l.b16 %v2583
        %v2648 = vunpack.c.l.b16 %v2584
        %v2649 = vunpack.c.l.b16 %v2585
        %v2650 = vunpack.c.l.b16 %v2586
        %v2651 = vunpack.c.l.b16 %v2587
        %v2652 = vunpack.c.l.b16 %v2588
        %v2653 = vunpack.c.l.b16 %v2589
        %v2654 = vunpack.c.l.b16 %v2590
        %v2655 = vunpack.c.l.b16 %v2591
        %v2656 = vunpack.c.l.b16 %v2592
        %v2657 = vunpack.c.l.b16 %v2593
        %v2658 = vunpack.c.l.b16 %v2594
        %v2659 = vunpack.c.l.b16 %v2595
        %v2660 = vunpack.c.l.b16 %v2596
        %v2661 = vunpack.c.l.b16 %v2597
        %v2662 = vunpack.c.l.b16 %v2598
        %v2663 = vunpack.c.l.b16 %v2599
        %v2664 = vunpack.c.l.b16 %v2600
        %v2665 = vunpack.c.l.b16 %v2601
        %v2666 = vunpack.c.l.b16 %v2602
        %v2667 = vunpack.c.l.b16 %v2603
        %v2668 = vunpack.c.l.b16 %v2604
        %v2669 = vunpack.c.l.b16 %v2605
        %v2670 = vunpack.c.l.b16 %v2606
        %v2671 = vunpack.c.l.b16 %v2607
        %v2672 = vunpack.c.l.b16 %v2608
        %v2673 = vunpack.c.l.b16 %v2609
        %v2674 = vunpack.c.l.b16 %v2610
        %v2675 = vunpack.c.l.b16 %v2611
        %v2676 = vunpack.c.l.b16 %v2612
        %v2677 = vpack.c.b16 %v2646, %v2645
        %v2678 = vpack.c.b16 %v2648, %v2647
        %v2679 = vpack.c.b16 %v2650, %v2649
        %v2680 = vpack.c.b16 %v2652, %v2651
        %v2681 = vpack.c.b16 %v2654, %v2653
        %v2682 = vpack.c.b16 %v2656, %v2655
        %v2683 = vpack.c.b16 %v2658, %v2657
        %v2684 = vpack.c.b16 %v2660, %v2659
        %v2685 = vpack.c.b16 %v2662, %v2661
        %v2686 = vpack.c.b16 %v2664, %v2663
        %v2687 = vpack.c.b16 %v2666, %v2665
        %v2688 = vpack.c.b16 %v2668, %v2667
        %v2689 = vpack.c.b16 %v2670, %v2669
        %v2690 = vpack.c.b16 %v2672, %v2671
        %v2691 = vpack.c.b16 %v2674, %v2673
        %v2692 = vpack.c.b16 %v2676, %v2675
        %2709 = vmatprep.subr.bf16.mxu0 0
        %2710 = vmatpush1.bf16.msra.mxu0 %v2677
        %2711 = vmatprep.subr.bf16.mxu0 0
        %2712 = vmatpush1.bf16.msra.mxu0 %v2678
        %2713 = vmatprep.subr.bf16.mxu0 0
        %2714 = vmatpush1.bf16.msra.mxu0 %v2679
        %2715 = vmatprep.subr.bf16.mxu0 0
        %2716 = vmatpush1.bf16.msra.mxu0 %v2680
        %2717 = vmatprep.subr.bf16.mxu0 0
        %2718 = vmatpush1.bf16.msra.mxu0 %v2681
        %2719 = vmatprep.subr.bf16.mxu0 0
        %2720 = vmatpush1.bf16.msra.mxu0 %v2682
        %2721 = vmatprep.subr.bf16.mxu0 0
        %2722 = vmatpush1.bf16.msra.mxu0 %v2683
        %2723 = vmatprep.subr.bf16.mxu0 0
        %2724 = vmatpush1.bf16.msra.mxu0 %v2684
        %2725 = vmatprep.subr.bf16.mxu0 0
        %2726 = vmatpush1.bf16.msra.mxu0 %v2685
        %2727 = vmatprep.subr.bf16.mxu0 0
        %2728 = vmatpush1.bf16.msra.mxu0 %v2686
        %2729 = vmatprep.subr.bf16.mxu0 0
        %2730 = vmatpush1.bf16.msra.mxu0 %v2687
        %2731 = vmatprep.subr.bf16.mxu0 0
        %2732 = vmatpush1.bf16.msra.mxu0 %v2688
        %2733 = vmatprep.subr.bf16.mxu0 0
        %2734 = vmatpush1.bf16.msra.mxu0 %v2689
        %2735 = vmatprep.subr.bf16.mxu0 0
        %2736 = vmatpush1.bf16.msra.mxu0 %v2690
        %2737 = vmatprep.subr.bf16.mxu0 0
        %2738 = vmatpush1.bf16.msra.mxu0 %v2691
        %2739 = vmatprep.subr.bf16.mxu0 0
        %2740 = vmatpush1.bf16.msra.mxu0 %v2692
        %2741 = vmatprep.mubr.bf16.mxu0 %v2549
        %2742 = vmatmul.mubr.bf16.gmra.mrb[0].mxu0 %v2548
        %v2743 = vpop.f32.mrb[0].mxu0
        %v2744 = vadd.f32 0.0, %v2743
        %v2745 = vpop.f32.mrb[0].mxu0
        %v2746 = vpop.f32.mrb[0].mxu0
        %v2747 = vadd.f32 0.0, %v2746
        %v2748 = vpop.f32.mrb[0].mxu0
        %2749 = vmatprep.mubr.bf16.mxu0 %v2551
        %2750 = vmatmul.mubr.bf16.gmra.mrb[0].mxu0 %v2550
        %v2751 = vpop.f32.mrb[0].mxu0
        %v2752 = vadd.f32 0.0, %v2751
        %v2753 = vpop.f32.mrb[0].mxu0
        %v2754 = vpop.f32.mrb[0].mxu0
        %v2755 = vadd.f32 0.0, %v2754
        %v2756 = vpop.f32.mrb[0].mxu0
        %2757 = vmatprep.mubr.bf16.mxu0 %v2553
        %2758 = vmatmul.mubr.bf16.gmra.mrb[0].mxu0 %v2552
        %v2759 = vpop.f32.mrb[0].mxu0
        %v2760 = vadd.f32 0.0, %v2759
        %v2761 = vpop.f32.mrb[0].mxu0
        %v2762 = vpop.f32.mrb[0].mxu0
        %v2763 = vadd.f32 0.0, %v2762
        %v2764 = vpop.f32.mrb[0].mxu0
        %2765 = vmatprep.mubr.bf16.mxu0 %v2555
        %2766 = vmatmul.mubr.bf16.gmra.mrb[0].mxu0 %v2554
        %v2767 = vpop.f32.mrb[0].mxu0
        %v2768 = vadd.f32 0.0, %v2767
        %v2769 = vpop.f32.mrb[0].mxu0
        %v2770 = vpop.f32.mrb[0].mxu0
        %v2771 = vadd.f32 0.0, %v2770
        %v2772 = vpop.f32.mrb[0].mxu0
        %2773 = vmatprep.mubr.bf16.mxu0 %v2557
        %2774 = vmatmul.mubr.bf16.gmra.mrb[0].mxu0 %v2556
        %v2775 = vpop.f32.mrb[0].mxu0
        %v2776 = vadd.f32 0.0, %v2775
        %v2777 = vpop.f32.mrb[0].mxu0
        %v2778 = vpop.f32.mrb[0].mxu0
        %v2779 = vadd.f32 0.0, %v2778
        %v2780 = vpop.f32.mrb[0].mxu0
        %2781 = vmatprep.mubr.bf16.mxu0 %v2559
        %2782 = vmatmul.mubr.bf16.gmra.mrb[0].mxu0 %v2558
        %v2783 = vpop.f32.mrb[0].mxu0
        %v2784 = vadd.f32 0.0, %v2783
        %v2785 = vpop.f32.mrb[0].mxu0
        %v2786 = vpop.f32.mrb[0].mxu0
        %v2787 = vadd.f32 0.0, %v2786
        %v2788 = vpop.f32.mrb[0].mxu0
        %2789 = vmatprep.mubr.bf16.mxu0 %v2561
        %2790 = vmatmul.mubr.bf16.gmra.mrb[0].mxu0 %v2560
        %v2791 = vpop.f32.mrb[0].mxu0
        %v2792 = vadd.f32 0.0, %v2791
        %v2793 = vpop.f32.mrb[0].mxu0
        %v2794 = vpop.f32.mrb[0].mxu0
        %v2795 = vadd.f32 0.0, %v2794
        %v2796 = vpop.f32.mrb[0].mxu0
        %2797 = vmatprep.mubr.bf16.mxu0 %v2563
        %2798 = vmatmul.mubr.bf16.gmra.mrb[0].mxu0 %v2562
        %v2799 = vpop.f32.mrb[0].mxu0
        %v2800 = vadd.f32 0.0, %v2799
        %v2801 = vpop.f32.mrb[0].mxu0
        %v2802 = vpop.f32.mrb[0].mxu0
        %v2803 = vadd.f32 0.0, %v2802
        %v2804 = vpop.f32.mrb[0].mxu0
        %2805 = vmatprep.mubr.bf16.mxu0 %v2565
        %2806 = vmatmul.mubr.bf16.gmra.mrb[0].mxu0 %v2564
        %v2807 = vpop.f32.mrb[0].mxu0
        %v2808 = vadd.f32 0.0, %v2807
        %v2809 = vpop.f32.mrb[0].mxu0
        %v2810 = vpop.f32.mrb[0].mxu0
        %v2811 = vadd.f32 0.0, %v2810
        %v2812 = vpop.f32.mrb[0].mxu0
        %2813 = vmatprep.mubr.bf16.mxu0 %v2567
        %2814 = vmatmul.mubr.bf16.gmra.mrb[0].mxu0 %v2566
        %v2815 = vpop.f32.mrb[0].mxu0
        %v2816 = vadd.f32 0.0, %v2815
        %v2817 = vpop.f32.mrb[0].mxu0
        %v2818 = vpop.f32.mrb[0].mxu0
        %v2819 = vadd.f32 0.0, %v2818
        %v2820 = vpop.f32.mrb[0].mxu0
        %2821 = vmatprep.mubr.bf16.mxu0 %v2569
        %2822 = vmatmul.mubr.bf16.gmra.mrb[0].mxu0 %v2568
        %v2823 = vpop.f32.mrb[0].mxu0
        %v2824 = vadd.f32 0.0, %v2823
        %v2825 = vpop.f32.mrb[0].mxu0
        %v2826 = vpop.f32.mrb[0].mxu0
        %v2827 = vadd.f32 0.0, %v2826
        %v2828 = vpop.f32.mrb[0].mxu0
        %2829 = vmatprep.mubr.bf16.mxu0 %v2571
        %2830 = vmatmul.mubr.bf16.gmra.mrb[0].mxu0 %v2570
        %v2831 = vpop.f32.mrb[0].mxu0
        %v2832 = vadd.f32 0.0, %v2831
        %v2833 = vpop.f32.mrb[0].mxu0
        %v2834 = vpop.f32.mrb[0].mxu0
        %v2835 = vadd.f32 0.0, %v2834
        %v2836 = vpop.f32.mrb[0].mxu0
        %2837 = vmatprep.mubr.bf16.mxu0 %v2573
        %2838 = vmatmul.mubr.bf16.gmra.mrb[0].mxu0 %v2572
        %v2839 = vpop.f32.mrb[0].mxu0
        %v2840 = vadd.f32 0.0, %v2839
        %v2841 = vpop.f32.mrb[0].mxu0
        %v2842 = vpop.f32.mrb[0].mxu0
        %v2843 = vadd.f32 0.0, %v2842
        %v2844 = vpop.f32.mrb[0].mxu0
        %2845 = vmatprep.mubr.bf16.mxu0 %v2575
        %2846 = vmatmul.mubr.bf16.gmra.mrb[0].mxu0 %v2574
        %v2847 = vpop.f32.mrb[0].mxu0
        %v2848 = vadd.f32 0.0, %v2847
        %v2849 = vpop.f32.mrb[0].mxu0
        %v2850 = vpop.f32.mrb[0].mxu0
        %v2851 = vadd.f32 0.0, %v2850
        %v2852 = vpop.f32.mrb[0].mxu0
        %2853 = vmatprep.mubr.bf16.mxu0 %v2577
        %2854 = vmatmul.mubr.bf16.gmra.mrb[0].mxu0 %v2576
        %v2855 = vpop.f32.mrb[0].mxu0
        %v2856 = vadd.f32 0.0, %v2855
        %v2857 = vpop.f32.mrb[0].mxu0
        %v2858 = vpop.f32.mrb[0].mxu0
        %v2859 = vadd.f32 0.0, %v2858
        %v2860 = vpop.f32.mrb[0].mxu0
        %2861 = vmatprep.mubr.bf16.mxu0 %v2579
        %2862 = vmatmul.mubr.bf16.gmra.mrb[0].mxu0 %v2578
        %v2863 = vpop.f32.mrb[0].mxu0
        %v2864 = vadd.f32 0.0, %v2863
        %v2865 = vpop.f32.mrb[0].mxu0
        %v2866 = vpop.f32.mrb[0].mxu0
        %v2867 = vadd.f32 0.0, %v2866
        %v2868 = vpop.f32.mrb[0].mxu0
        %2869 = vdwg.mxu0
        %v2870 = vadd.f32 %v2516, %v2744
        %v2871 = vadd.f32 %v2517, %v2747
        %v2872 = vadd.f32 %v2518, %v2752
        %v2873 = vadd.f32 %v2519, %v2755
        %v2874 = vadd.f32 %v2520, %v2760
        %v2875 = vadd.f32 %v2521, %v2763
        %v2876 = vadd.f32 %v2522, %v2768
        %v2877 = vadd.f32 %v2523, %v2771
        %v2878 = vadd.f32 %v2524, %v2776
        %v2879 = vadd.f32 %v2525, %v2779
        %v2880 = vadd.f32 %v2526, %v2784
        %v2881 = vadd.f32 %v2527, %v2787
        %v2882 = vadd.f32 %v2528, %v2792
        %v2883 = vadd.f32 %v2529, %v2795
        %v2884 = vadd.f32 %v2530, %v2800
        %v2885 = vadd.f32 %v2531, %v2803
        %v2886 = vadd.f32 %v2532, %v2808
        %v2887 = vadd.f32 %v2533, %v2811
        %v2888 = vadd.f32 %v2534, %v2816
        %v2889 = vadd.f32 %v2535, %v2819
        %v2890 = vadd.f32 %v2536, %v2824
        %v2891 = vadd.f32 %v2537, %v2827
        %v2892 = vadd.f32 %v2538, %v2832
        %v2893 = vadd.f32 %v2539, %v2835
        %v2894 = vadd.f32 %v2540, %v2840
        %v2895 = vadd.f32 %v2541, %v2843
        %v2896 = vadd.f32 %v2542, %v2848
        %v2897 = vadd.f32 %v2543, %v2851
        %v2898 = vadd.f32 %v2544, %v2856
        %v2899 = vadd.f32 %v2545, %v2859
        %v2900 = vadd.f32 %v2546, %v2864
        %v2901 = vadd.f32 %v2547, %v2867
        %v2902 = vld [vmem:[#allocation2 + $0xc0] sm:$0xff]
        %v2903 = vld [vmem:[#allocation2 + $0xc8] sm:$0xff]
        %v2904 = vld [vmem:[#allocation2 + $0xd0] sm:$0xff]
        %v2905 = vld [vmem:[#allocation2 + $0xd8] sm:$0xff]
        %v2906 = vld [vmem:[#allocation2 + $0xe0] sm:$0xff]
        %v2907 = vld [vmem:[#allocation2 + $0xe8] sm:$0xff]
        %v2908 = vld [vmem:[#allocation2 + $0xf0] sm:$0xff]
        %v2909 = vld [vmem:[#allocation2 + $0xf8] sm:$0xff]
        %v2910 = vld [vmem:[#allocation2 + $0x100] sm:$0xff]
        %v2911 = vld [vmem:[#allocation2 + $0x108] sm:$0xff]
        %v2912 = vld [vmem:[#allocation2 + $0x110] sm:$0xff]
        %v2913 = vld [vmem:[#allocation2 + $0x118] sm:$0xff]
        %v2914 = vld [vmem:[#allocation2 + $0x120] sm:$0xff]
        %v2915 = vld [vmem:[#allocation2 + $0x128] sm:$0xff]
        %v2916 = vld [vmem:[#allocation2 + $0x130] sm:$0xff]
        %v2917 = vld [vmem:[#allocation2 + $0x138] sm:$0xff]
        %v2918 = vld [vmem:[#allocation2 + $0x140] sm:$0xff]
        %v2919 = vld [vmem:[#allocation2 + $0x148] sm:$0xff]
        %v2920 = vld [vmem:[#allocation2 + $0x150] sm:$0xff]
        %v2921 = vld [vmem:[#allocation2 + $0x158] sm:$0xff]
        %v2922 = vld [vmem:[#allocation2 + $0x160] sm:$0xff]
        %v2923 = vld [vmem:[#allocation2 + $0x168] sm:$0xff]
        %v2924 = vld [vmem:[#allocation2 + $0x170] sm:$0xff]
        %v2925 = vld [vmem:[#allocation2 + $0x178] sm:$0xff]
        %v2926 = vld [vmem:[#allocation2 + $0x180] sm:$0xff]
        %v2927 = vld [vmem:[#allocation2 + $0x188] sm:$0xff]
        %v2928 = vld [vmem:[#allocation2 + $0x190] sm:$0xff]
        %v2929 = vld [vmem:[#allocation2 + $0x198] sm:$0xff]
        %v2930 = vld [vmem:[#allocation2 + $0x1a0] sm:$0xff]
        %v2931 = vld [vmem:[#allocation2 + $0x1a8] sm:$0xff]
        %v2932 = vld [vmem:[#allocation2 + $0x1b0] sm:$0xff]
        %v2933 = vld [vmem:[#allocation2 + $0x1b8] sm:$0xff]
        %s2934 = scalar_lea.vmem [#allocation9], 768
        %v2935 = vld [vmem:[%s2934] sm:$0xf]
        %v2936 = vld [vmem:[%s2934 + $0x4] sm:$0xf]
        %v2937 = vld [vmem:[%s2934 + $0x8] sm:$0xf]
        %v2938 = vld [vmem:[%s2934 + $0xc] sm:$0xf]
        %v2939 = vld [vmem:[%s2934 + $0x10] sm:$0xf]
        %v2940 = vld [vmem:[%s2934 + $0x14] sm:$0xf]
        %v2941 = vld [vmem:[%s2934 + $0x18] sm:$0xf]
        %v2942 = vld [vmem:[%s2934 + $0x1c] sm:$0xf]
        %v2943 = vld [vmem:[%s2934 + $0x20] sm:$0xf]
        %v2944 = vld [vmem:[%s2934 + $0x24] sm:$0xf]
        %v2945 = vld [vmem:[%s2934 + $0x28] sm:$0xf]
        %v2946 = vld [vmem:[%s2934 + $0x2c] sm:$0xf]
        %v2947 = vld [vmem:[%s2934 + $0x30] sm:$0xf]
        %v2948 = vld [vmem:[%s2934 + $0x34] sm:$0xf]
        %v2949 = vld [vmem:[%s2934 + $0x38] sm:$0xf]
        %v2950 = vld [vmem:[%s2934 + $0x3c] sm:$0xf]
        %v2951 = vld [vmem:[%s2934 + $0x40] sm:$0xf]
        %v2952 = vld [vmem:[%s2934 + $0x44] sm:$0xf]
        %v2953 = vld [vmem:[%s2934 + $0x48] sm:$0xf]
        %v2954 = vld [vmem:[%s2934 + $0x4c] sm:$0xf]
        %v2955 = vld [vmem:[%s2934 + $0x50] sm:$0xf]
        %v2956 = vld [vmem:[%s2934 + $0x54] sm:$0xf]
        %v2957 = vld [vmem:[%s2934 + $0x58] sm:$0xf]
        %v2958 = vld [vmem:[%s2934 + $0x5c] sm:$0xf]
        %v2959 = vld [vmem:[%s2934 + $0x60] sm:$0xf]
        %v2960 = vld [vmem:[%s2934 + $0x64] sm:$0xf]
        %v2961 = vld [vmem:[%s2934 + $0x68] sm:$0xf]
        %v2962 = vld [vmem:[%s2934 + $0x6c] sm:$0xf]
        %v2963 = vld [vmem:[%s2934 + $0x70] sm:$0xf]
        %v2964 = vld [vmem:[%s2934 + $0x74] sm:$0xf]
        %v2965 = vld [vmem:[%s2934 + $0x78] sm:$0xf]
        %v2966 = vld [vmem:[%s2934 + $0x7c] sm:$0xf]
        %v2999 = vunpack.c.l.b16 %v2935
        %v3000 = vunpack.c.l.b16 %v2936
        %v3001 = vunpack.c.l.b16 %v2937
        %v3002 = vunpack.c.l.b16 %v2938
        %v3003 = vunpack.c.l.b16 %v2939
        %v3004 = vunpack.c.l.b16 %v2940
        %v3005 = vunpack.c.l.b16 %v2941
        %v3006 = vunpack.c.l.b16 %v2942
        %v3007 = vunpack.c.l.b16 %v2943
        %v3008 = vunpack.c.l.b16 %v2944
        %v3009 = vunpack.c.l.b16 %v2945
        %v3010 = vunpack.c.l.b16 %v2946
        %v3011 = vunpack.c.l.b16 %v2947
        %v3012 = vunpack.c.l.b16 %v2948
        %v3013 = vunpack.c.l.b16 %v2949
        %v3014 = vunpack.c.l.b16 %v2950
        %v3015 = vunpack.c.l.b16 %v2951
        %v3016 = vunpack.c.l.b16 %v2952
        %v3017 = vunpack.c.l.b16 %v2953
        %v3018 = vunpack.c.l.b16 %v2954
        %v3019 = vunpack.c.l.b16 %v2955
        %v3020 = vunpack.c.l.b16 %v2956
        %v3021 = vunpack.c.l.b16 %v2957
        %v3022 = vunpack.c.l.b16 %v2958
        %v3023 = vunpack.c.l.b16 %v2959
        %v3024 = vunpack.c.l.b16 %v2960
        %v3025 = vunpack.c.l.b16 %v2961
        %v3026 = vunpack.c.l.b16 %v2962
        %v3027 = vunpack.c.l.b16 %v2963
        %v3028 = vunpack.c.l.b16 %v2964
        %v3029 = vunpack.c.l.b16 %v2965
        %v3030 = vunpack.c.l.b16 %v2966
        %v3031 = vpack.c.b16 %v3000, %v2999
        %v3032 = vpack.c.b16 %v3002, %v3001
        %v3033 = vpack.c.b16 %v3004, %v3003
        %v3034 = vpack.c.b16 %v3006, %v3005
        %v3035 = vpack.c.b16 %v3008, %v3007
        %v3036 = vpack.c.b16 %v3010, %v3009
        %v3037 = vpack.c.b16 %v3012, %v3011
        %v3038 = vpack.c.b16 %v3014, %v3013
        %v3039 = vpack.c.b16 %v3016, %v3015
        %v3040 = vpack.c.b16 %v3018, %v3017
        %v3041 = vpack.c.b16 %v3020, %v3019
        %v3042 = vpack.c.b16 %v3022, %v3021
        %v3043 = vpack.c.b16 %v3024, %v3023
        %v3044 = vpack.c.b16 %v3026, %v3025
        %v3045 = vpack.c.b16 %v3028, %v3027
        %v3046 = vpack.c.b16 %v3030, %v3029
        %3063 = vmatprep.subr.bf16.mxu0 0
        %3064 = vmatpush1.bf16.msra.mxu0 %v3031
        %3065 = vmatprep.subr.bf16.mxu0 0
        %3066 = vmatpush1.bf16.msra.mxu0 %v3032
        %3067 = vmatprep.subr.bf16.mxu0 0
        %3068 = vmatpush1.bf16.msra.mxu0 %v3033
        %3069 = vmatprep.subr.bf16.mxu0 0
        %3070 = vmatpush1.bf16.msra.mxu0 %v3034
        %3071 = vmatprep.subr.bf16.mxu0 0
        %3072 = vmatpush1.bf16.msra.mxu0 %v3035
        %3073 = vmatprep.subr.bf16.mxu0 0
        %3074 = vmatpush1.bf16.msra.mxu0 %v3036
        %3075 = vmatprep.subr.bf16.mxu0 0
        %3076 = vmatpush1.bf16.msra.mxu0 %v3037
        %3077 = vmatprep.subr.bf16.mxu0 0
        %3078 = vmatpush1.bf16.msra.mxu0 %v3038
        %3079 = vmatprep.subr.bf16.mxu0 0
        %3080 = vmatpush1.bf16.msra.mxu0 %v3039
        %3081 = vmatprep.subr.bf16.mxu0 0
        %3082 = vmatpush1.bf16.msra.mxu0 %v3040
        %3083 = vmatprep.subr.bf16.mxu0 0
        %3084 = vmatpush1.bf16.msra.mxu0 %v3041
        %3085 = vmatprep.subr.bf16.mxu0 0
        %3086 = vmatpush1.bf16.msra.mxu0 %v3042
        %3087 = vmatprep.subr.bf16.mxu0 0
        %3088 = vmatpush1.bf16.msra.mxu0 %v3043
        %3089 = vmatprep.subr.bf16.mxu0 0
        %3090 = vmatpush1.bf16.msra.mxu0 %v3044
        %3091 = vmatprep.subr.bf16.mxu0 0
        %3092 = vmatpush1.bf16.msra.mxu0 %v3045
        %3093 = vmatprep.subr.bf16.mxu0 0
        %3094 = vmatpush1.bf16.msra.mxu0 %v3046
        %3095 = vmatprep.mubr.bf16.mxu0 %v2903
        %3096 = vmatmul.mubr.bf16.gmra.mrb[0].mxu0 %v2902
        %v3097 = vpop.f32.mrb[0].mxu0
        %v3098 = vadd.f32 0.0, %v3097
        %v3099 = vpop.f32.mrb[0].mxu0
        %v3100 = vpop.f32.mrb[0].mxu0
        %v3101 = vadd.f32 0.0, %v3100
        %v3102 = vpop.f32.mrb[0].mxu0
        %3103 = vmatprep.mubr.bf16.mxu0 %v2905
        %3104 = vmatmul.mubr.bf16.gmra.mrb[0].mxu0 %v2904
        %v3105 = vpop.f32.mrb[0].mxu0
        %v3106 = vadd.f32 0.0, %v3105
        %v3107 = vpop.f32.mrb[0].mxu0
        %v3108 = vpop.f32.mrb[0].mxu0
        %v3109 = vadd.f32 0.0, %v3108
        %v3110 = vpop.f32.mrb[0].mxu0
        %3111 = vmatprep.mubr.bf16.mxu0 %v2907
        %3112 = vmatmul.mubr.bf16.gmra.mrb[0].mxu0 %v2906
        %v3113 = vpop.f32.mrb[0].mxu0
        %v3114 = vadd.f32 0.0, %v3113
        %v3115 = vpop.f32.mrb[0].mxu0
        %v3116 = vpop.f32.mrb[0].mxu0
        %v3117 = vadd.f32 0.0, %v3116
        %v3118 = vpop.f32.mrb[0].mxu0
        %3119 = vmatprep.mubr.bf16.mxu0 %v2909
        %3120 = vmatmul.mubr.bf16.gmra.mrb[0].mxu0 %v2908
        %v3121 = vpop.f32.mrb[0].mxu0
        %v3122 = vadd.f32 0.0, %v3121
        %v3123 = vpop.f32.mrb[0].mxu0
        %v3124 = vpop.f32.mrb[0].mxu0
        %v3125 = vadd.f32 0.0, %v3124
        %v3126 = vpop.f32.mrb[0].mxu0
        %3127 = vmatprep.mubr.bf16.mxu0 %v2911
        %3128 = vmatmul.mubr.bf16.gmra.mrb[0].mxu0 %v2910
        %v3129 = vpop.f32.mrb[0].mxu0
        %v3130 = vadd.f32 0.0, %v3129
        %v3131 = vpop.f32.mrb[0].mxu0
        %v3132 = vpop.f32.mrb[0].mxu0
        %v3133 = vadd.f32 0.0, %v3132
        %v3134 = vpop.f32.mrb[0].mxu0
        %3135 = vmatprep.mubr.bf16.mxu0 %v2913
        %3136 = vmatmul.mubr.bf16.gmra.mrb[0].mxu0 %v2912
        %v3137 = vpop.f32.mrb[0].mxu0
        %v3138 = vadd.f32 0.0, %v3137
        %v3139 = vpop.f32.mrb[0].mxu0
        %v3140 = vpop.f32.mrb[0].mxu0
        %v3141 = vadd.f32 0.0, %v3140
        %v3142 = vpop.f32.mrb[0].mxu0
        %3143 = vmatprep.mubr.bf16.mxu0 %v2915
        %3144 = vmatmul.mubr.bf16.gmra.mrb[0].mxu0 %v2914
        %v3145 = vpop.f32.mrb[0].mxu0
        %v3146 = vadd.f32 0.0, %v3145
        %v3147 = vpop.f32.mrb[0].mxu0
        %v3148 = vpop.f32.mrb[0].mxu0
        %v3149 = vadd.f32 0.0, %v3148
        %v3150 = vpop.f32.mrb[0].mxu0
        %3151 = vmatprep.mubr.bf16.mxu0 %v2917
        %3152 = vmatmul.mubr.bf16.gmra.mrb[0].mxu0 %v2916
        %v3153 = vpop.f32.mrb[0].mxu0
        %v3154 = vadd.f32 0.0, %v3153
        %v3155 = vpop.f32.mrb[0].mxu0
        %v3156 = vpop.f32.mrb[0].mxu0
        %v3157 = vadd.f32 0.0, %v3156
        %v3158 = vpop.f32.mrb[0].mxu0
        %3159 = vmatprep.mubr.bf16.mxu0 %v2919
        %3160 = vmatmul.mubr.bf16.gmra.mrb[0].mxu0 %v2918
        %v3161 = vpop.f32.mrb[0].mxu0
        %v3162 = vadd.f32 0.0, %v3161
        %v3163 = vpop.f32.mrb[0].mxu0
        %v3164 = vpop.f32.mrb[0].mxu0
        %v3165 = vadd.f32 0.0, %v3164
        %v3166 = vpop.f32.mrb[0].mxu0
        %3167 = vmatprep.mubr.bf16.mxu0 %v2921
        %3168 = vmatmul.mubr.bf16.gmra.mrb[0].mxu0 %v2920
        %v3169 = vpop.f32.mrb[0].mxu0
        %v3170 = vadd.f32 0.0, %v3169
        %v3171 = vpop.f32.mrb[0].mxu0
        %v3172 = vpop.f32.mrb[0].mxu0
        %v3173 = vadd.f32 0.0, %v3172
        %v3174 = vpop.f32.mrb[0].mxu0
        %3175 = vmatprep.mubr.bf16.mxu0 %v2923
        %3176 = vmatmul.mubr.bf16.gmra.mrb[0].mxu0 %v2922
        %v3177 = vpop.f32.mrb[0].mxu0
        %v3178 = vadd.f32 0.0, %v3177
        %v3179 = vpop.f32.mrb[0].mxu0
        %v3180 = vpop.f32.mrb[0].mxu0
        %v3181 = vadd.f32 0.0, %v3180
        %v3182 = vpop.f32.mrb[0].mxu0
        %3183 = vmatprep.mubr.bf16.mxu0 %v2925
        %3184 = vmatmul.mubr.bf16.gmra.mrb[0].mxu0 %v2924
        %v3185 = vpop.f32.mrb[0].mxu0
        %v3186 = vadd.f32 0.0, %v3185
        %v3187 = vpop.f32.mrb[0].mxu0
        %v3188 = vpop.f32.mrb[0].mxu0
        %v3189 = vadd.f32 0.0, %v3188
        %v3190 = vpop.f32.mrb[0].mxu0
        %3191 = vmatprep.mubr.bf16.mxu0 %v2927
        %3192 = vmatmul.mubr.bf16.gmra.mrb[0].mxu0 %v2926
        %v3193 = vpop.f32.mrb[0].mxu0
        %v3194 = vadd.f32 0.0, %v3193
        %v3195 = vpop.f32.mrb[0].mxu0
        %v3196 = vpop.f32.mrb[0].mxu0
        %v3197 = vadd.f32 0.0, %v3196
        %v3198 = vpop.f32.mrb[0].mxu0
        %3199 = vmatprep.mubr.bf16.mxu0 %v2929
        %3200 = vmatmul.mubr.bf16.gmra.mrb[0].mxu0 %v2928
        %v3201 = vpop.f32.mrb[0].mxu0
        %v3202 = vadd.f32 0.0, %v3201
        %v3203 = vpop.f32.mrb[0].mxu0
        %v3204 = vpop.f32.mrb[0].mxu0
        %v3205 = vadd.f32 0.0, %v3204
        %v3206 = vpop.f32.mrb[0].mxu0
        %3207 = vmatprep.mubr.bf16.mxu0 %v2931
        %3208 = vmatmul.mubr.bf16.gmra.mrb[0].mxu0 %v2930
        %v3209 = vpop.f32.mrb[0].mxu0
        %v3210 = vadd.f32 0.0, %v3209
        %v3211 = vpop.f32.mrb[0].mxu0
        %v3212 = vpop.f32.mrb[0].mxu0
        %v3213 = vadd.f32 0.0, %v3212
        %v3214 = vpop.f32.mrb[0].mxu0
        %3215 = vmatprep.mubr.bf16.mxu0 %v2933
        %3216 = vmatmul.mubr.bf16.gmra.mrb[0].mxu0 %v2932
        %v3217 = vpop.f32.mrb[0].mxu0
        %v3218 = vadd.f32 0.0, %v3217
        %v3219 = vpop.f32.mrb[0].mxu0
        %v3220 = vpop.f32.mrb[0].mxu0
        %v3221 = vadd.f32 0.0, %v3220
        %v3222 = vpop.f32.mrb[0].mxu0
        %3223 = vdwg.mxu0
        %v3224 = vadd.f32 %v2870, %v3098
        %v3225 = vadd.f32 %v2871, %v3101
        %v3226 = vadd.f32 %v2872, %v3106
        %v3227 = vadd.f32 %v2873, %v3109
        %v3228 = vadd.f32 %v2874, %v3114
        %v3229 = vadd.f32 %v2875, %v3117
        %v3230 = vadd.f32 %v2876, %v3122
        %v3231 = vadd.f32 %v2877, %v3125
        %v3232 = vadd.f32 %v2878, %v3130
        %v3233 = vadd.f32 %v2879, %v3133
        %v3234 = vadd.f32 %v2880, %v3138
        %v3235 = vadd.f32 %v2881, %v3141
        %v3236 = vadd.f32 %v2882, %v3146
        %v3237 = vadd.f32 %v2883, %v3149
        %v3238 = vadd.f32 %v2884, %v3154
        %v3239 = vadd.f32 %v2885, %v3157
        %v3240 = vadd.f32 %v2886, %v3162
        %v3241 = vadd.f32 %v2887, %v3165
        %v3242 = vadd.f32 %v2888, %v3170
        %v3243 = vadd.f32 %v2889, %v3173
        %v3244 = vadd.f32 %v2890, %v3178
        %v3245 = vadd.f32 %v2891, %v3181
        %v3246 = vadd.f32 %v2892, %v3186
        %v3247 = vadd.f32 %v2893, %v3189
        %v3248 = vadd.f32 %v2894, %v3194
        %v3249 = vadd.f32 %v2895, %v3197
        %v3250 = vadd.f32 %v2896, %v3202
        %v3251 = vadd.f32 %v2897, %v3205
        %v3252 = vadd.f32 %v2898, %v3210
        %v3253 = vadd.f32 %v2899, %v3213
        %v3254 = vadd.f32 %v2900, %v3218
        %v3255 = vadd.f32 %v2901, %v3221
        %v3256 = vld [vmem:[#allocation2 + $0xe0] sm:$0xff]
        %v3257 = vld [vmem:[#allocation2 + $0xf0] sm:$0xff]
        %v3258 = vld [vmem:[#allocation2 + $0x100] sm:$0xff]
        %v3259 = vld [vmem:[#allocation2 + $0x110] sm:$0xff]
        %v3260 = vld [vmem:[#allocation2 + $0x120] sm:$0xff]
        %v3261 = vld [vmem:[#allocation2 + $0x130] sm:$0xff]
        %v3262 = vld [vmem:[#allocation2 + $0x140] sm:$0xff]
        %v3263 = vld [vmem:[#allocation2 + $0x150] sm:$0xff]
        %v3264 = vld [vmem:[#allocation2 + $0x160] sm:$0xff]
        %v3265 = vld [vmem:[#allocation2 + $0x170] sm:$0xff]
        %v3266 = vld [vmem:[#allocation2 + $0x180] sm:$0xff]
        %v3267 = vld [vmem:[#allocation2 + $0x190] sm:$0xff]
        %v3268 = vld [vmem:[#allocation2 + $0x1a0] sm:$0xff]
        %v3269 = vld [vmem:[#allocation2 + $0x1b0] sm:$0xff]
        %v3270 = vld [vmem:[#allocation2 + $0x1c0] sm:$0xff]
        %v3271 = vld [vmem:[#allocation2 + $0x1d0] sm:$0xff]
        %v3272 = vld [vmem:[#allocation11] sm:$0xf]
        %v3273 = vld [vmem:[#allocation11 + $0x4] sm:$0xf]
        %v3274 = vld [vmem:[#allocation11 + $0x8] sm:$0xf]
        %v3275 = vld [vmem:[#allocation11 + $0xc] sm:$0xf]
        %v3276 = vld [vmem:[#allocation11 + $0x10] sm:$0xf]
        %v3277 = vld [vmem:[#allocation11 + $0x14] sm:$0xf]
        %v3278 = vld [vmem:[#allocation11 + $0x18] sm:$0xf]
        %v3279 = vld [vmem:[#allocation11 + $0x1c] sm:$0xf]
        %v3280 = vld [vmem:[#allocation11 + $0x20] sm:$0xf]
        %v3281 = vld [vmem:[#allocation11 + $0x24] sm:$0xf]
        %v3282 = vld [vmem:[#allocation11 + $0x28] sm:$0xf]
        %v3283 = vld [vmem:[#allocation11 + $0x2c] sm:$0xf]
        %v3284 = vld [vmem:[#allocation11 + $0x30] sm:$0xf]
        %v3285 = vld [vmem:[#allocation11 + $0x34] sm:$0xf]
        %v3286 = vld [vmem:[#allocation11 + $0x38] sm:$0xf]
        %v3287 = vld [vmem:[#allocation11 + $0x3c] sm:$0xf]
        %v3304 = vunpack.c.l.b16 %v3272
        %v3305 = vunpack.c.l.b16 %v3273
        %v3306 = vunpack.c.l.b16 %v3274
        %v3307 = vunpack.c.l.b16 %v3275
        %v3308 = vunpack.c.l.b16 %v3276
        %v3309 = vunpack.c.l.b16 %v3277
        %v3310 = vunpack.c.l.b16 %v3278
        %v3311 = vunpack.c.l.b16 %v3279
        %v3312 = vunpack.c.l.b16 %v3280
        %v3313 = vunpack.c.l.b16 %v3281
        %v3314 = vunpack.c.l.b16 %v3282
        %v3315 = vunpack.c.l.b16 %v3283
        %v3316 = vunpack.c.l.b16 %v3284
        %v3317 = vunpack.c.l.b16 %v3285
        %v3318 = vunpack.c.l.b16 %v3286
        %v3319 = vunpack.c.l.b16 %v3287
        %v3320 = vpack.c.b16 %v3305, %v3304
        %v3321 = vpack.c.b16 %v3307, %v3306
        %v3322 = vpack.c.b16 %v3309, %v3308
        %v3323 = vpack.c.b16 %v3311, %v3310
        %v3324 = vpack.c.b16 %v3313, %v3312
        %v3325 = vpack.c.b16 %v3315, %v3314
        %v3326 = vpack.c.b16 %v3317, %v3316
        %v3327 = vpack.c.b16 %v3319, %v3318
        %3336 = vmatprep.subr.bf16.mxu0 0
        %3337 = vmatpush1.bf16.msra.mxu0 %v3320
        %3338 = vmatprep.subr.bf16.mxu0 0
        %3339 = vmatpush1.bf16.msra.mxu0 %v3321
        %3340 = vmatprep.subr.bf16.mxu0 0
        %3341 = vmatpush1.bf16.msra.mxu0 %v3322
        %3342 = vmatprep.subr.bf16.mxu0 0
        %3343 = vmatpush1.bf16.msra.mxu0 %v3323
        %3344 = vmatprep.subr.bf16.mxu0 0
        %3345 = vmatpush1.bf16.msra.mxu0 %v3324
        %3346 = vmatprep.subr.bf16.mxu0 0
        %3347 = vmatpush1.bf16.msra.mxu0 %v3325
        %3348 = vmatprep.subr.bf16.mxu0 0
        %3349 = vmatpush1.bf16.msra.mxu0 %v3326
        %3350 = vmatprep.subr.bf16.mxu0 0
        %3351 = vmatpush1.bf16.msra.mxu0 %v3327
        %3352 = vmatprep.subr.bf16.mxu0 0
        %3353 = vmatpush1.bf16.msra.mxu0 0
        %3354 = vmatprep.subr.bf16.mxu0 0
        %3355 = vmatpush1.bf16.msra.mxu0 0
        %3356 = vmatprep.subr.bf16.mxu0 0
        %3357 = vmatpush1.bf16.msra.mxu0 0
        %3358 = vmatprep.subr.bf16.mxu0 0
        %3359 = vmatpush1.bf16.msra.mxu0 0
        %3360 = vmatprep.subr.bf16.mxu0 0
        %3361 = vmatpush1.bf16.msra.mxu0 0
        %3362 = vmatprep.subr.bf16.mxu0 0
        %3363 = vmatpush1.bf16.msra.mxu0 0
        %3364 = vmatprep.subr.bf16.mxu0 0
        %3365 = vmatpush1.bf16.msra.mxu0 0
        %3366 = vmatprep.subr.bf16.mxu0 0
        %3367 = vmatpush1.bf16.msra.mxu0 0
        %3368 = vmatprep.mubr.bf16.mxu0 0
        %3369 = vmatmul.mubr.bf16.gmra.mrb[0].mxu0 %v3256
        %v3370 = vpop.f32.mrb[0].mxu0
        %v3371 = vadd.f32 0.0, %v3370
        %v3372 = vpop.f32.mrb[0].mxu0
        %v3373 = vpop.f32.mrb[0].mxu0
        %v3374 = vadd.f32 0.0, %v3373
        %v3375 = vpop.f32.mrb[0].mxu0
        %3376 = vmatprep.mubr.bf16.mxu0 0
        %3377 = vmatmul.mubr.bf16.gmra.mrb[0].mxu0 %v3257
        %v3378 = vpop.f32.mrb[0].mxu0
        %v3379 = vadd.f32 0.0, %v3378
        %v3380 = vpop.f32.mrb[0].mxu0
        %v3381 = vpop.f32.mrb[0].mxu0
        %v3382 = vadd.f32 0.0, %v3381
        %v3383 = vpop.f32.mrb[0].mxu0
        %3384 = vmatprep.mubr.bf16.mxu0 0
        %3385 = vmatmul.mubr.bf16.gmra.mrb[0].mxu0 %v3258
        %v3386 = vpop.f32.mrb[0].mxu0
        %v3387 = vadd.f32 0.0, %v3386
        %v3388 = vpop.f32.mrb[0].mxu0
        %v3389 = vpop.f32.mrb[0].mxu0
        %v3390 = vadd.f32 0.0, %v3389
        %v3391 = vpop.f32.mrb[0].mxu0
        %3392 = vmatprep.mubr.bf16.mxu0 0
        %3393 = vmatmul.mubr.bf16.gmra.mrb[0].mxu0 %v3259
        %v3394 = vpop.f32.mrb[0].mxu0
        %v3395 = vadd.f32 0.0, %v3394
        %v3396 = vpop.f32.mrb[0].mxu0
        %v3397 = vpop.f32.mrb[0].mxu0
        %v3398 = vadd.f32 0.0, %v3397
        %v3399 = vpop.f32.mrb[0].mxu0
        %3400 = vmatprep.mubr.bf16.mxu0 0
        %3401 = vmatmul.mubr.bf16.gmra.mrb[0].mxu0 %v3260
        %v3402 = vpop.f32.mrb[0].mxu0
        %v3403 = vadd.f32 0.0, %v3402
        %v3404 = vpop.f32.mrb[0].mxu0
        %v3405 = vpop.f32.mrb[0].mxu0
        %v3406 = vadd.f32 0.0, %v3405
        %v3407 = vpop.f32.mrb[0].mxu0
        %3408 = vmatprep.mubr.bf16.mxu0 0
        %3409 = vmatmul.mubr.bf16.gmra.mrb[0].mxu0 %v3261
        %v3410 = vpop.f32.mrb[0].mxu0
        %v3411 = vadd.f32 0.0, %v3410
        %v3412 = vpop.f32.mrb[0].mxu0
        %v3413 = vpop.f32.mrb[0].mxu0
        %v3414 = vadd.f32 0.0, %v3413
        %v3415 = vpop.f32.mrb[0].mxu0
        %3416 = vmatprep.mubr.bf16.mxu0 0
        %3417 = vmatmul.mubr.bf16.gmra.mrb[0].mxu0 %v3262
        %v3418 = vpop.f32.mrb[0].mxu0
        %v3419 = vadd.f32 0.0, %v3418
        %v3420 = vpop.f32.mrb[0].mxu0
        %v3421 = vpop.f32.mrb[0].mxu0
        %v3422 = vadd.f32 0.0, %v3421
        %v3423 = vpop.f32.mrb[0].mxu0
        %3424 = vmatprep.mubr.bf16.mxu0 0
        %3425 = vmatmul.mubr.bf16.gmra.mrb[0].mxu0 %v3263
        %v3426 = vpop.f32.mrb[0].mxu0
        %v3427 = vadd.f32 0.0, %v3426
        %v3428 = vpop.f32.mrb[0].mxu0
        %v3429 = vpop.f32.mrb[0].mxu0
        %v3430 = vadd.f32 0.0, %v3429
        %v3431 = vpop.f32.mrb[0].mxu0
        %3432 = vmatprep.mubr.bf16.mxu0 0
        %3433 = vmatmul.mubr.bf16.gmra.mrb[0].mxu0 %v3264
        %v3434 = vpop.f32.mrb[0].mxu0
        %v3435 = vadd.f32 0.0, %v3434
        %v3436 = vpop.f32.mrb[0].mxu0
        %v3437 = vpop.f32.mrb[0].mxu0
        %v3438 = vadd.f32 0.0, %v3437
        %v3439 = vpop.f32.mrb[0].mxu0
        %3440 = vmatprep.mubr.bf16.mxu0 0
        %3441 = vmatmul.mubr.bf16.gmra.mrb[0].mxu0 %v3265
        %v3442 = vpop.f32.mrb[0].mxu0
        %v3443 = vadd.f32 0.0, %v3442
        %v3444 = vpop.f32.mrb[0].mxu0
        %v3445 = vpop.f32.mrb[0].mxu0
        %v3446 = vadd.f32 0.0, %v3445
        %v3447 = vpop.f32.mrb[0].mxu0
        %3448 = vmatprep.mubr.bf16.mxu0 0
        %3449 = vmatmul.mubr.bf16.gmra.mrb[0].mxu0 %v3266
        %v3450 = vpop.f32.mrb[0].mxu0
        %v3451 = vadd.f32 0.0, %v3450
        %v3452 = vpop.f32.mrb[0].mxu0
        %v3453 = vpop.f32.mrb[0].mxu0
        %v3454 = vadd.f32 0.0, %v3453
        %v3455 = vpop.f32.mrb[0].mxu0
        %3456 = vmatprep.mubr.bf16.mxu0 0
        %3457 = vmatmul.mubr.bf16.gmra.mrb[0].mxu0 %v3267
        %v3458 = vpop.f32.mrb[0].mxu0
        %v3459 = vadd.f32 0.0, %v3458
        %v3460 = vpop.f32.mrb[0].mxu0
        %v3461 = vpop.f32.mrb[0].mxu0
        %v3462 = vadd.f32 0.0, %v3461
        %v3463 = vpop.f32.mrb[0].mxu0
        %3464 = vmatprep.mubr.bf16.mxu0 0
        %3465 = vmatmul.mubr.bf16.gmra.mrb[0].mxu0 %v3268
        %v3466 = vpop.f32.mrb[0].mxu0
        %v3467 = vadd.f32 0.0, %v3466
        %v3468 = vpop.f32.mrb[0].mxu0
        %v3469 = vpop.f32.mrb[0].mxu0
        %v3470 = vadd.f32 0.0, %v3469
        %v3471 = vpop.f32.mrb[0].mxu0
        %3472 = vmatprep.mubr.bf16.mxu0 0
        %3473 = vmatmul.mubr.bf16.gmra.mrb[0].mxu0 %v3269
        %v3474 = vpop.f32.mrb[0].mxu0
        %v3475 = vadd.f32 0.0, %v3474
        %v3476 = vpop.f32.mrb[0].mxu0
        %v3477 = vpop.f32.mrb[0].mxu0
        %v3478 = vadd.f32 0.0, %v3477
        %v3479 = vpop.f32.mrb[0].mxu0
        %3480 = vmatprep.mubr.bf16.mxu0 0
        %3481 = vmatmul.mubr.bf16.gmra.mrb[0].mxu0 %v3270
        %v3482 = vpop.f32.mrb[0].mxu0
        %v3483 = vadd.f32 0.0, %v3482
        %v3484 = vpop.f32.mrb[0].mxu0
        %v3485 = vpop.f32.mrb[0].mxu0
        %v3486 = vadd.f32 0.0, %v3485
        %v3487 = vpop.f32.mrb[0].mxu0
        %3488 = vmatprep.mubr.bf16.mxu0 0
        %3489 = vmatmul.mubr.bf16.gmra.mrb[0].mxu0 %v3271
        %v3490 = vpop.f32.mrb[0].mxu0
        %v3491 = vadd.f32 0.0, %v3490
        %v3492 = vpop.f32.mrb[0].mxu0
        %v3493 = vpop.f32.mrb[0].mxu0
        %v3494 = vadd.f32 0.0, %v3493
        %v3495 = vpop.f32.mrb[0].mxu0
        %3496 = vdwg.mxu0
        %v3497 = vadd.f32 %v3224, %v3371
        %v3498 = vadd.f32 %v3225, %v3374
        %v3499 = vadd.f32 %v3226, %v3379
        %v3500 = vadd.f32 %v3227, %v3382
        %v3501 = vadd.f32 %v3228, %v3387
        %v3502 = vadd.f32 %v3229, %v3390
        %v3503 = vadd.f32 %v3230, %v3395
        %v3504 = vadd.f32 %v3231, %v3398
        %v3505 = vadd.f32 %v3232, %v3403
        %v3506 = vadd.f32 %v3233, %v3406
        %v3507 = vadd.f32 %v3234, %v3411
        %v3508 = vadd.f32 %v3235, %v3414
        %v3509 = vadd.f32 %v3236, %v3419
        %v3510 = vadd.f32 %v3237, %v3422
        %v3511 = vadd.f32 %v3238, %v3427
        %v3512 = vadd.f32 %v3239, %v3430
        %v3513 = vadd.f32 %v3240, %v3435
        %v3514 = vadd.f32 %v3241, %v3438
        %v3515 = vadd.f32 %v3242, %v3443
        %v3516 = vadd.f32 %v3243, %v3446
        %v3517 = vadd.f32 %v3244, %v3451
        %v3518 = vadd.f32 %v3245, %v3454
        %v3519 = vadd.f32 %v3246, %v3459
        %v3520 = vadd.f32 %v3247, %v3462
        %v3521 = vadd.f32 %v3248, %v3467
        %v3522 = vadd.f32 %v3249, %v3470
        %v3523 = vadd.f32 %v3250, %v3475
        %v3524 = vadd.f32 %v3251, %v3478
        %v3525 = vadd.f32 %v3252, %v3483
        %v3526 = vadd.f32 %v3253, %v3486
        %v3527 = vadd.f32 %v3254, %v3491
        %v3528 = vadd.f32 %v3255, %v3494
        %v3529 = vld [vmem:[#allocation12] sm:$0x1]
        %v3531 = vlaneseq
        %v3532 = vshrl.u32 %v3531, 7
        %v3533 = vsub.s32 0, %v3532
        %v3534 = vrot.slane %v3529, %v3533
        %v3536 = vadd.f32 %v3497, %v3534
        %v3537 = vadd.f32 %v3498, %v3534
        %v3538 = vadd.f32 %v3499, %v3534
        %v3539 = vadd.f32 %v3500, %v3534
        %v3540 = vadd.f32 %v3501, %v3534
        %v3541 = vadd.f32 %v3502, %v3534
        %v3542 = vadd.f32 %v3503, %v3534
        %v3543 = vadd.f32 %v3504, %v3534
        %v3544 = vadd.f32 %v3505, %v3534
        %v3545 = vadd.f32 %v3506, %v3534
        %v3546 = vadd.f32 %v3507, %v3534
        %v3547 = vadd.f32 %v3508, %v3534
        %v3548 = vadd.f32 %v3509, %v3534
        %v3549 = vadd.f32 %v3510, %v3534
        %v3550 = vadd.f32 %v3511, %v3534
        %v3551 = vadd.f32 %v3512, %v3534
        %v3552 = vadd.f32 %v3513, %v3534
        %v3553 = vadd.f32 %v3514, %v3534
        %v3554 = vadd.f32 %v3515, %v3534
        %v3555 = vadd.f32 %v3516, %v3534
        %v3556 = vadd.f32 %v3517, %v3534
        %v3557 = vadd.f32 %v3518, %v3534
        %v3558 = vadd.f32 %v3519, %v3534
        %v3559 = vadd.f32 %v3520, %v3534
        %v3560 = vadd.f32 %v3521, %v3534
        %v3561 = vadd.f32 %v3522, %v3534
        %v3562 = vadd.f32 %v3523, %v3534
        %v3563 = vadd.f32 %v3524, %v3534
        %v3564 = vadd.f32 %v3525, %v3534
        %v3565 = vadd.f32 %v3526, %v3534
        %v3566 = vadd.f32 %v3527, %v3534
        %v3567 = vadd.f32 %v3528, %v3534
        %v3568 = vmax.f32 %v3536, 0.0
        %v3569 = vmax.f32 %v3537, 0.0
        %v3570 = vmax.f32 %v3538, 0.0
        %v3571 = vmax.f32 %v3539, 0.0
        %v3572 = vmax.f32 %v3540, 0.0
        %v3573 = vmax.f32 %v3541, 0.0
        %v3574 = vmax.f32 %v3542, 0.0
        %v3575 = vmax.f32 %v3543, 0.0
        %v3576 = vmax.f32 %v3544, 0.0
        %v3577 = vmax.f32 %v3545, 0.0
        %v3578 = vmax.f32 %v3546, 0.0
        %v3579 = vmax.f32 %v3547, 0.0
        %v3580 = vmax.f32 %v3548, 0.0
        %v3581 = vmax.f32 %v3549, 0.0
        %v3582 = vmax.f32 %v3550, 0.0
        %v3583 = vmax.f32 %v3551, 0.0
        %v3584 = vmax.f32 %v3552, 0.0
        %v3585 = vmax.f32 %v3553, 0.0
        %v3586 = vmax.f32 %v3554, 0.0
        %v3587 = vmax.f32 %v3555, 0.0
        %v3588 = vmax.f32 %v3556, 0.0
        %v3589 = vmax.f32 %v3557, 0.0
        %v3590 = vmax.f32 %v3558, 0.0
        %v3591 = vmax.f32 %v3559, 0.0
        %v3592 = vmax.f32 %v3560, 0.0
        %v3593 = vmax.f32 %v3561, 0.0
        %v3594 = vmax.f32 %v3562, 0.0
        %v3595 = vmax.f32 %v3563, 0.0
        %v3596 = vmax.f32 %v3564, 0.0
        %v3597 = vmax.f32 %v3565, 0.0
        %v3598 = vmax.f32 %v3566, 0.0
        %v3599 = vmax.f32 %v3567, 0.0
        %v3600 = vld [vmem:[#allocation14] sm:$0x1]
        %v3602 = vlaneseq
        %v3603 = vshrl.u32 %v3602, 7
        %v3604 = vsub.s32 0, %v3603
        %v3605 = vrot.slane %v3600, %v3604
        %3606 = vrot.lane.b32.xlu0 %v3605, 16
        %v3607 = vpop.permute.xlu0 %3606
        %v3609 = vadd.f32 %v3497, %v3607
        %v3610 = vadd.f32 %v3498, %v3607
        %v3611 = vadd.f32 %v3499, %v3607
        %v3612 = vadd.f32 %v3500, %v3607
        %v3613 = vadd.f32 %v3501, %v3607
        %v3614 = vadd.f32 %v3502, %v3607
        %v3615 = vadd.f32 %v3503, %v3607
        %v3616 = vadd.f32 %v3504, %v3607
        %v3617 = vadd.f32 %v3505, %v3607
        %v3618 = vadd.f32 %v3506, %v3607
        %v3619 = vadd.f32 %v3507, %v3607
        %v3620 = vadd.f32 %v3508, %v3607
        %v3621 = vadd.f32 %v3509, %v3607
        %v3622 = vadd.f32 %v3510, %v3607
        %v3623 = vadd.f32 %v3511, %v3607
        %v3624 = vadd.f32 %v3512, %v3607
        %v3625 = vadd.f32 %v3513, %v3607
        %v3626 = vadd.f32 %v3514, %v3607
        %v3627 = vadd.f32 %v3515, %v3607
        %v3628 = vadd.f32 %v3516, %v3607
        %v3629 = vadd.f32 %v3517, %v3607
        %v3630 = vadd.f32 %v3518, %v3607
        %v3631 = vadd.f32 %v3519, %v3607
        %v3632 = vadd.f32 %v3520, %v3607
        %v3633 = vadd.f32 %v3521, %v3607
        %v3634 = vadd.f32 %v3522, %v3607
        %v3635 = vadd.f32 %v3523, %v3607
        %v3636 = vadd.f32 %v3524, %v3607
        %v3637 = vadd.f32 %v3525, %v3607
        %v3638 = vadd.f32 %v3526, %v3607
        %v3639 = vadd.f32 %v3527, %v3607
        %v3640 = vadd.f32 %v3528, %v3607
        %v3641 = vmax.f32 %v3609, 0.0
        %v3642 = vmax.f32 %v3610, 0.0
        %v3643 = vmax.f32 %v3611, 0.0
        %v3644 = vmax.f32 %v3612, 0.0
        %v3645 = vmax.f32 %v3613, 0.0
        %v3646 = vmax.f32 %v3614, 0.0
        %v3647 = vmax.f32 %v3615, 0.0
        %v3648 = vmax.f32 %v3616, 0.0
        %v3649 = vmax.f32 %v3617, 0.0
        %v3650 = vmax.f32 %v3618, 0.0
        %v3651 = vmax.f32 %v3619, 0.0
        %v3652 = vmax.f32 %v3620, 0.0
        %v3653 = vmax.f32 %v3621, 0.0
        %v3654 = vmax.f32 %v3622, 0.0
        %v3655 = vmax.f32 %v3623, 0.0
        %v3656 = vmax.f32 %v3624, 0.0
        %v3657 = vmax.f32 %v3625, 0.0
        %v3658 = vmax.f32 %v3626, 0.0
        %v3659 = vmax.f32 %v3627, 0.0
        %v3660 = vmax.f32 %v3628, 0.0
        %v3661 = vmax.f32 %v3629, 0.0
        %v3662 = vmax.f32 %v3630, 0.0
        %v3663 = vmax.f32 %v3631, 0.0
        %v3664 = vmax.f32 %v3632, 0.0
        %v3665 = vmax.f32 %v3633, 0.0
        %v3666 = vmax.f32 %v3634, 0.0
        %v3667 = vmax.f32 %v3635, 0.0
        %v3668 = vmax.f32 %v3636, 0.0
        %v3669 = vmax.f32 %v3637, 0.0
        %v3670 = vmax.f32 %v3638, 0.0
        %v3671 = vmax.f32 %v3639, 0.0
        %v3672 = vmax.f32 %v3640, 0.0
        %3705 = vrot.lane.b32.xlu0 %v3641, 112
        %v3706 = vpop.permute.xlu0 %3705
        %3707 = vrot.lane.b32.xlu0 %v3642, 112
        %v3708 = vpop.permute.xlu0 %3707
        %3709 = vrot.lane.b32.xlu0 %v3643, 112
        %v3710 = vpop.permute.xlu0 %3709
        %3711 = vrot.lane.b32.xlu0 %v3644, 112
        %v3712 = vpop.permute.xlu0 %3711
        %3713 = vrot.lane.b32.xlu0 %v3645, 112
        %v3714 = vpop.permute.xlu0 %3713
        %3715 = vrot.lane.b32.xlu0 %v3646, 112
        %v3716 = vpop.permute.xlu0 %3715
        %3717 = vrot.lane.b32.xlu0 %v3647, 112
        %v3718 = vpop.permute.xlu0 %3717
        %3719 = vrot.lane.b32.xlu0 %v3648, 112
        %v3720 = vpop.permute.xlu0 %3719
        %3721 = vrot.lane.b32.xlu0 %v3649, 112
        %v3722 = vpop.permute.xlu0 %3721
        %3723 = vrot.lane.b32.xlu0 %v3650, 112
        %v3724 = vpop.permute.xlu0 %3723
        %3725 = vrot.lane.b32.xlu0 %v3651, 112
        %v3726 = vpop.permute.xlu0 %3725
        %3727 = vrot.lane.b32.xlu0 %v3652, 112
        %v3728 = vpop.permute.xlu0 %3727
        %3729 = vrot.lane.b32.xlu0 %v3653, 112
        %v3730 = vpop.permute.xlu0 %3729
        %3731 = vrot.lane.b32.xlu0 %v3654, 112
        %v3732 = vpop.permute.xlu0 %3731
        %3733 = vrot.lane.b32.xlu0 %v3655, 112
        %v3734 = vpop.permute.xlu0 %3733
        %3735 = vrot.lane.b32.xlu0 %v3656, 112
        %v3736 = vpop.permute.xlu0 %3735
        %3737 = vrot.lane.b32.xlu0 %v3657, 112
        %v3738 = vpop.permute.xlu0 %3737
        %3739 = vrot.lane.b32.xlu0 %v3658, 112
        %v3740 = vpop.permute.xlu0 %3739
        %3741 = vrot.lane.b32.xlu0 %v3659, 112
        %v3742 = vpop.permute.xlu0 %3741
        %3743 = vrot.lane.b32.xlu0 %v3660, 112
        %v3744 = vpop.permute.xlu0 %3743
        %3745 = vrot.lane.b32.xlu0 %v3661, 112
        %v3746 = vpop.permute.xlu0 %3745
        %3747 = vrot.lane.b32.xlu0 %v3662, 112
        %v3748 = vpop.permute.xlu0 %3747
        %3749 = vrot.lane.b32.xlu0 %v3663, 112
        %v3750 = vpop.permute.xlu0 %3749
        %3751 = vrot.lane.b32.xlu0 %v3664, 112
        %v3752 = vpop.permute.xlu0 %3751
        %3753 = vrot.lane.b32.xlu0 %v3665, 112
        %v3754 = vpop.permute.xlu0 %3753
        %3755 = vrot.lane.b32.xlu0 %v3666, 112
        %v3756 = vpop.permute.xlu0 %3755
        %3757 = vrot.lane.b32.xlu0 %v3667, 112
        %v3758 = vpop.permute.xlu0 %3757
        %3759 = vrot.lane.b32.xlu0 %v3668, 112
        %v3760 = vpop.permute.xlu0 %3759
        %3761 = vrot.lane.b32.xlu0 %v3669, 112
        %v3762 = vpop.permute.xlu0 %3761
        %3763 = vrot.lane.b32.xlu0 %v3670, 112
        %v3764 = vpop.permute.xlu0 %3763
        %3765 = vrot.lane.b32.xlu0 %v3671, 112
        %v3766 = vpop.permute.xlu0 %3765
        %3767 = vrot.lane.b32.xlu0 %v3672, 112
        %v3768 = vpop.permute.xlu0 %3767
        %v3801 = vadd.f32 %v3568, %v3706
        %v3802 = vadd.f32 %v3569, %v3708
        %v3803 = vadd.f32 %v3570, %v3710
        %v3804 = vadd.f32 %v3571, %v3712
        %v3805 = vadd.f32 %v3572, %v3714
        %v3806 = vadd.f32 %v3573, %v3716
        %v3807 = vadd.f32 %v3574, %v3718
        %v3808 = vadd.f32 %v3575, %v3720
        %v3809 = vadd.f32 %v3576, %v3722
        %v3810 = vadd.f32 %v3577, %v3724
        %v3811 = vadd.f32 %v3578, %v3726
        %v3812 = vadd.f32 %v3579, %v3728
        %v3813 = vadd.f32 %v3580, %v3730
        %v3814 = vadd.f32 %v3581, %v3732
        %v3815 = vadd.f32 %v3582, %v3734
        %v3816 = vadd.f32 %v3583, %v3736
        %v3817 = vadd.f32 %v3584, %v3738
        %v3818 = vadd.f32 %v3585, %v3740
        %v3819 = vadd.f32 %v3586, %v3742
        %v3820 = vadd.f32 %v3587, %v3744
        %v3821 = vadd.f32 %v3588, %v3746
        %v3822 = vadd.f32 %v3589, %v3748
        %v3823 = vadd.f32 %v3590, %v3750
        %v3824 = vadd.f32 %v3591, %v3752
        %v3825 = vadd.f32 %v3592, %v3754
        %v3826 = vadd.f32 %v3593, %v3756
        %v3827 = vadd.f32 %v3594, %v3758
        %v3828 = vadd.f32 %v3595, %v3760
        %v3829 = vadd.f32 %v3596, %v3762
        %v3830 = vadd.f32 %v3597, %v3764
        %v3831 = vadd.f32 %v3598, %v3766
        %v3832 = vadd.f32 %v3599, %v3768
        %vm3833 = vcmask 130048
        %3834 = vst.msk [vmem:[%s395] sm:$0xff] %vm3833, %v3801
        %3835 = vst.msk [vmem:[%s395 + $0x8] sm:$0xff] %vm3833, %v3802
        %3836 = vst.msk [vmem:[%s395 + $0x10] sm:$0xff] %vm3833, %v3803
        %3837 = vst.msk [vmem:[%s395 + $0x18] sm:$0xff] %vm3833, %v3804
        %3838 = vst.msk [vmem:[%s395 + $0x20] sm:$0xff] %vm3833, %v3805
        %3839 = vst.msk [vmem:[%s395 + $0x28] sm:$0xff] %vm3833, %v3806
        %3840 = vst.msk [vmem:[%s395 + $0x30] sm:$0xff] %vm3833, %v3807
        %3841 = vst.msk [vmem:[%s395 + $0x38] sm:$0xff] %vm3833, %v3808
        %3842 = vst.msk [vmem:[%s395 + $0x40] sm:$0xff] %vm3833, %v3809
        %3843 = vst.msk [vmem:[%s395 + $0x48] sm:$0xff] %vm3833, %v3810
        %3844 = vst.msk [vmem:[%s395 + $0x50] sm:$0xff] %vm3833, %v3811
        %3845 = vst.msk [vmem:[%s395 + $0x58] sm:$0xff] %vm3833, %v3812
        %3846 = vst.msk [vmem:[%s395 + $0x60] sm:$0xff] %vm3833, %v3813
        %3847 = vst.msk [vmem:[%s395 + $0x68] sm:$0xff] %vm3833, %v3814
        %3848 = vst.msk [vmem:[%s395 + $0x70] sm:$0xff] %vm3833, %v3815
        %3849 = vst.msk [vmem:[%s395 + $0x78] sm:$0xff] %vm3833, %v3816
        %3850 = vst.msk [vmem:[%s395 + $0x80] sm:$0xff] %vm3833, %v3817
        %3851 = vst.msk [vmem:[%s395 + $0x88] sm:$0xff] %vm3833, %v3818
        %3852 = vst.msk [vmem:[%s395 + $0x90] sm:$0xff] %vm3833, %v3819
        %3853 = vst.msk [vmem:[%s395 + $0x98] sm:$0xff] %vm3833, %v3820
        %3854 = vst.msk [vmem:[%s395 + $0xa0] sm:$0xff] %vm3833, %v3821
        %3855 = vst.msk [vmem:[%s395 + $0xa8] sm:$0xff] %vm3833, %v3822
        %3856 = vst.msk [vmem:[%s395 + $0xb0] sm:$0xff] %vm3833, %v3823
        %3857 = vst.msk [vmem:[%s395 + $0xb8] sm:$0xff] %vm3833, %v3824
        %3858 = vst.msk [vmem:[%s395 + $0xc0] sm:$0xff] %vm3833, %v3825
        %3859 = vst.msk [vmem:[%s395 + $0xc8] sm:$0xff] %vm3833, %v3826
        %3860 = vst.msk [vmem:[%s395 + $0xd0] sm:$0xff] %vm3833, %v3827
        %3861 = vst.msk [vmem:[%s395 + $0xd8] sm:$0xff] %vm3833, %v3828
        %3862 = vst.msk [vmem:[%s395 + $0xe0] sm:$0xff] %vm3833, %v3829
        %3863 = vst.msk [vmem:[%s395 + $0xe8] sm:$0xff] %vm3833, %v3830
        %3864 = vst.msk [vmem:[%s395 + $0xf0] sm:$0xff] %vm3833, %v3831
        %3865 = vst.msk [vmem:[%s395 + $0xf8] sm:$0xff] %vm3833, %v3832
        %s3866 = sand.u32 %s203, 1
        %s3867 = scalar_lea.sflag [#allocation5], %s3866
        %s3868 = sand.u32 %s203, 1
        %s3869 = smul.addr %s3868, 256
        %s3870 = scalar_lea.vmem [#allocation15], %s3869
        // Predicated region
        $region77: #{tpu_custom_call.1} parent=47 // pred_check
          %p3871 = pneg %p213
        $region78: #{tpu_custom_call.1} parent=47 // pred_check_branch
          %3873 = sbr.rel (%p3871) target = $region80
        $region79: #{tpu_custom_call.1} parent=47 // pred_region
          %s3875 = ssub.s32 4096, 4096
          %3876 = vsyncadd %s3867, %s3875
          %s3877 = smul.addr %s32, 32
          %s3878 = smul.addr %s31, 32
          %s3879 = sadd.s32 %s3877, %s3878
          %s3880 = smul.addr %s3879, 128
          %s3881 = scalar_lea.hbm %s7, %s3880
          %s3882 = sshll.u32 %s3870, 4
          %s3883 = int_to_ptr.vmem [resolvable:$true] %s3882
          %3888 = dma.vmem_to_hbm [thread:$0]  %s3883, 4096, %s3881, %s3867, 128, 128, 8
        $region80: #{tpu_custom_call.1} parent=47 // pred_fallthru
          _
      $region48: #{tpu_custom_call.1} parent=5 // pred_fallthru
        _
      %p3889 = scmp.le.s32.totalorder 2, %s22
      // Predicated region
      $region81: #{tpu_custom_call.1} parent=5 // pred_check
        %p3890 = pneg %p3889
      $region82: #{tpu_custom_call.1} parent=5 // pred_check_branch
        %3892 = sbr.rel (%p3890) target = $region84
      $region83: #{tpu_custom_call.1} parent=5 // pred_region
        %s3893 = ssub.s32 %s22, 2
        // Predicated region
        $region85: #{tpu_custom_call.1} parent=83 // pred_check
          %p3894 = pneg %p219
        $region86: #{tpu_custom_call.1} parent=83 // pred_check_branch
          %3896 = sbr.rel (%p3894) target = $region88
        $region87: #{tpu_custom_call.1} parent=83 // pred_region
          %s3897 = sand.u32 %s204, 1
          %s3898 = scalar_lea.sflag [#allocation5], %s3897
          %s3899 = sand.u32 %s204, 1
          %s3900 = smul.addr %s3899, 256
          %s3901 = scalar_lea.vmem [#allocation15], %s3900
          %3902 = dma.done %s3898, 4096
        $region88: #{tpu_custom_call.1} parent=83 // pred_fallthru
          _
      $region84: #{tpu_custom_call.1} parent=5 // pred_fallthru
        _
    $region6: #{tpu_custom_call.1} parent=1 // loop_footer
      %s26 = sadd.s32 1, %s22
    $region7: #{tpu_custom_call.1} parent=1 // loop_footer_branch
      %21 = sbr.rel target = $region3
    $region8: #{tpu_custom_call.1} parent=1 // loop_exit
      _
    %3903 = vsyncpa [#allocation4], 1
    %s3904 = scalar_lea.sflag [#allocation4], 1
    %3905 = vsyncpa %s3904, 1
    %3906 = vsyncpa [#allocation7], 1
    %3907 = vsyncpa [#allocation10], 1
    %3908 = vsyncpa [#allocation13], 1
    %3909 = vsyncpa [#allocation5], 1
    %s3910 = scalar_lea.sflag [#allocation5], 1
    %3911 = vsyncpa %s3910, 1

</llo_original>
